<compile_context>
chip_gen: v7x
topology: tpu7x:2x2x1
jax: 0.10.0
libtpu: 0.0.40
codegen_flags: <defaults>
</compile_context>

<pallas_src>
import functools

import jax
import jax.numpy as jnp
from jax import lax
from jax.experimental import pallas as pl
from jax.experimental.pallas import tpu as pltpu

EPS = 1e-5
LANE = 128


def _ceil_to(x, m):
    return (x + m - 1) // m * m


# ----------------------------- in-kernel helpers ---------------------------- #

def _conv_taps(stride):
    """3x3 taps over the space-to-depth parity planes of the 1-padded input.
    Each tap: (weight index, parity plane, row offset, column offset)."""
    return [(dy * 3 + dx,
             (dy % stride) * stride + (dx % stride),
             dy // stride, dx // stride)
            for dy in range(3) for dx in range(3)]


# conv2 runs at stride 1 over the VMEM conv1 buffer whose valid data sits at
# rows [1, 1+ho) (physical zero border rows) and columns [0, wo) (columns
# >= wo are zeroed), so its column offsets are dx - 1 in {-1, 0, +1}.
_CONV2_TAPS = [(dy * 3 + dx, 0, dy, dx - 1) for dy in range(3) for dx in range(3)]


def _conv3x3(planes, w_ref, taps, ho, wq):
    """3x3 conv as full-width shift-matmuls (bf16 operands, f32 accumulation).

    planes[t] : (rows_t * wq, C) bf16, row-major flattened parity plane.
    w_ref     : (9, C, Cout) bf16 ref (BN-folded weights, tap-major).
    Returns (ho * wq, Cout) f32; only columns [0, wo) of each wq-wide row are
    meaningful -- the caller slices / masks them once in the epilogue.

    Taps are grouped by column offset; the shift is applied with one f32
    pltpu.roll (XLU) per group instead of a sublane-relayout slice per tap.
    """
    groups = {}
    for wi, t, a, b in taps:
        groups.setdefault(b, []).append((wi, t, a))
    acc = None
    for b in sorted(groups):
        part = None
        for wi, t, a in groups[b]:
            xs = planes[t][a * wq:(a + ho) * wq, :]          # aligned row slice
            r = jnp.dot(xs, w_ref[wi], preferred_element_type=jnp.float32)
            part = r if part is None else part + r
        if b:                                                # out col j <- col j + b
            part = pltpu.roll(part, shift=(-b) % (ho * wq), axis=0)
        acc = part if acc is None else acc + part
    return acc


def _basic_block_kernel(xq_ref, w1_ref, b1_ref, w2_ref, b2_ref, *rest,
                        stride, ho, wo, has_sc):
    if has_sc:
        wsc_ref, bsc_ref, o_ref, o1_ref = rest
    else:
        o_ref, o1_ref = rest
    ss, hq, wq, cin = xq_ref.shape
    cout = o_ref.shape[-1]

    planes = [xq_ref[t].reshape(hq * wq, cin) for t in range(ss)]

    # ---- conv1 (3x3 / stride) + BN1 + ReLU -> VMEM scratch (never hits HBM)
    acc1 = _conv3x3(planes, w1_ref, _conv_taps(stride), ho, wq)
    y1 = jnp.maximum(acc1 + b1_ref[...], 0.0).reshape(ho, wq, cout)
    col = lax.broadcasted_iota(jnp.int32, (1, wq, 1), 1)
    y1 = jnp.where(col < wo, y1, 0.0)          # zero cols >= wo: conv2 zero-pad
    zrow = jnp.zeros((1, wq, cout), o1_ref.dtype)
    o1_ref[0:1, :, :] = zrow                   # top pad row
    o1_ref[ho + 1:ho + 2, :, :] = zrow         # bottom pad row
    o1_ref[1:1 + ho, :, :] = y1.astype(o1_ref.dtype)

    # ---- conv2 (3x3 / 1) + BN2
    o1 = o1_ref[...].reshape((ho + 2) * wq, cout)
    acc2 = _conv3x3([o1], w2_ref, _CONV2_TAPS, ho, wq) + b2_ref[...]

    # ---- shortcut + residual add + final ReLU
    if has_sc:
        # 1x1 conv + BN shortcut: x[s*i, s*j] lives in parity plane
        # (1%s)*s + (1%s) at row/col offset 1//s -- already resident via xq.
        t_sc = (1 % stride) * stride + (1 % stride)
        off = 1 // stride
        xs = planes[t_sc][off * wq:(off + ho) * wq, :]
        sc = jnp.dot(xs, wsc_ref[...], preferred_element_type=jnp.float32)
        if off:
            sc = pltpu.roll(sc, shift=(ho * wq) - off, axis=0)
        acc2 = acc2 + sc + bsc_ref[...]
        y2 = acc2.reshape(ho, wq, cout)[:, :wo, :]
    else:
        # identity residual: x[i, j] = plane0[i+1, j+1]; shift in f32 via roll.
        res = planes[0][wq:(1 + ho) * wq, :].astype(jnp.float32)
        acc2 = acc2 + pltpu.roll(res, shift=(ho * wq) - 1, axis=0)
        y2 = acc2.reshape(ho, wq, cout)[:, :wo, :]

    o_ref[...] = jnp.maximum(y2, 0.0).astype(o_ref.dtype)


# ------------------------------ kernel launcher ----------------------------- #

def _compiler_params():
    # 32 MiB scoped VMEM: above every generation's default, comfortably below
    # v7x's 64 MiB per-TC VMEM, and far more than a per-image ResNet
    # BasicBlock step (a few MiB) needs.
    return pltpu.CompilerParams(
        dimension_semantics=("parallel",),
        vmem_limit_bytes=32 * 1024 * 1024,
    )


def _fused_block_call(xq, w1, b1, w2, b2, sc, stride, ho, wo):
    n, ss, hq, wq, cin_p = xq.shape
    cout_p = w1.shape[-1]
    in_specs = [
        pl.BlockSpec((None, ss, hq, wq, cin_p), lambda i: (i, 0, 0, 0, 0)),
        pl.BlockSpec((9, cin_p, cout_p), lambda i: (0, 0, 0)),
        pl.BlockSpec((1, cout_p), lambda i: (0, 0)),
        pl.BlockSpec((9, cout_p, cout_p), lambda i: (0, 0, 0)),
        pl.BlockSpec((1, cout_p), lambda i: (0, 0)),
    ]
    args = [xq, w1, b1, w2, b2]
    has_sc = sc is not None
    flops = 2 * n * 9 * ho * wq * cout_p * (cin_p + cout_p)
    if has_sc:
        wsc, bsc = sc
        in_specs += [pl.BlockSpec((cin_p, cout_p), lambda i: (0, 0)),
                     pl.BlockSpec((1, cout_p), lambda i: (0, 0))]
        args += [wsc, bsc]
        flops += 2 * n * ho * wq * cin_p * cout_p
    bytes_accessed = sum(int(a.size) * a.dtype.itemsize for a in args)
    bytes_accessed += n * ho * wo * cout_p * 2                  # bf16 output

    kernel = functools.partial(_basic_block_kernel, stride=stride,
                               ho=ho, wo=wo, has_sc=has_sc)
    return pl.pallas_call(
        kernel,
        out_shape=jax.ShapeDtypeStruct((n, ho, wo, cout_p), jnp.bfloat16),
        grid_spec=pltpu.PrefetchScalarGridSpec(
            num_scalar_prefetch=0,
            grid=(n,),
            in_specs=in_specs,
            out_specs=pl.BlockSpec((None, ho, wo, cout_p),
                                   lambda i: (i, 0, 0, 0)),
            scratch_shapes=[pltpu.VMEM((ho + 2, wq, cout_p), jnp.bfloat16)],
        ),
        compiler_params=_compiler_params(),
        cost_estimate=pl.CostEstimate(flops=flops, transcendentals=0,
                                      bytes_accessed=bytes_accessed),
    )(*args)


# ------------------------------- host-side prep ----------------------------- #

def _fold_bn_into_w(w_oihw, conv_b, bn):
    """Fold inference BN into the conv:  BN(conv(x)+b) == conv_{w'}(x) + b'."""
    scale = bn["gamma"] / jnp.sqrt(bn["var"] + EPS)             # (Cout,)
    w_hwio = jnp.transpose(w_oihw, (2, 3, 1, 0)) * scale        # (kh,kw,Cin,Cout)
    bias = bn["beta"] + (conv_b - bn["mean"]) * scale
    return w_hwio, bias


def _pad_last(x, size):
    return jnp.pad(x, [(0, 0)] * (x.ndim - 1) + [(0, size - x.shape[-1])])


def _prep_conv_w(w_hwio, cin_p, cout_p):
    kh, kw, ci, co = w_hwio.shape
    w = jnp.pad(w_hwio, ((0, 0), (0, 0), (0, cin_p - ci), (0, cout_p - co)))
    return w.reshape(kh * kw, cin_p, cout_p).astype(jnp.bfloat16)


def _space_to_depth(xp, s, hq, wq):
    """(N,Hp,Wp,C) -> (N, s*s, hq, wq, C) with out[n,p*s+q,i,j] = xp[n,s*i+p,s*j+q]
    (zero-padded up to (hq*s, wq*s))."""
    n, hp, wp, c = xp.shape
    xp = jnp.pad(xp, ((0, 0), (0, hq * s - hp), (0, wq * s - wp), (0, 0)))
    xp = xp.reshape(n, hq, s, wq, s, c)
    return jnp.transpose(xp, (0, 2, 4, 1, 3, 5)).reshape(n, s * s, hq, wq, c)


# ------------------------------- block forward ------------------------------ #

def basic_block_forward(params, x_nchw, in_planes, planes, stride):
    n, _, h, w = x_nchw.shape
    cin_p = _ceil_to(in_planes, LANE)
    cout_p = _ceil_to(planes, LANE)
    ho = (h + 2 - 3) // stride + 1
    wo = (w + 2 - 3) // stride + 1
    hq = -(-(h + 2) // stride)
    # One padded width for the parity planes AND the conv1 VMEM buffer:
    #   >= ceil((W+2)/stride)  (parity plane width)
    #   >= wo + 1              (zero wrap column for conv2's left zero-pad)
    #   multiple of 16         (tile-aligned bf16 reshapes / dense stores)
    wq = _ceil_to(max(-(-(w + 2) // stride), wo + 1), 16)

    # NCHW -> NHWC, lane-pad channels, single bf16 cast, 1-pixel spatial pad,
    # space-to-depth so the kernel only ever needs unit-stride slices.
    x = jnp.transpose(x_nchw, (0, 2, 3, 1))
    x = _pad_last(x, cin_p).astype(jnp.bfloat16)
    xpad = jnp.pad(x, ((0, 0), (1, 1), (1, 1), (0, 0)))
    xq = _space_to_depth(xpad, stride, hq, wq)          # (N, s*s, hq, wq, cin_p)

    # Fold BN into weights (f32 fold, bf16 matmul operands, f32 bias).
    w1, b1 = _fold_bn_into_w(params["conv1_w"], params["conv1_b"], params["bn1"])
    w2, b2 = _fold_bn_into_w(params["conv2_w"], params["conv2_b"], params["bn2"])
    w1 = _prep_conv_w(w1, cin_p, cout_p)
    w2 = _prep_conv_w(w2, cout_p, cout_p)
    b1 = _pad_last(b1.reshape(1, -1), cout_p)
    b2 = _pad_last(b2.reshape(1, -1), cout_p)

    if stride != 1 or in_planes != planes:
        wsc, bsc = _fold_bn_into_w(params["sc_w"], params["sc_b"], params["bn_sc"])
        wsc = jnp.pad(wsc, ((0, 0), (0, 0), (0, cin_p - in_planes),
                            (0, cout_p - planes)))
        wsc = wsc.reshape(cin_p, cout_p).astype(jnp.bfloat16)
        bsc = _pad_last(bsc.reshape(1, -1), cout_p)
        sc = (wsc, bsc)
    else:
        sc = None

    out = _fused_block_call(xq, w1, b1, w2, b2, sc, stride, ho, wo)
    out = out[..., :planes].astype(jnp.float32)
    return jnp.transpose(out, (0, 3, 1, 2))             # NHWC -> NCHW


# --------------------------------- params ----------------------------------- #

def init_block_params(key, in_planes, planes, stride):
    ks = jax.random.split(key, 9)

    def bn(k, c):
        k1, k2, k3, k4 = jax.random.split(k, 4)
        return dict(gamma=1.0 + 0.1 * jax.random.normal(k1, (c,), jnp.float32),
                    beta=0.1 * jax.random.normal(k2, (c,), jnp.float32),
                    mean=0.1 * jax.random.normal(k3, (c,), jnp.float32),
                    var=0.5 + jax.random.uniform(k4, (c,), jnp.float32))

    p = {
        "conv1_w": 0.1 * jax.random.normal(ks[0], (planes, in_planes, 3, 3), jnp.float32),
        "conv1_b": 0.1 * jax.random.normal(ks[1], (planes,), jnp.float32),
        "bn1": bn(ks[2], planes),
        "conv2_w": 0.1 * jax.random.normal(ks[3], (planes, planes, 3, 3), jnp.float32),
        "conv2_b": 0.1 * jax.random.normal(ks[4], (planes,), jnp.float32),
        "bn2": bn(ks[5], planes),
    }
    if stride != 1 or in_planes != planes:
        p["sc_w"] = 0.1 * jax.random.normal(ks[6], (planes, in_planes, 1, 1), jnp.float32)
        p["sc_b"] = 0.1 * jax.random.normal(ks[7], (planes,), jnp.float32)
        p["bn_sc"] = bn(ks[8], planes)
    return p


# ------------------------------ XLA references ------------------------------ #

def basic_block_reference(params, x_nchw, in_planes, planes, stride,
                          compute_dtype=jnp.float32):
    """XLA reference.  With compute_dtype=bfloat16 it mirrors the kernel's
    quantization points (bf16 operands / intermediate / residual / output,
    f32 accumulation); with float32 it matches the PyTorch module's f32
    semantics (inference-mode BN)."""
    q = lambda a: a.astype(compute_dtype)

    def conv_bias(xi, w_hwio, b, s, pad):
        y = lax.conv_general_dilated(
            q(xi), q(w_hwio), (s, s), ((pad, pad), (pad, pad)),
            dimension_numbers=("NHWC", "HWIO", "NHWC"),
            preferred_element_type=jnp.float32)
        return y + b

    x = jnp.transpose(x_nchw, (0, 2, 3, 1))
    w1, b1 = _fold_bn_into_w(params["conv1_w"], params["conv1_b"], params["bn1"])
    w2, b2 = _fold_bn_into_w(params["conv2_w"], params["conv2_b"], params["bn2"])
    out1 = jnp.maximum(conv_bias(x, w1, b1, stride, 1), 0.0)
    out1 = q(out1)                                       # bf16 VMEM intermediate
    out = conv_bias(out1, w2, b2, 1, 1)
    if stride != 1 or in_planes != planes:
        wsc, bsc = _fold_bn_into_w(params["sc_w"], params["sc_b"], params["bn_sc"])
        short = conv_bias(x, wsc, bsc, stride, 0)
    else:
        short = q(x).astype(jnp.float32)                 # bf16 residual read
    out = jnp.maximum(out + short, 0.0)
    out = q(out).astype(jnp.float32)                     # bf16 output store
    return jnp.transpose(out, (0, 3, 1, 2))


# ----------------------------------- main ------------------------------------ #

if __name__ == "__main__":
    key = jax.random.PRNGKey(0)
    kx, kp1, kp2 = jax.random.split(key, 3)

    fwd = jax.jit(basic_block_forward, static_argnums=(2, 3, 4))

    # Case 1: downsampling block (stride=2, channel expansion) -> conv shortcut
    in_planes, planes, stride = 4, 8, 2
    x = jax.random.normal(kx, (2, in_planes, 16, 16), jnp.float32)
    params = init_block_params(kp1, in_planes, planes, stride)
    out = jax.block_until_ready(fwd(params, x, in_planes, planes, stride))
    assert out.shape == (2, planes, 8, 8)
    ref_q = basic_block_reference(params, x, in_planes, planes, stride, jnp.bfloat16)
    ref_f = basic_block_reference(params, x, in_planes, planes, stride, jnp.float32)
    err_q = float(jnp.max(jnp.abs(out - ref_q)))
    err_f = float(jnp.max(jnp.abs(out - ref_f)))
    assert err_q < 5e-2, f"case1 vs bf16 ref: {err_q}"     # same-precision check
    assert err_f < 2.5e-1, f"case1 vs f32 ref: {err_f}"    # bf16 vs f32 module

    # Case 2: identity shortcut (stride=1, in_planes == planes)
    in_planes2, planes2, stride2 = 4, 4, 1
    params2 = init_block_params(kp2, in_planes2, planes2, stride2)
    out2 = jax.block_until_ready(fwd(params2, x, in_planes2, planes2, stride2))
    assert out2.shape == (2, planes2, 16, 16)
    ref2_q = basic_block_reference(params2, x, in_planes2, planes2, stride2, jnp.bfloat16)
    ref2_f = basic_block_reference(params2, x, in_planes2, planes2, stride2, jnp.float32)
    err2_q = float(jnp.max(jnp.abs(out2 - ref2_q)))
    err2_f = float(jnp.max(jnp.abs(out2 - ref2_f)))
    assert err2_q < 5e-2, f"case2 vs bf16 ref: {err2_q}"
    assert err2_f < 2.5e-1, f"case2 vs f32 ref: {err2_f}"

    print("KERNEL_OK")
</pallas_src>

<mosaic_0001>
module attributes {stable_mosaic.version = 11 : i64} {
  func.func @_basic_block_kernel(%arg0: i32, %arg1: memref<1x4x9x16x128xbf16, #tpu.memory_space<vmem>>, %arg2: memref<9x128x128xbf16, #tpu.memory_space<vmem>>, %arg3: memref<1x128xf32, #tpu.memory_space<vmem>>, %arg4: memref<9x128x128xbf16, #tpu.memory_space<vmem>>, %arg5: memref<1x128xf32, #tpu.memory_space<vmem>>, %arg6: memref<128x128xbf16, #tpu.memory_space<vmem>>, %arg7: memref<1x128xf32, #tpu.memory_space<vmem>>, %arg8: memref<1x8x8x128xbf16, #tpu.memory_space<vmem>>, %arg9: memref<10x16x128xbf16, #tpu.memory_space<vmem>>) attributes {dimension_semantics = [#tpu.dimension_semantics<parallel>], iteration_bounds = array<i64: 2>, scalar_prefetch = 0 : i64, scratch_operands = 1 : i64, tpu.core_type = #tpu.core_type<tc>, window_params = [{transform_indices = @transform_0, window_bounds = array<i64: 1, 4, 9, 16, 128>}, {pipeline_mode = #tpu.pipeline_mode<synchronous>, transform_indices = @transform_1, window_bounds = array<i64: 9, 128, 128>}, {pipeline_mode = #tpu.pipeline_mode<synchronous>, transform_indices = @transform_2, window_bounds = array<i64: 1, 128>}, {pipeline_mode = #tpu.pipeline_mode<synchronous>, transform_indices = @transform_3, window_bounds = array<i64: 9, 128, 128>}, {pipeline_mode = #tpu.pipeline_mode<synchronous>, transform_indices = @transform_4, window_bounds = array<i64: 1, 128>}, {pipeline_mode = #tpu.pipeline_mode<synchronous>, transform_indices = @transform_5, window_bounds = array<i64: 128, 128>}, {pipeline_mode = #tpu.pipeline_mode<synchronous>, transform_indices = @transform_6, window_bounds = array<i64: 1, 128>}, {transform_indices = @transform_7, window_bounds = array<i64: 1, 8, 8, 128>}]} {
    %c0 = arith.constant 0 : index
    %c0_0 = arith.constant 0 : index
    %c0_1 = arith.constant 0 : index
    %c0_2 = arith.constant 0 : index
    %c0_3 = arith.constant 0 : index
    %0 = vector.load %arg1[%c0, %c0_0, %c0_1, %c0_2, %c0_3] : memref<1x4x9x16x128xbf16, #tpu.memory_space<vmem>>, vector<1x1x9x16x128xbf16>
    %1 = vector.shape_cast %0 : vector<1x1x9x16x128xbf16> to vector<9x16x128xbf16>
    %2 = vector.shape_cast %1 : vector<9x16x128xbf16> to vector<144x128xbf16>
    %c0_4 = arith.constant 0 : index
    %c1 = arith.constant 1 : index
    %c0_5 = arith.constant 0 : index
    %c0_6 = arith.constant 0 : index
    %c0_7 = arith.constant 0 : index
    %3 = vector.load %arg1[%c0_4, %c1, %c0_5, %c0_6, %c0_7] : memref<1x4x9x16x128xbf16, #tpu.memory_space<vmem>>, vector<1x1x9x16x128xbf16>
    %4 = vector.shape_cast %3 : vector<1x1x9x16x128xbf16> to vector<9x16x128xbf16>
    %5 = vector.shape_cast %4 : vector<9x16x128xbf16> to vector<144x128xbf16>
    %c0_8 = arith.constant 0 : index
    %c2 = arith.constant 2 : index
    %c0_9 = arith.constant 0 : index
    %c0_10 = arith.constant 0 : index
    %c0_11 = arith.constant 0 : index
    %6 = vector.load %arg1[%c0_8, %c2, %c0_9, %c0_10, %c0_11] : memref<1x4x9x16x128xbf16, #tpu.memory_space<vmem>>, vector<1x1x9x16x128xbf16>
    %7 = vector.shape_cast %6 : vector<1x1x9x16x128xbf16> to vector<9x16x128xbf16>
    %8 = vector.shape_cast %7 : vector<9x16x128xbf16> to vector<144x128xbf16>
    %c0_12 = arith.constant 0 : index
    %c3 = arith.constant 3 : index
    %c0_13 = arith.constant 0 : index
    %c0_14 = arith.constant 0 : index
    %c0_15 = arith.constant 0 : index
    %9 = vector.load %arg1[%c0_12, %c3, %c0_13, %c0_14, %c0_15] : memref<1x4x9x16x128xbf16, #tpu.memory_space<vmem>>, vector<1x1x9x16x128xbf16>
    %10 = vector.shape_cast %9 : vector<1x1x9x16x128xbf16> to vector<9x16x128xbf16>
    %11 = vector.shape_cast %10 : vector<9x16x128xbf16> to vector<144x128xbf16>
    %12 = vector.extract_strided_slice %2 {offsets = [0, 0], sizes = [128, 128], strides = [1, 1]} : vector<144x128xbf16> to vector<128x128xbf16>
    %c0_16 = arith.constant 0 : index
    %c0_17 = arith.constant 0 : index
    %c0_18 = arith.constant 0 : index
    %13 = vector.load %arg2[%c0_16, %c0_17, %c0_18] : memref<9x128x128xbf16, #tpu.memory_space<vmem>>, vector<1x128x128xbf16>
    %14 = vector.shape_cast %13 : vector<1x128x128xbf16> to vector<128x128xbf16>
    %cst = arith.constant dense<0.000000e+00> : vector<128x128xf32>
    %15 = tpu.matmul %12, %14, %cst {dimension_numbers = #tpu.dot_dimension_numbers<[1], [0], [0], [1], [0, 0, 1, 1], [], []>} : vector<128x128xbf16>, vector<128x128xbf16>, vector<128x128xf32> -> vector<128x128xf32>
    %16 = vector.extract_strided_slice %5 {offsets = [0, 0], sizes = [128, 128], strides = [1, 1]} : vector<144x128xbf16> to vector<128x128xbf16>
    %c1_19 = arith.constant 1 : index
    %c0_20 = arith.constant 0 : index
    %c0_21 = arith.constant 0 : index
    %17 = vector.load %arg2[%c1_19, %c0_20, %c0_21] : memref<9x128x128xbf16, #tpu.memory_space<vmem>>, vector<1x128x128xbf16>
    %18 = vector.shape_cast %17 : vector<1x128x128xbf16> to vector<128x128xbf16>
    %cst_22 = arith.constant dense<0.000000e+00> : vector<128x128xf32>
    %19 = tpu.matmul %16, %18, %cst_22 {dimension_numbers = #tpu.dot_dimension_numbers<[1], [0], [0], [1], [0, 0, 1, 1], [], []>} : vector<128x128xbf16>, vector<128x128xbf16>, vector<128x128xf32> -> vector<128x128xf32>
    %20 = arith.addf %15, %19 : vector<128x128xf32>
    %21 = vector.extract_strided_slice %8 {offsets = [0, 0], sizes = [128, 128], strides = [1, 1]} : vector<144x128xbf16> to vector<128x128xbf16>
    %c3_23 = arith.constant 3 : index
    %c0_24 = arith.constant 0 : index
    %c0_25 = arith.constant 0 : index
    %22 = vector.load %arg2[%c3_23, %c0_24, %c0_25] : memref<9x128x128xbf16, #tpu.memory_space<vmem>>, vector<1x128x128xbf16>
    %23 = vector.shape_cast %22 : vector<1x128x128xbf16> to vector<128x128xbf16>
    %cst_26 = arith.constant dense<0.000000e+00> : vector<128x128xf32>
    %24 = tpu.matmul %21, %23, %cst_26 {dimension_numbers = #tpu.dot_dimension_numbers<[1], [0], [0], [1], [0, 0, 1, 1], [], []>} : vector<128x128xbf16>, vector<128x128xbf16>, vector<128x128xf32> -> vector<128x128xf32>
    %25 = arith.addf %20, %24 : vector<128x128xf32>
    %26 = vector.extract_strided_slice %11 {offsets = [0, 0], sizes = [128, 128], strides = [1, 1]} : vector<144x128xbf16> to vector<128x128xbf16>
    %c4 = arith.constant 4 : index
    %c0_27 = arith.constant 0 : index
    %c0_28 = arith.constant 0 : index
    %27 = vector.load %arg2[%c4, %c0_27, %c0_28] : memref<9x128x128xbf16, #tpu.memory_space<vmem>>, vector<1x128x128xbf16>
    %28 = vector.shape_cast %27 : vector<1x128x128xbf16> to vector<128x128xbf16>
    %cst_29 = arith.constant dense<0.000000e+00> : vector<128x128xf32>
    %29 = tpu.matmul %26, %28, %cst_29 {dimension_numbers = #tpu.dot_dimension_numbers<[1], [0], [0], [1], [0, 0, 1, 1], [], []>} : vector<128x128xbf16>, vector<128x128xbf16>, vector<128x128xf32> -> vector<128x128xf32>
    %30 = arith.addf %25, %29 : vector<128x128xf32>
    %31 = vector.extract_strided_slice %2 {offsets = [16, 0], sizes = [128, 128], strides = [1, 1]} : vector<144x128xbf16> to vector<128x128xbf16>
    %c6 = arith.constant 6 : index
    %c0_30 = arith.constant 0 : index
    %c0_31 = arith.constant 0 : index
    %32 = vector.load %arg2[%c6, %c0_30, %c0_31] : memref<9x128x128xbf16, #tpu.memory_space<vmem>>, vector<1x128x128xbf16>
    %33 = vector.shape_cast %32 : vector<1x128x128xbf16> to vector<128x128xbf16>
    %cst_32 = arith.constant dense<0.000000e+00> : vector<128x128xf32>
    %34 = tpu.matmul %31, %33, %cst_32 {dimension_numbers = #tpu.dot_dimension_numbers<[1], [0], [0], [1], [0, 0, 1, 1], [], []>} : vector<128x128xbf16>, vector<128x128xbf16>, vector<128x128xf32> -> vector<128x128xf32>
    %35 = arith.addf %30, %34 : vector<128x128xf32>
    %36 = vector.extract_strided_slice %5 {offsets = [16, 0], sizes = [128, 128], strides = [1, 1]} : vector<144x128xbf16> to vector<128x128xbf16>
    %c7 = arith.constant 7 : index
    %c0_33 = arith.constant 0 : index
    %c0_34 = arith.constant 0 : index
    %37 = vector.load %arg2[%c7, %c0_33, %c0_34] : memref<9x128x128xbf16, #tpu.memory_space<vmem>>, vector<1x128x128xbf16>
    %38 = vector.shape_cast %37 : vector<1x128x128xbf16> to vector<128x128xbf16>
    %cst_35 = arith.constant dense<0.000000e+00> : vector<128x128xf32>
    %39 = tpu.matmul %36, %38, %cst_35 {dimension_numbers = #tpu.dot_dimension_numbers<[1], [0], [0], [1], [0, 0, 1, 1], [], []>} : vector<128x128xbf16>, vector<128x128xbf16>, vector<128x128xf32> -> vector<128x128xf32>
    %40 = arith.addf %35, %39 : vector<128x128xf32>
    %41 = vector.extract_strided_slice %2 {offsets = [0, 0], sizes = [128, 128], strides = [1, 1]} : vector<144x128xbf16> to vector<128x128xbf16>
    %c2_36 = arith.constant 2 : index
    %c0_37 = arith.constant 0 : index
    %c0_38 = arith.constant 0 : index
    %42 = vector.load %arg2[%c2_36, %c0_37, %c0_38] : memref<9x128x128xbf16, #tpu.memory_space<vmem>>, vector<1x128x128xbf16>
    %43 = vector.shape_cast %42 : vector<1x128x128xbf16> to vector<128x128xbf16>
    %cst_39 = arith.constant dense<0.000000e+00> : vector<128x128xf32>
    %44 = tpu.matmul %41, %43, %cst_39 {dimension_numbers = #tpu.dot_dimension_numbers<[1], [0], [0], [1], [0, 0, 1, 1], [], []>} : vector<128x128xbf16>, vector<128x128xbf16>, vector<128x128xf32> -> vector<128x128xf32>
    %45 = vector.extract_strided_slice %8 {offsets = [0, 0], sizes = [128, 128], strides = [1, 1]} : vector<144x128xbf16> to vector<128x128xbf16>
    %c5 = arith.constant 5 : index
    %c0_40 = arith.constant 0 : index
    %c0_41 = arith.constant 0 : index
    %46 = vector.load %arg2[%c5, %c0_40, %c0_41] : memref<9x128x128xbf16, #tpu.memory_space<vmem>>, vector<1x128x128xbf16>
    %47 = vector.shape_cast %46 : vector<1x128x128xbf16> to vector<128x128xbf16>
    %cst_42 = arith.constant dense<0.000000e+00> : vector<128x128xf32>
    %48 = tpu.matmul %45, %47, %cst_42 {dimension_numbers = #tpu.dot_dimension_numbers<[1], [0], [0], [1], [0, 0, 1, 1], [], []>} : vector<128x128xbf16>, vector<128x128xbf16>, vector<128x128xf32> -> vector<128x128xf32>
    %49 = arith.addf %44, %48 : vector<128x128xf32>
    %50 = vector.extract_strided_slice %2 {offsets = [16, 0], sizes = [128, 128], strides = [1, 1]} : vector<144x128xbf16> to vector<128x128xbf16>
    %c8 = arith.constant 8 : index
    %c0_43 = arith.constant 0 : index
    %c0_44 = arith.constant 0 : index
    %51 = vector.load %arg2[%c8, %c0_43, %c0_44] : memref<9x128x128xbf16, #tpu.memory_space<vmem>>, vector<1x128x128xbf16>
    %52 = vector.shape_cast %51 : vector<1x128x128xbf16> to vector<128x128xbf16>
    %cst_45 = arith.constant dense<0.000000e+00> : vector<128x128xf32>
    %53 = tpu.matmul %50, %52, %cst_45 {dimension_numbers = #tpu.dot_dimension_numbers<[1], [0], [0], [1], [0, 0, 1, 1], [], []>} : vector<128x128xbf16>, vector<128x128xbf16>, vector<128x128xf32> -> vector<128x128xf32>
    %54 = arith.addf %49, %53 : vector<128x128xf32>
    %c127_i32 = arith.constant 127 : i32
    %55 = tpu.dynamic_rotate %54 by %c127_i32 dim 0 : vector<128x128xf32>, i32 -> vector<128x128xf32>
    %56 = arith.addf %40, %55 : vector<128x128xf32>
    %c0_46 = arith.constant 0 : index
    %c0_47 = arith.constant 0 : index
    %57 = vector.load %arg3[%c0_46, %c0_47] : memref<1x128xf32, #tpu.memory_space<vmem>>, vector<1x128xf32>
    %58 = vector.broadcast %57 : vector<1x128xf32> to vector<128x128xf32>
    %59 = arith.addf %56, %58 : vector<128x128xf32>
    %cst_48 = arith.constant 0.000000e+00 : f32
    %60 = vector.broadcast %cst_48 : f32 to vector<128x128xf32>
    %61 = arith.maximumf %59, %60 : vector<128x128xf32>
    %62 = vector.shape_cast %61 : vector<128x128xf32> to vector<8x16x128xf32>
    %63 = tpu.iota {dimensions = array<i32: 1>} : vector<1x16x1xi32>
    %c8_i32 = arith.constant 8 : i32
    %64 = vector.broadcast %c8_i32 : i32 to vector<1x16x1xi32>
    %65 = arith.cmpi slt, %63, %64 : vector<1x16x1xi32>
    %cst_49 = arith.constant 0.000000e+00 : f32
    %66 = vector.shape_cast %65 : vector<1x16x1xi1> to vector<1x16x1xi1>
    %67 = vector.broadcast %66 : vector<1x16x1xi1> to vector<8x16x128xi1>
    %68 = vector.broadcast %cst_49 : f32 to vector<8x16x128xf32>
    %69 = arith.select %67, %62, %68 : vector<8x16x128xi1>, vector<8x16x128xf32>
    %cst_50 = arith.constant 0.000000e+00 : bf16
    %70 = vector.broadcast %cst_50 : bf16 to vector<1x16x128xbf16>
    %c0_51 = arith.constant 0 : index
    %c0_52 = arith.constant 0 : index
    %c0_53 = arith.constant 0 : index
    %71 = vector.load %arg9[%c0_51, %c0_52, %c0_53] : memref<10x16x128xbf16, #tpu.memory_space<vmem>>, vector<1x16x128xbf16>
    tpu.vector_store %arg9[%c0_51, %c0_52, %c0_53], %70 {strides = array<i32>} : memref<10x16x128xbf16, #tpu.memory_space<vmem>>, vector<1x16x128xbf16>,
    %c9 = arith.constant 9 : index
    %c0_54 = arith.constant 0 : index
    %c0_55 = arith.constant 0 : index
    %72 = vector.load %arg9[%c9, %c0_54, %c0_55] : memref<10x16x128xbf16, #tpu.memory_space<vmem>>, vector<1x16x128xbf16>
    tpu.vector_store %arg9[%c9, %c0_54, %c0_55], %70 {strides = array<i32>} : memref<10x16x128xbf16, #tpu.memory_space<vmem>>, vector<1x16x128xbf16>,
    %73 = arith.truncf %69 : vector<8x16x128xf32> to vector<8x16x128xbf16>
    %c1_56 = arith.constant 1 : index
    %c0_57 = arith.constant 0 : index
    %c0_58 = arith.constant 0 : index
    %74 = vector.load %arg9[%c1_56, %c0_57, %c0_58] : memref<10x16x128xbf16, #tpu.memory_space<vmem>>, vector<8x16x128xbf16>
    tpu.vector_store %arg9[%c1_56, %c0_57, %c0_58], %73 {strides = array<i32>} : memref<10x16x128xbf16, #tpu.memory_space<vmem>>, vector<8x16x128xbf16>,
    %c0_59 = arith.constant 0 : index
    %c0_60 = arith.constant 0 : index
    %c0_61 = arith.constant 0 : index
    %75 = vector.load %arg9[%c0_59, %c0_60, %c0_61] : memref<10x16x128xbf16, #tpu.memory_space<vmem>>, vector<10x16x128xbf16>
    %76 = vector.shape_cast %75 : vector<10x16x128xbf16> to vector<160x128xbf16>
    %77 = vector.extract_strided_slice %76 {offsets = [0, 0], sizes = [128, 128], strides = [1, 1]} : vector<160x128xbf16> to vector<128x128xbf16>
    %c0_62 = arith.constant 0 : index
    %c0_63 = arith.constant 0 : index
    %c0_64 = arith.constant 0 : index
    %78 = vector.load %arg4[%c0_62, %c0_63, %c0_64] : memref<9x128x128xbf16, #tpu.memory_space<vmem>>, vector<1x128x128xbf16>
    %79 = vector.shape_cast %78 : vector<1x128x128xbf16> to vector<128x128xbf16>
    %cst_65 = arith.constant dense<0.000000e+00> : vector<128x128xf32>
    %80 = tpu.matmul %77, %79, %cst_65 {dimension_numbers = #tpu.dot_dimension_numbers<[1], [0], [0], [1], [0, 0, 1, 1], [], []>} : vector<128x128xbf16>, vector<128x128xbf16>, vector<128x128xf32> -> vector<128x128xf32>
    %81 = vector.extract_strided_slice %76 {offsets = [16, 0], sizes = [128, 128], strides = [1, 1]} : vector<160x128xbf16> to vector<128x128xbf16>
    %c3_66 = arith.constant 3 : index
    %c0_67 = arith.constant 0 : index
    %c0_68 = arith.constant 0 : index
    %82 = vector.load %arg4[%c3_66, %c0_67, %c0_68] : memref<9x128x128xbf16, #tpu.memory_space<vmem>>, vector<1x128x128xbf16>
    %83 = vector.shape_cast %82 : vector<1x128x128xbf16> to vector<128x128xbf16>
    %cst_69 = arith.constant dense<0.000000e+00> : vector<128x128xf32>
    %84 = tpu.matmul %81, %83, %cst_69 {dimension_numbers = #tpu.dot_dimension_numbers<[1], [0], [0], [1], [0, 0, 1, 1], [], []>} : vector<128x128xbf16>, vector<128x128xbf16>, vector<128x128xf32> -> vector<128x128xf32>
    %85 = arith.addf %80, %84 : vector<128x128xf32>
    %86 = vector.extract_strided_slice %76 {offsets = [32, 0], sizes = [128, 128], strides = [1, 1]} : vector<160x128xbf16> to vector<128x128xbf16>
    %c6_70 = arith.constant 6 : index
    %c0_71 = arith.constant 0 : index
    %c0_72 = arith.constant 0 : index
    %87 = vector.load %arg4[%c6_70, %c0_71, %c0_72] : memref<9x128x128xbf16, #tpu.memory_space<vmem>>, vector<1x128x128xbf16>
    %88 = vector.shape_cast %87 : vector<1x128x128xbf16> to vector<128x128xbf16>
    %cst_73 = arith.constant dense<0.000000e+00> : vector<128x128xf32>
    %89 = tpu.matmul %86, %88, %cst_73 {dimension_numbers = #tpu.dot_dimension_numbers<[1], [0], [0], [1], [0, 0, 1, 1], [], []>} : vector<128x128xbf16>, vector<128x128xbf16>, vector<128x128xf32> -> vector<128x128xf32>
    %90 = arith.addf %85, %89 : vector<128x128xf32>
    %c1_i32 = arith.constant 1 : i32
    %91 = tpu.dynamic_rotate %90 by %c1_i32 dim 0 : vector<128x128xf32>, i32 -> vector<128x128xf32>
    %92 = vector.extract_strided_slice %76 {offsets = [0, 0], sizes = [128, 128], strides = [1, 1]} : vector<160x128xbf16> to vector<128x128xbf16>
    %c1_74 = arith.constant 1 : index
    %c0_75 = arith.constant 0 : index
    %c0_76 = arith.constant 0 : index
    %93 = vector.load %arg4[%c1_74, %c0_75, %c0_76] : memref<9x128x128xbf16, #tpu.memory_space<vmem>>, vector<1x128x128xbf16>
    %94 = vector.shape_cast %93 : vector<1x128x128xbf16> to vector<128x128xbf16>
    %cst_77 = arith.constant dense<0.000000e+00> : vector<128x128xf32>
    %95 = tpu.matmul %92, %94, %cst_77 {dimension_numbers = #tpu.dot_dimension_numbers<[1], [0], [0], [1], [0, 0, 1, 1], [], []>} : vector<128x128xbf16>, vector<128x128xbf16>, vector<128x128xf32> -> vector<128x128xf32>
    %96 = vector.extract_strided_slice %76 {offsets = [16, 0], sizes = [128, 128], strides = [1, 1]} : vector<160x128xbf16> to vector<128x128xbf16>
    %c4_78 = arith.constant 4 : index
    %c0_79 = arith.constant 0 : index
    %c0_80 = arith.constant 0 : index
    %97 = vector.load %arg4[%c4_78, %c0_79, %c0_80] : memref<9x128x128xbf16, #tpu.memory_space<vmem>>, vector<1x128x128xbf16>
    %98 = vector.shape_cast %97 : vector<1x128x128xbf16> to vector<128x128xbf16>
    %cst_81 = arith.constant dense<0.000000e+00> : vector<128x128xf32>
    %99 = tpu.matmul %96, %98, %cst_81 {dimension_numbers = #tpu.dot_dimension_numbers<[1], [0], [0], [1], [0, 0, 1, 1], [], []>} : vector<128x128xbf16>, vector<128x128xbf16>, vector<128x128xf32> -> vector<128x128xf32>
    %100 = arith.addf %95, %99 : vector<128x128xf32>
    %101 = vector.extract_strided_slice %76 {offsets = [32, 0], sizes = [128, 128], strides = [1, 1]} : vector<160x128xbf16> to vector<128x128xbf16>
    %c7_82 = arith.constant 7 : index
    %c0_83 = arith.constant 0 : index
    %c0_84 = arith.constant 0 : index
    %102 = vector.load %arg4[%c7_82, %c0_83, %c0_84] : memref<9x128x128xbf16, #tpu.memory_space<vmem>>, vector<1x128x128xbf16>
    %103 = vector.shape_cast %102 : vector<1x128x128xbf16> to vector<128x128xbf16>
    %cst_85 = arith.constant dense<0.000000e+00> : vector<128x128xf32>
    %104 = tpu.matmul %101, %103, %cst_85 {dimension_numbers = #tpu.dot_dimension_numbers<[1], [0], [0], [1], [0, 0, 1, 1], [], []>} : vector<128x128xbf16>, vector<128x128xbf16>, vector<128x128xf32> -> vector<128x128xf32>
    %105 = arith.addf %100, %104 : vector<128x128xf32>
    %106 = arith.addf %91, %105 : vector<128x128xf32>
    %107 = vector.extract_strided_slice %76 {offsets = [0, 0], sizes = [128, 128], strides = [1, 1]} : vector<160x128xbf16> to vector<128x128xbf16>
    %c2_86 = arith.constant 2 : index
    %c0_87 = arith.constant 0 : index
    %c0_88 = arith.constant 0 : index
    %108 = vector.load %arg4[%c2_86, %c0_87, %c0_88] : memref<9x128x128xbf16, #tpu.memory_space<vmem>>, vector<1x128x128xbf16>
    %109 = vector.shape_cast %108 : vector<1x128x128xbf16> to vector<128x128xbf16>
    %cst_89 = arith.constant dense<0.000000e+00> : vector<128x128xf32>
    %110 = tpu.matmul %107, %109, %cst_89 {dimension_numbers = #tpu.dot_dimension_numbers<[1], [0], [0], [1], [0, 0, 1, 1], [], []>} : vector<128x128xbf16>, vector<128x128xbf16>, vector<128x128xf32> -> vector<128x128xf32>
    %111 = vector.extract_strided_slice %76 {offsets = [16, 0], sizes = [128, 128], strides = [1, 1]} : vector<160x128xbf16> to vector<128x128xbf16>
    %c5_90 = arith.constant 5 : index
    %c0_91 = arith.constant 0 : index
    %c0_92 = arith.constant 0 : index
    %112 = vector.load %arg4[%c5_90, %c0_91, %c0_92] : memref<9x128x128xbf16, #tpu.memory_space<vmem>>, vector<1x128x128xbf16>
    %113 = vector.shape_cast %112 : vector<1x128x128xbf16> to vector<128x128xbf16>
    %cst_93 = arith.constant dense<0.000000e+00> : vector<128x128xf32>
    %114 = tpu.matmul %111, %113, %cst_93 {dimension_numbers = #tpu.dot_dimension_numbers<[1], [0], [0], [1], [0, 0, 1, 1], [], []>} : vector<128x128xbf16>, vector<128x128xbf16>, vector<128x128xf32> -> vector<128x128xf32>
    %115 = arith.addf %110, %114 : vector<128x128xf32>
    %116 = vector.extract_strided_slice %76 {offsets = [32, 0], sizes = [128, 128], strides = [1, 1]} : vector<160x128xbf16> to vector<128x128xbf16>
    %c8_94 = arith.constant 8 : index
    %c0_95 = arith.constant 0 : index
    %c0_96 = arith.constant 0 : index
    %117 = vector.load %arg4[%c8_94, %c0_95, %c0_96] : memref<9x128x128xbf16, #tpu.memory_space<vmem>>, vector<1x128x128xbf16>
    %118 = vector.shape_cast %117 : vector<1x128x128xbf16> to vector<128x128xbf16>
    %cst_97 = arith.constant dense<0.000000e+00> : vector<128x128xf32>
    %119 = tpu.matmul %116, %118, %cst_97 {dimension_numbers = #tpu.dot_dimension_numbers<[1], [0], [0], [1], [0, 0, 1, 1], [], []>} : vector<128x128xbf16>, vector<128x128xbf16>, vector<128x128xf32> -> vector<128x128xf32>
    %120 = arith.addf %115, %119 : vector<128x128xf32>
    %c127_i32_98 = arith.constant 127 : i32
    %121 = tpu.dynamic_rotate %120 by %c127_i32_98 dim 0 : vector<128x128xf32>, i32 -> vector<128x128xf32>
    %122 = arith.addf %106, %121 : vector<128x128xf32>
    %c0_99 = arith.constant 0 : index
    %c0_100 = arith.constant 0 : index
    %123 = vector.load %arg5[%c0_99, %c0_100] : memref<1x128xf32, #tpu.memory_space<vmem>>, vector<1x128xf32>
    %124 = vector.broadcast %123 : vector<1x128xf32> to vector<128x128xf32>
    %125 = arith.addf %122, %124 : vector<128x128xf32>
    %126 = vector.extract_strided_slice %11 {offsets = [0, 0], sizes = [128, 128], strides = [1, 1]} : vector<144x128xbf16> to vector<128x128xbf16>
    %c0_101 = arith.constant 0 : index
    %c0_102 = arith.constant 0 : index
    %127 = vector.load %arg6[%c0_101, %c0_102] : memref<128x128xbf16, #tpu.memory_space<vmem>>, vector<128x128xbf16>
    %cst_103 = arith.constant dense<0.000000e+00> : vector<128x128xf32>
    %128 = tpu.matmul %126, %127, %cst_103 {dimension_numbers = #tpu.dot_dimension_numbers<[1], [0], [0], [1], [0, 0, 1, 1], [], []>} : vector<128x128xbf16>, vector<128x128xbf16>, vector<128x128xf32> -> vector<128x128xf32>
    %129 = arith.addf %125, %128 : vector<128x128xf32>
    %c0_104 = arith.constant 0 : index
    %c0_105 = arith.constant 0 : index
    %130 = vector.load %arg7[%c0_104, %c0_105] : memref<1x128xf32, #tpu.memory_space<vmem>>, vector<1x128xf32>
    %131 = vector.broadcast %130 : vector<1x128xf32> to vector<128x128xf32>
    %132 = arith.addf %129, %131 : vector<128x128xf32>
    %133 = vector.shape_cast %132 : vector<128x128xf32> to vector<8x16x128xf32>
    %134 = vector.extract_strided_slice %133 {offsets = [0, 0, 0], sizes = [8, 8, 128], strides = [1, 1, 1]} : vector<8x16x128xf32> to vector<8x8x128xf32>
    %cst_106 = arith.constant 0.000000e+00 : f32
    %135 = vector.broadcast %cst_106 : f32 to vector<8x8x128xf32>
    %136 = arith.maximumf %134, %135 : vector<8x8x128xf32>
    %137 = arith.truncf %136 : vector<8x8x128xf32> to vector<8x8x128xbf16>
    %c0_107 = arith.constant 0 : index
    %c0_108 = arith.constant 0 : index
    %c0_109 = arith.constant 0 : index
    %c0_110 = arith.constant 0 : index
    %138 = vector.load %arg8[%c0_107, %c0_108, %c0_109, %c0_110] : memref<1x8x8x128xbf16, #tpu.memory_space<vmem>>, vector<1x8x8x128xbf16>
    %139 = vector.shape_cast %138 : vector<1x8x8x128xbf16> to vector<8x8x128xbf16>
    %140 = vector.shape_cast %137 : vector<8x8x128xbf16> to vector<1x8x8x128xbf16>
    tpu.vector_store %arg8[%c0_107, %c0_108, %c0_109, %c0_110], %140 {strides = array<i32>} : memref<1x8x8x128xbf16, #tpu.memory_space<vmem>>, vector<1x8x8x128xbf16>,
    return
  }
  func.func @transform_0(%arg0: i32) -> (i32, i32, i32, i32, i32) {
    %c0_i32 = arith.constant 0 : i32
    %c0_i32_0 = arith.constant 0 : i32
    %c0_i32_1 = arith.constant 0 : i32
    %c0_i32_2 = arith.constant 0 : i32
    %c0_i32_3 = arith.constant 0 : i32
    return %arg0, %c0_i32, %c0_i32_0, %c0_i32_1, %c0_i32_2 : i32, i32, i32, i32, i32
  }
  func.func @transform_1(%arg0: i32) -> (i32, i32, i32) {
    %c0_i32 = arith.constant 0 : i32
    %c0_i32_0 = arith.constant 0 : i32
    %c0_i32_1 = arith.constant 0 : i32
    %c0_i32_2 = arith.constant 0 : i32
    return %c0_i32, %c0_i32_0, %c0_i32_1 : i32, i32, i32
  }
  func.func @transform_2(%arg0: i32) -> (i32, i32) {
    %c0_i32 = arith.constant 0 : i32
    %c0_i32_0 = arith.constant 0 : i32
    %c0_i32_1 = arith.constant 0 : i32
    return %c0_i32, %c0_i32_0 : i32, i32
  }
  func.func @transform_3(%arg0: i32) -> (i32, i32, i32) {
    %c0_i32 = arith.constant 0 : i32
    %c0_i32_0 = arith.constant 0 : i32
    %c0_i32_1 = arith.constant 0 : i32
    %c0_i32_2 = arith.constant 0 : i32
    return %c0_i32, %c0_i32_0, %c0_i32_1 : i32, i32, i32
  }
  func.func @transform_4(%arg0: i32) -> (i32, i32) {
    %c0_i32 = arith.constant 0 : i32
    %c0_i32_0 = arith.constant 0 : i32
    %c0_i32_1 = arith.constant 0 : i32
    return %c0_i32, %c0_i32_0 : i32, i32
  }
  func.func @transform_5(%arg0: i32) -> (i32, i32) {
    %c0_i32 = arith.constant 0 : i32
    %c0_i32_0 = arith.constant 0 : i32
    %c0_i32_1 = arith.constant 0 : i32
    return %c0_i32, %c0_i32_0 : i32, i32
  }
  func.func @transform_6(%arg0: i32) -> (i32, i32) {
    %c0_i32 = arith.constant 0 : i32
    %c0_i32_0 = arith.constant 0 : i32
    %c0_i32_1 = arith.constant 0 : i32
    return %c0_i32, %c0_i32_0 : i32, i32
  }
  func.func @transform_7(%arg0: i32) -> (i32, i32, i32, i32) {
    %c0_i32 = arith.constant 0 : i32
    %c0_i32_0 = arith.constant 0 : i32
    %c0_i32_1 = arith.constant 0 : i32
    %c0_i32_2 = arith.constant 0 : i32
    return %arg0, %c0_i32, %c0_i32_0, %c0_i32_1 : i32, i32, i32, i32
  }
}

</mosaic_0001>

<llo_original>
// kernel: basic_block_forward.1
$region0: #{basic_block_forward.1}
  #allocation0 [shape = 'u32[]', space=smem, size = 0x4, offset = 0x4, fixed_abs, tag = 'smem constant byte address 0x4 - core index']
  #allocation1 [shape = 'u32[144,128]{1,0:T(1,128)}', space=vmem, size = 0x12000, scoped, tag = 'internal scratch']
  #allocation2 [shape = 'bf16[10,16,128]{2,1,0:T(16,128)(2,1)}', space=vmem, size = 0xa000, scoped, tag = 'scratch operand']
  %s0 = inlined_call_operand.vmem [shape: bf16[2,4,9,16,128], index: 0, kind: input, shape index: {}]
  %s1 = inlined_call_operand.vmem [shape: bf16[9,128,128], index: 1, kind: input, shape index: {}]
  %s2 = inlined_call_operand.vmem [shape: f32[1,128], index: 2, kind: input, shape index: {}]
  %s3 = inlined_call_operand.vmem [shape: bf16[9,128,128], index: 3, kind: input, shape index: {}]
  %s4 = inlined_call_operand.vmem [shape: f32[1,128], index: 4, kind: input, shape index: {}]
  %s5 = inlined_call_operand.vmem [shape: bf16[128,128], index: 5, kind: input, shape index: {}]
  %s6 = inlined_call_operand.vmem [shape: f32[1,128], index: 6, kind: input, shape index: {}]
  %s7 = inlined_call_operand.vmem [shape: bf16[2,8,8,128], index: 7, kind: output, shape index: {}]
  %s8 = sld [smem:[#allocation0]]
  $region61: #{basic_block_forward.1} parent=0
    _
  %s10 = ssub.s32 1, %s8
  %s11 = scalar_select 0, %s10, %s8
  loop: start=0, step=1, limit=4
  $region2: #{basic_block_forward.1} parent=0 // loop_pre_header
    _
  $region3: #{basic_block_forward.1} parent=0 // loop_header
    %s13 = sphi 0, %s17
    %p14 = scmp.ge.s32.totalorder %s13, 4
    %s23 = sphi 0, %s25
    %s26 = sphi 0, %s23
    %s27 = sphi 0, %s26
    %s43 = sphi 0, %s27
    %s47 = sphi 0, %s47
    %s49 = sphi 0, %s47
    %s50 = sphi 0, %s49
    %s64 = sphi 0, %s50
    %s68 = sphi 0, %s68
    %s70 = sphi 0, %s68
    %s71 = sphi 0, %s70
    %s85 = sphi 0, %s71
    %s89 = sphi 0, %s89
    %s91 = sphi 0, %s89
    %s92 = sphi 0, %s91
    %s106 = sphi 0, %s92
    %s110 = sphi 0, %s110
    %s112 = sphi 0, %s110
    %s113 = sphi 0, %s112
    %s127 = sphi 0, %s113
    %s131 = sphi 0, %s131
    %s133 = sphi 0, %s131
    %s134 = sphi 0, %s133
    %s148 = sphi 0, %s134
    %s152 = sphi 0, %s152
    %s154 = sphi 0, %s152
    %s155 = sphi 0, %s154
    %s169 = sphi 0, %s155
    %s175 = sphi 0, %s177
    %s178 = sphi 0, %s175
    %s179 = sphi 0, %s178
    %s195 = sphi 0, %s179
  $region4: #{basic_block_forward.1} parent=0 // loop_header_branch
    %16 = sbr.rel (%p14) target = $region8
  $region5: #{basic_block_forward.1} parent=0 // loop_body
    %s18 = ssub.s32 %s13, 1
    %s19 = ssub.s32 %s13, 2
    %s20 = sadd.s32 %s13, 1
    %s21 = ssub.s32 %s13, %s20
    %p22 = scmp.eq.s32.totalorder %s21, 0
    %s24 = sadd.s32 %s23, 1
    %s25 = scalar_select %p22, %s23, %s24
    %p28 = pneg %p22
    %p29 = scmp.eq.s32.totalorder %s13, 1
    %p30 = por %p28, %p29
    %p31 = scmp.ne.s32.totalorder %s23, %s26
    %p32 = scmp.eq.s32.totalorder %s13, 0
    %p33 = por %p31, %p32
    %p34 = scmp.ne.s32.totalorder %s23, %s26
    %p35 = scmp.eq.s32.totalorder %s18, 1
    %p36 = por %p34, %p35
    %p37 = scmp.ne.s32.totalorder %s26, %s27
    %p38 = scmp.eq.s32.totalorder %s18, 0
    %p39 = por %p37, %p38
    %p40 = scmp.ne.s32.totalorder %s26, %s27
    %p41 = scmp.eq.s32.totalorder %s19, 1
    %p42 = por %p40, %p41
    %p44 = scmp.ne.s32.totalorder %s27, %s43
    %p45 = scmp.eq.s32.totalorder %s19, 0
    %p46 = por %p44, %p45
    %s48 = sadd.s32 %s47, 1
    %p51 = scmp.eq.s32.totalorder %s13, 1
    %p52 = scmp.ne.s32.totalorder %s47, %s49
    %p53 = scmp.eq.s32.totalorder %s13, 0
    %p54 = por %p52, %p53
    %p55 = scmp.ne.s32.totalorder %s47, %s49
    %p56 = scmp.eq.s32.totalorder %s18, 1
    %p57 = por %p55, %p56
    %p58 = scmp.ne.s32.totalorder %s49, %s50
    %p59 = scmp.eq.s32.totalorder %s18, 0
    %p60 = por %p58, %p59
    %p61 = scmp.ne.s32.totalorder %s49, %s50
    %p62 = scmp.eq.s32.totalorder %s19, 1
    %p63 = por %p61, %p62
    %p65 = scmp.ne.s32.totalorder %s50, %s64
    %p66 = scmp.eq.s32.totalorder %s19, 0
    %p67 = por %p65, %p66
    %s69 = sadd.s32 %s68, 1
    %p72 = scmp.eq.s32.totalorder %s13, 1
    %p73 = scmp.ne.s32.totalorder %s68, %s70
    %p74 = scmp.eq.s32.totalorder %s13, 0
    %p75 = por %p73, %p74
    %p76 = scmp.ne.s32.totalorder %s68, %s70
    %p77 = scmp.eq.s32.totalorder %s18, 1
    %p78 = por %p76, %p77
    %p79 = scmp.ne.s32.totalorder %s70, %s71
    %p80 = scmp.eq.s32.totalorder %s18, 0
    %p81 = por %p79, %p80
    %p82 = scmp.ne.s32.totalorder %s70, %s71
    %p83 = scmp.eq.s32.totalorder %s19, 1
    %p84 = por %p82, %p83
    %p86 = scmp.ne.s32.totalorder %s71, %s85
    %p87 = scmp.eq.s32.totalorder %s19, 0
    %p88 = por %p86, %p87
    %s90 = sadd.s32 %s89, 1
    %p93 = scmp.eq.s32.totalorder %s13, 1
    %p94 = scmp.ne.s32.totalorder %s89, %s91
    %p95 = scmp.eq.s32.totalorder %s13, 0
    %p96 = por %p94, %p95
    %p97 = scmp.ne.s32.totalorder %s89, %s91
    %p98 = scmp.eq.s32.totalorder %s18, 1
    %p99 = por %p97, %p98
    %p100 = scmp.ne.s32.totalorder %s91, %s92
    %p101 = scmp.eq.s32.totalorder %s18, 0
    %p102 = por %p100, %p101
    %p103 = scmp.ne.s32.totalorder %s91, %s92
    %p104 = scmp.eq.s32.totalorder %s19, 1
    %p105 = por %p103, %p104
    %p107 = scmp.ne.s32.totalorder %s92, %s106
    %p108 = scmp.eq.s32.totalorder %s19, 0
    %p109 = por %p107, %p108
    %s111 = sadd.s32 %s110, 1
    %p114 = scmp.eq.s32.totalorder %s13, 1
    %p115 = scmp.ne.s32.totalorder %s110, %s112
    %p116 = scmp.eq.s32.totalorder %s13, 0
    %p117 = por %p115, %p116
    %p118 = scmp.ne.s32.totalorder %s110, %s112
    %p119 = scmp.eq.s32.totalorder %s18, 1
    %p120 = por %p118, %p119
    %p121 = scmp.ne.s32.totalorder %s112, %s113
    %p122 = scmp.eq.s32.totalorder %s18, 0
    %p123 = por %p121, %p122
    %p124 = scmp.ne.s32.totalorder %s112, %s113
    %p125 = scmp.eq.s32.totalorder %s19, 1
    %p126 = por %p124, %p125
    %p128 = scmp.ne.s32.totalorder %s113, %s127
    %p129 = scmp.eq.s32.totalorder %s19, 0
    %p130 = por %p128, %p129
    %s132 = sadd.s32 %s131, 1
    %p135 = scmp.eq.s32.totalorder %s13, 1
    %p136 = scmp.ne.s32.totalorder %s131, %s133
    %p137 = scmp.eq.s32.totalorder %s13, 0
    %p138 = por %p136, %p137
    %p139 = scmp.ne.s32.totalorder %s131, %s133
    %p140 = scmp.eq.s32.totalorder %s18, 1
    %p141 = por %p139, %p140
    %p142 = scmp.ne.s32.totalorder %s133, %s134
    %p143 = scmp.eq.s32.totalorder %s18, 0
    %p144 = por %p142, %p143
    %p145 = scmp.ne.s32.totalorder %s133, %s134
    %p146 = scmp.eq.s32.totalorder %s19, 1
    %p147 = por %p145, %p146
    %p149 = scmp.ne.s32.totalorder %s134, %s148
    %p150 = scmp.eq.s32.totalorder %s19, 0
    %p151 = por %p149, %p150
    %s153 = sadd.s32 %s152, 1
    %p156 = scmp.eq.s32.totalorder %s13, 1
    %p157 = scmp.ne.s32.totalorder %s152, %s154
    %p158 = scmp.eq.s32.totalorder %s13, 0
    %p159 = por %p157, %p158
    %p160 = scmp.ne.s32.totalorder %s152, %s154
    %p161 = scmp.eq.s32.totalorder %s18, 1
    %p162 = por %p160, %p161
    %p163 = scmp.ne.s32.totalorder %s154, %s155
    %p164 = scmp.eq.s32.totalorder %s18, 0
    %p165 = por %p163, %p164
    %p166 = scmp.ne.s32.totalorder %s154, %s155
    %p167 = scmp.eq.s32.totalorder %s19, 1
    %p168 = por %p166, %p167
    %p170 = scmp.ne.s32.totalorder %s155, %s169
    %p171 = scmp.eq.s32.totalorder %s19, 0
    %p172 = por %p170, %p171
    %s173 = ssub.s32 %s13, %s20
    %p174 = scmp.eq.s32.totalorder %s173, 0
    %s176 = sadd.s32 %s175, 1
    %s177 = scalar_select %p174, %s175, %s176
    %p180 = pneg %p174
    %p181 = scmp.eq.s32.totalorder %s13, 1
    %p182 = por %p180, %p181
    %p183 = scmp.ne.s32.totalorder %s175, %s178
    %p184 = scmp.eq.s32.totalorder %s13, 0
    %p185 = por %p183, %p184
    %p186 = scmp.ne.s32.totalorder %s175, %s178
    %p187 = scmp.eq.s32.totalorder %s18, 1
    %p188 = por %p186, %p187
    %p189 = scmp.ne.s32.totalorder %s178, %s179
    %p190 = scmp.eq.s32.totalorder %s18, 0
    %p191 = por %p189, %p190
    %p192 = scmp.ne.s32.totalorder %s178, %s179
    %p193 = scmp.eq.s32.totalorder %s19, 1
    %p194 = por %p192, %p193
    %p196 = scmp.ne.s32.totalorder %s179, %s195
    %p197 = scmp.eq.s32.totalorder %s19, 0
    %p198 = por %p196, %p197
    %p199 = scmp.le.s32.totalorder 1, %s13
    %p200 = scmp.lt.s32.totalorder %s13, 3
    %p201 = pnand %p199, %p200
    %p202 = pneg %p201
    // Predicated region
    $region9: #{basic_block_forward.1} parent=5 // pred_check
      _
    $region10: #{basic_block_forward.1} parent=5 // pred_check_branch
      %204 = sbr.rel (%p201) target = $region12
    $region11: #{basic_block_forward.1} parent=5 // pred_region
      %s205 = ssub.s32 %s13, 1
      // Predicated region
      $region13: #{basic_block_forward.1} parent=11 // pred_check
        %p206 = pneg %p60
      $region14: #{basic_block_forward.1} parent=11 // pred_check_branch
        %208 = sbr.rel (%p206) target = $region16
      $region15: #{basic_block_forward.1} parent=11 // pred_region
        _
      $region16: #{basic_block_forward.1} parent=11 // pred_fallthru
        _
      // Predicated region
      $region17: #{basic_block_forward.1} parent=11 // pred_check
        %p209 = pneg %p81
      $region18: #{basic_block_forward.1} parent=11 // pred_check_branch
        %211 = sbr.rel (%p209) target = $region20
      $region19: #{basic_block_forward.1} parent=11 // pred_region
        _
      $region20: #{basic_block_forward.1} parent=11 // pred_fallthru
        _
      // Predicated region
      $region21: #{basic_block_forward.1} parent=11 // pred_check
        %p212 = pneg %p102
      $region22: #{basic_block_forward.1} parent=11 // pred_check_branch
        %214 = sbr.rel (%p212) target = $region24
      $region23: #{basic_block_forward.1} parent=11 // pred_region
        _
      $region24: #{basic_block_forward.1} parent=11 // pred_fallthru
        _
      // Predicated region
      $region25: #{basic_block_forward.1} parent=11 // pred_check
        %p215 = pneg %p123
      $region26: #{basic_block_forward.1} parent=11 // pred_check_branch
        %217 = sbr.rel (%p215) target = $region28
      $region27: #{basic_block_forward.1} parent=11 // pred_region
        _
      $region28: #{basic_block_forward.1} parent=11 // pred_fallthru
        _
      // Predicated region
      $region29: #{basic_block_forward.1} parent=11 // pred_check
        %p218 = pneg %p144
      $region30: #{basic_block_forward.1} parent=11 // pred_check_branch
        %220 = sbr.rel (%p218) target = $region32
      $region31: #{basic_block_forward.1} parent=11 // pred_region
        _
      $region32: #{basic_block_forward.1} parent=11 // pred_fallthru
        _
      // Predicated region
      $region33: #{basic_block_forward.1} parent=11 // pred_check
        %p221 = pneg %p165
      $region34: #{basic_block_forward.1} parent=11 // pred_check_branch
        %223 = sbr.rel (%p221) target = $region36
      $region35: #{basic_block_forward.1} parent=11 // pred_region
        _
      $region36: #{basic_block_forward.1} parent=11 // pred_fallthru
        _
    $region12: #{basic_block_forward.1} parent=5 // pred_fallthru
      _
    %p224 = scmp.lt.s32.totalorder %s13, 2
    // Predicated region
    $region37: #{basic_block_forward.1} parent=5 // pred_check
      %p225 = pneg %p224
    $region38: #{basic_block_forward.1} parent=5 // pred_check_branch
      %227 = sbr.rel (%p225) target = $region40
    $region39: #{basic_block_forward.1} parent=5 // pred_region
      // Predicated region
      $region41: #{basic_block_forward.1} parent=39 // pred_check
        %p228 = pneg %p33
      $region42: #{basic_block_forward.1} parent=39 // pred_check_branch
        %230 = sbr.rel (%p228) target = $region44
      $region43: #{basic_block_forward.1} parent=39 // pred_region
        %p231 = scmp.lt.s32.totalorder %s13, 1
        %s232 = scalar_select %p231, %s13, 1
        %s233 = smul.addr %s232, 72
        %s234 = smul.addr %s233, 4
        %s235 = scalar_lea.vmem %s0, %s234
      $region44: #{basic_block_forward.1} parent=39 // pred_fallthru
        _
    $region40: #{basic_block_forward.1} parent=5 // pred_fallthru
      _
    %p236 = scmp.le.s32.totalorder 1, %s13
    %p237 = scmp.lt.s32.totalorder %s13, 3
    %p238 = pnand %p236, %p237
    %p239 = pneg %p238
    // Predicated region
    $region45: #{basic_block_forward.1} parent=5 // pred_check
      _
    $region46: #{basic_block_forward.1} parent=5 // pred_check_branch
      %241 = sbr.rel (%p238) target = $region48
    $region47: #{basic_block_forward.1} parent=5 // pred_region
      %s242 = ssub.s32 %s13, 1
      %p243 = scmp.lt.s32.totalorder %s18, 1
      %s244 = scalar_select %p243, %s18, 1
      %s245 = smul.addr %s244, 72
      %s246 = smul.addr %s245, 4
      %s247 = scalar_lea.vmem %s0, %s246
      %p248 = pneg %p39
      %p249 = pneg %p36
      %p250 = pneg %p60
      %p251 = pneg %p57
      %p252 = pneg %p81
      %p253 = pneg %p78
      %p254 = pneg %p102
      %p255 = pneg %p99
      %p256 = pneg %p123
      %p257 = pneg %p120
      %p258 = pneg %p144
      %p259 = pneg %p141
      %p260 = pneg %p165
      %p261 = pneg %p162
      %p262 = pneg %p191
      %p263 = pneg %p188
      %p264 = scmp.lt.s32.totalorder %s18, 1
      %s265 = scalar_select %p264, %s18, 1
      %s266 = smul.addr %s265, 8
      %s267 = smul.addr %s266, 4
      %s268 = scalar_lea.vmem %s7, %s267
      %p269 = scmp.lt.s32.totalorder %s18, 1
      %s270 = scalar_select %p269, %s18, 1
      %s271 = smul.addr %s270, 72
      %s272 = smul.addr %s271, 4
      %s273 = scalar_lea.vmem %s0, %s272
      %p274 = scmp.lt.s32.totalorder %s18, 1
      %s275 = scalar_select %p274, %s18, 1
      %s276 = smul.addr %s275, 8
      %s277 = smul.addr %s276, 4
      %s278 = scalar_lea.vmem %s7, %s277
      %v280 = vld [vmem:[%s273] sm:$0xf]
      %v281 = vld [vmem:[%s273 + $0x4] sm:$0xf]
      %v282 = vld [vmem:[%s273 + $0x8] sm:$0xf]
      %v283 = vld [vmem:[%s273 + $0xc] sm:$0xf]
      %v284 = vld [vmem:[%s273 + $0x10] sm:$0xf]
      %v285 = vld [vmem:[%s273 + $0x14] sm:$0xf]
      %v286 = vld [vmem:[%s273 + $0x18] sm:$0xf]
      %v287 = vld [vmem:[%s273 + $0x1c] sm:$0xf]
      %v288 = vld [vmem:[%s273 + $0x20] sm:$0xf]
      %v289 = vld [vmem:[%s273 + $0x24] sm:$0xf]
      %v290 = vld [vmem:[%s273 + $0x28] sm:$0xf]
      %v291 = vld [vmem:[%s273 + $0x2c] sm:$0xf]
      %v292 = vld [vmem:[%s273 + $0x30] sm:$0xf]
      %v293 = vld [vmem:[%s273 + $0x34] sm:$0xf]
      %v294 = vld [vmem:[%s273 + $0x38] sm:$0xf]
      %v295 = vld [vmem:[%s273 + $0x3c] sm:$0xf]
      %v296 = vld [vmem:[%s273 + $0x40] sm:$0xf]
      %v297 = vld [vmem:[%s273 + $0x44] sm:$0xf]
      %s298 = scalar_lea.vmem %s273, 72
      %v299 = vld [vmem:[%s298] sm:$0xf]
      %v300 = vld [vmem:[%s298 + $0x4] sm:$0xf]
      %v301 = vld [vmem:[%s298 + $0x8] sm:$0xf]
      %v302 = vld [vmem:[%s298 + $0xc] sm:$0xf]
      %v303 = vld [vmem:[%s298 + $0x10] sm:$0xf]
      %v304 = vld [vmem:[%s298 + $0x14] sm:$0xf]
      %v305 = vld [vmem:[%s298 + $0x18] sm:$0xf]
      %v306 = vld [vmem:[%s298 + $0x1c] sm:$0xf]
      %v307 = vld [vmem:[%s298 + $0x20] sm:$0xf]
      %v308 = vld [vmem:[%s298 + $0x24] sm:$0xf]
      %v309 = vld [vmem:[%s298 + $0x28] sm:$0xf]
      %v310 = vld [vmem:[%s298 + $0x2c] sm:$0xf]
      %v311 = vld [vmem:[%s298 + $0x30] sm:$0xf]
      %v312 = vld [vmem:[%s298 + $0x34] sm:$0xf]
      %v313 = vld [vmem:[%s298 + $0x38] sm:$0xf]
      %v314 = vld [vmem:[%s298 + $0x3c] sm:$0xf]
      %v315 = vld [vmem:[%s298 + $0x40] sm:$0xf]
      %v316 = vld [vmem:[%s298 + $0x44] sm:$0xf]
      %s317 = scalar_lea.vmem %s273, 144
      %v318 = vld [vmem:[%s317] sm:$0xf]
      %v319 = vld [vmem:[%s317 + $0x4] sm:$0xf]
      %v320 = vld [vmem:[%s317 + $0x8] sm:$0xf]
      %v321 = vld [vmem:[%s317 + $0xc] sm:$0xf]
      %v322 = vld [vmem:[%s317 + $0x10] sm:$0xf]
      %v323 = vld [vmem:[%s317 + $0x14] sm:$0xf]
      %v324 = vld [vmem:[%s317 + $0x18] sm:$0xf]
      %v325 = vld [vmem:[%s317 + $0x1c] sm:$0xf]
      %v326 = vld [vmem:[%s317 + $0x20] sm:$0xf]
      %v327 = vld [vmem:[%s317 + $0x24] sm:$0xf]
      %v328 = vld [vmem:[%s317 + $0x28] sm:$0xf]
      %v329 = vld [vmem:[%s317 + $0x2c] sm:$0xf]
      %v330 = vld [vmem:[%s317 + $0x30] sm:$0xf]
      %v331 = vld [vmem:[%s317 + $0x34] sm:$0xf]
      %v332 = vld [vmem:[%s317 + $0x38] sm:$0xf]
      %v333 = vld [vmem:[%s317 + $0x3c] sm:$0xf]
      %s334 = scalar_lea.vmem %s273, 216
      %v335 = vld [vmem:[%s334] sm:$0xf]
      %v336 = vld [vmem:[%s334 + $0x4] sm:$0xf]
      %v337 = vld [vmem:[%s334 + $0x8] sm:$0xf]
      %v338 = vld [vmem:[%s334 + $0xc] sm:$0xf]
      %v339 = vld [vmem:[%s334 + $0x10] sm:$0xf]
      %v340 = vld [vmem:[%s334 + $0x14] sm:$0xf]
      %v341 = vld [vmem:[%s334 + $0x18] sm:$0xf]
      %v342 = vld [vmem:[%s334 + $0x1c] sm:$0xf]
      %v343 = vld [vmem:[%s334 + $0x20] sm:$0xf]
      %v344 = vld [vmem:[%s334 + $0x24] sm:$0xf]
      %v345 = vld [vmem:[%s334 + $0x28] sm:$0xf]
      %v346 = vld [vmem:[%s334 + $0x2c] sm:$0xf]
      %v347 = vld [vmem:[%s334 + $0x30] sm:$0xf]
      %v348 = vld [vmem:[%s334 + $0x34] sm:$0xf]
      %v349 = vld [vmem:[%s334 + $0x38] sm:$0xf]
      %v350 = vld [vmem:[%s334 + $0x3c] sm:$0xf]
      %v351 = vld [vmem:[%s1] sm:$0xf]
      %v352 = vld [vmem:[%s1 + $0x4] sm:$0xf]
      %v353 = vld [vmem:[%s1 + $0x8] sm:$0xf]
      %v354 = vld [vmem:[%s1 + $0xc] sm:$0xf]
      %v355 = vld [vmem:[%s1 + $0x10] sm:$0xf]
      %v356 = vld [vmem:[%s1 + $0x14] sm:$0xf]
      %v357 = vld [vmem:[%s1 + $0x18] sm:$0xf]
      %v358 = vld [vmem:[%s1 + $0x1c] sm:$0xf]
      %v359 = vld [vmem:[%s1 + $0x20] sm:$0xf]
      %v360 = vld [vmem:[%s1 + $0x24] sm:$0xf]
      %v361 = vld [vmem:[%s1 + $0x28] sm:$0xf]
      %v362 = vld [vmem:[%s1 + $0x2c] sm:$0xf]
      %v363 = vld [vmem:[%s1 + $0x30] sm:$0xf]
      %v364 = vld [vmem:[%s1 + $0x34] sm:$0xf]
      %v365 = vld [vmem:[%s1 + $0x38] sm:$0xf]
      %v366 = vld [vmem:[%s1 + $0x3c] sm:$0xf]
      %s367 = scalar_lea.vmem %s1, 64
      %v368 = vld [vmem:[%s367] sm:$0xf]
      %v369 = vld [vmem:[%s367 + $0x4] sm:$0xf]
      %v370 = vld [vmem:[%s367 + $0x8] sm:$0xf]
      %v371 = vld [vmem:[%s367 + $0xc] sm:$0xf]
      %v372 = vld [vmem:[%s367 + $0x10] sm:$0xf]
      %v373 = vld [vmem:[%s367 + $0x14] sm:$0xf]
      %v374 = vld [vmem:[%s367 + $0x18] sm:$0xf]
      %v375 = vld [vmem:[%s367 + $0x1c] sm:$0xf]
      %v376 = vld [vmem:[%s367 + $0x20] sm:$0xf]
      %v377 = vld [vmem:[%s367 + $0x24] sm:$0xf]
      %v378 = vld [vmem:[%s367 + $0x28] sm:$0xf]
      %v379 = vld [vmem:[%s367 + $0x2c] sm:$0xf]
      %v380 = vld [vmem:[%s367 + $0x30] sm:$0xf]
      %v381 = vld [vmem:[%s367 + $0x34] sm:$0xf]
      %v382 = vld [vmem:[%s367 + $0x38] sm:$0xf]
      %v383 = vld [vmem:[%s367 + $0x3c] sm:$0xf]
      %v400 = vunpack.c.l.b16 %v299
      %v401 = vunpack.c.l.b16 %v300
      %v402 = vunpack.c.l.b16 %v301
      %v403 = vunpack.c.l.b16 %v302
      %v404 = vunpack.c.l.b16 %v303
      %v405 = vunpack.c.l.b16 %v304
      %v406 = vunpack.c.l.b16 %v305
      %v407 = vunpack.c.l.b16 %v306
      %v408 = vunpack.c.l.b16 %v307
      %v409 = vunpack.c.l.b16 %v308
      %v410 = vunpack.c.l.b16 %v309
      %v411 = vunpack.c.l.b16 %v310
      %v412 = vunpack.c.l.b16 %v311
      %v413 = vunpack.c.l.b16 %v312
      %v414 = vunpack.c.l.b16 %v313
      %v415 = vunpack.c.l.b16 %v314
      %v416 = vpack.c.b16 %v401, %v400
      %v417 = vpack.c.b16 %v403, %v402
      %v418 = vpack.c.b16 %v405, %v404
      %v419 = vpack.c.b16 %v407, %v406
      %v420 = vpack.c.b16 %v409, %v408
      %v421 = vpack.c.b16 %v411, %v410
      %v422 = vpack.c.b16 %v413, %v412
      %v423 = vpack.c.b16 %v415, %v414
      %v448 = vunpack.c.l.b16 %v368
      %v449 = vunpack.c.l.b16 %v369
      %v450 = vunpack.c.l.b16 %v370
      %v451 = vunpack.c.l.b16 %v371
      %v452 = vunpack.c.l.b16 %v372
      %v453 = vunpack.c.l.b16 %v373
      %v454 = vunpack.c.l.b16 %v374
      %v455 = vunpack.c.l.b16 %v375
      %v456 = vunpack.c.l.b16 %v376
      %v457 = vunpack.c.l.b16 %v377
      %v458 = vunpack.c.l.b16 %v378
      %v459 = vunpack.c.l.b16 %v379
      %v460 = vunpack.c.l.b16 %v380
      %v461 = vunpack.c.l.b16 %v381
      %v462 = vunpack.c.l.b16 %v382
      %v463 = vunpack.c.l.b16 %v383
      %v464 = vpack.c.b16 %v449, %v448
      %v465 = vpack.c.b16 %v451, %v450
      %v466 = vpack.c.b16 %v453, %v452
      %v467 = vpack.c.b16 %v455, %v454
      %v468 = vpack.c.b16 %v457, %v456
      %v469 = vpack.c.b16 %v459, %v458
      %v470 = vpack.c.b16 %v461, %v460
      %v471 = vpack.c.b16 %v463, %v462
      %480 = vmatprep.subr.bf16.mxu0 0
      %481 = vmatpush1.bf16.msra.mxu0 %v464
      %482 = vmatprep.subr.bf16.mxu0 0
      %483 = vmatpush1.bf16.msra.mxu0 %v465
      %484 = vmatprep.subr.bf16.mxu0 0
      %485 = vmatpush1.bf16.msra.mxu0 %v466
      %486 = vmatprep.subr.bf16.mxu0 0
      %487 = vmatpush1.bf16.msra.mxu0 %v467
      %488 = vmatprep.subr.bf16.mxu0 0
      %489 = vmatpush1.bf16.msra.mxu0 %v468
      %490 = vmatprep.subr.bf16.mxu0 0
      %491 = vmatpush1.bf16.msra.mxu0 %v469
      %492 = vmatprep.subr.bf16.mxu0 0
      %493 = vmatpush1.bf16.msra.mxu0 %v470
      %494 = vmatprep.subr.bf16.mxu0 0
      %495 = vmatpush1.bf16.msra.mxu0 %v471
      %496 = vmatprep.subr.bf16.mxu0 0
      %497 = vmatpush1.bf16.msra.mxu0 0
      %498 = vmatprep.subr.bf16.mxu0 0
      %499 = vmatpush1.bf16.msra.mxu0 0
      %500 = vmatprep.subr.bf16.mxu0 0
      %501 = vmatpush1.bf16.msra.mxu0 0
      %502 = vmatprep.subr.bf16.mxu0 0
      %503 = vmatpush1.bf16.msra.mxu0 0
      %504 = vmatprep.subr.bf16.mxu0 0
      %505 = vmatpush1.bf16.msra.mxu0 0
      %506 = vmatprep.subr.bf16.mxu0 0
      %507 = vmatpush1.bf16.msra.mxu0 0
      %508 = vmatprep.subr.bf16.mxu0 0
      %509 = vmatpush1.bf16.msra.mxu0 0
      %510 = vmatprep.subr.bf16.mxu0 0
      %511 = vmatpush1.bf16.msra.mxu0 0
      %512 = vmatprep.mubr.bf16.mxu0 0
      %513 = vmatmul.mubr.bf16.gmra.mrb[0].mxu0 %v416
      %v514 = vpop.f32.mrb[0].mxu0
      %v515 = vadd.f32 0.0, %v514
      %v516 = vpop.f32.mrb[0].mxu0
      %v517 = vpop.f32.mrb[0].mxu0
      %v518 = vadd.f32 0.0, %v517
      %v519 = vpop.f32.mrb[0].mxu0
      %520 = vmatprep.mubr.bf16.mxu0 0
      %521 = vmatmul.mubr.bf16.gmra.mrb[0].mxu0 %v417
      %v522 = vpop.f32.mrb[0].mxu0
      %v523 = vadd.f32 0.0, %v522
      %v524 = vpop.f32.mrb[0].mxu0
      %v525 = vpop.f32.mrb[0].mxu0
      %v526 = vadd.f32 0.0, %v525
      %v527 = vpop.f32.mrb[0].mxu0
      %528 = vmatprep.mubr.bf16.mxu0 0
      %529 = vmatmul.mubr.bf16.gmra.mrb[0].mxu0 %v418
      %v530 = vpop.f32.mrb[0].mxu0
      %v531 = vadd.f32 0.0, %v530
      %v532 = vpop.f32.mrb[0].mxu0
      %v533 = vpop.f32.mrb[0].mxu0
      %v534 = vadd.f32 0.0, %v533
      %v535 = vpop.f32.mrb[0].mxu0
      %536 = vmatprep.mubr.bf16.mxu0 0
      %537 = vmatmul.mubr.bf16.gmra.mrb[0].mxu0 %v419
      %v538 = vpop.f32.mrb[0].mxu0
      %v539 = vadd.f32 0.0, %v538
      %v540 = vpop.f32.mrb[0].mxu0
      %v541 = vpop.f32.mrb[0].mxu0
      %v542 = vadd.f32 0.0, %v541
      %v543 = vpop.f32.mrb[0].mxu0
      %544 = vmatprep.mubr.bf16.mxu0 0
      %545 = vmatmul.mubr.bf16.gmra.mrb[0].mxu0 %v420
      %v546 = vpop.f32.mrb[0].mxu0
      %v547 = vadd.f32 0.0, %v546
      %v548 = vpop.f32.mrb[0].mxu0
      %v549 = vpop.f32.mrb[0].mxu0
      %v550 = vadd.f32 0.0, %v549
      %v551 = vpop.f32.mrb[0].mxu0
      %552 = vmatprep.mubr.bf16.mxu0 0
      %553 = vmatmul.mubr.bf16.gmra.mrb[0].mxu0 %v421
      %v554 = vpop.f32.mrb[0].mxu0
      %v555 = vadd.f32 0.0, %v554
      %v556 = vpop.f32.mrb[0].mxu0
      %v557 = vpop.f32.mrb[0].mxu0
      %v558 = vadd.f32 0.0, %v557
      %v559 = vpop.f32.mrb[0].mxu0
      %560 = vmatprep.mubr.bf16.mxu0 0
      %561 = vmatmul.mubr.bf16.gmra.mrb[0].mxu0 %v422
      %v562 = vpop.f32.mrb[0].mxu0
      %v563 = vadd.f32 0.0, %v562
      %v564 = vpop.f32.mrb[0].mxu0
      %v565 = vpop.f32.mrb[0].mxu0
      %v566 = vadd.f32 0.0, %v565
      %v567 = vpop.f32.mrb[0].mxu0
      %568 = vmatprep.mubr.bf16.mxu0 0
      %569 = vmatmul.mubr.bf16.gmra.mrb[0].mxu0 %v423
      %v570 = vpop.f32.mrb[0].mxu0
      %v571 = vadd.f32 0.0, %v570
      %v572 = vpop.f32.mrb[0].mxu0
      %v573 = vpop.f32.mrb[0].mxu0
      %v574 = vadd.f32 0.0, %v573
      %v575 = vpop.f32.mrb[0].mxu0
      %576 = vdwg.mxu0
      %v593 = vunpack.c.l.b16 %v280
      %v594 = vunpack.c.l.b16 %v281
      %v595 = vunpack.c.l.b16 %v282
      %v596 = vunpack.c.l.b16 %v283
      %v597 = vunpack.c.l.b16 %v284
      %v598 = vunpack.c.l.b16 %v285
      %v599 = vunpack.c.l.b16 %v286
      %v600 = vunpack.c.l.b16 %v287
      %v601 = vunpack.c.l.b16 %v288
      %v602 = vunpack.c.l.b16 %v289
      %v603 = vunpack.c.l.b16 %v290
      %v604 = vunpack.c.l.b16 %v291
      %v605 = vunpack.c.l.b16 %v292
      %v606 = vunpack.c.l.b16 %v293
      %v607 = vunpack.c.l.b16 %v294
      %v608 = vunpack.c.l.b16 %v295
      %v609 = vpack.c.b16 %v594, %v593
      %v610 = vpack.c.b16 %v596, %v595
      %v611 = vpack.c.b16 %v598, %v597
      %v612 = vpack.c.b16 %v600, %v599
      %v613 = vpack.c.b16 %v602, %v601
      %v614 = vpack.c.b16 %v604, %v603
      %v615 = vpack.c.b16 %v606, %v605
      %v616 = vpack.c.b16 %v608, %v607
      %v641 = vunpack.c.l.b16 %v351
      %v642 = vunpack.c.l.b16 %v352
      %v643 = vunpack.c.l.b16 %v353
      %v644 = vunpack.c.l.b16 %v354
      %v645 = vunpack.c.l.b16 %v355
      %v646 = vunpack.c.l.b16 %v356
      %v647 = vunpack.c.l.b16 %v357
      %v648 = vunpack.c.l.b16 %v358
      %v649 = vunpack.c.l.b16 %v359
      %v650 = vunpack.c.l.b16 %v360
      %v651 = vunpack.c.l.b16 %v361
      %v652 = vunpack.c.l.b16 %v362
      %v653 = vunpack.c.l.b16 %v363
      %v654 = vunpack.c.l.b16 %v364
      %v655 = vunpack.c.l.b16 %v365
      %v656 = vunpack.c.l.b16 %v366
      %v657 = vpack.c.b16 %v642, %v641
      %v658 = vpack.c.b16 %v644, %v643
      %v659 = vpack.c.b16 %v646, %v645
      %v660 = vpack.c.b16 %v648, %v647
      %v661 = vpack.c.b16 %v650, %v649
      %v662 = vpack.c.b16 %v652, %v651
      %v663 = vpack.c.b16 %v654, %v653
      %v664 = vpack.c.b16 %v656, %v655
      %673 = vmatprep.subr.bf16.mxu0 0
      %674 = vmatpush1.bf16.msra.mxu0 %v657
      %675 = vmatprep.subr.bf16.mxu0 0
      %676 = vmatpush1.bf16.msra.mxu0 %v658
      %677 = vmatprep.subr.bf16.mxu0 0
      %678 = vmatpush1.bf16.msra.mxu0 %v659
      %679 = vmatprep.subr.bf16.mxu0 0
      %680 = vmatpush1.bf16.msra.mxu0 %v660
      %681 = vmatprep.subr.bf16.mxu0 0
      %682 = vmatpush1.bf16.msra.mxu0 %v661
      %683 = vmatprep.subr.bf16.mxu0 0
      %684 = vmatpush1.bf16.msra.mxu0 %v662
      %685 = vmatprep.subr.bf16.mxu0 0
      %686 = vmatpush1.bf16.msra.mxu0 %v663
      %687 = vmatprep.subr.bf16.mxu0 0
      %688 = vmatpush1.bf16.msra.mxu0 %v664
      %689 = vmatprep.subr.bf16.mxu0 0
      %690 = vmatpush1.bf16.msra.mxu0 0
      %691 = vmatprep.subr.bf16.mxu0 0
      %692 = vmatpush1.bf16.msra.mxu0 0
      %693 = vmatprep.subr.bf16.mxu0 0
      %694 = vmatpush1.bf16.msra.mxu0 0
      %695 = vmatprep.subr.bf16.mxu0 0
      %696 = vmatpush1.bf16.msra.mxu0 0
      %697 = vmatprep.subr.bf16.mxu0 0
      %698 = vmatpush1.bf16.msra.mxu0 0
      %699 = vmatprep.subr.bf16.mxu0 0
      %700 = vmatpush1.bf16.msra.mxu0 0
      %701 = vmatprep.subr.bf16.mxu0 0
      %702 = vmatpush1.bf16.msra.mxu0 0
      %703 = vmatprep.subr.bf16.mxu0 0
      %704 = vmatpush1.bf16.msra.mxu0 0
      %705 = vmatprep.mubr.bf16.mxu0 0
      %706 = vmatmul.mubr.bf16.gmra.mrb[0].mxu0 %v609
      %v707 = vpop.f32.mrb[0].mxu0
      %v708 = vadd.f32 %v515, %v707
      %v709 = vpop.f32.mrb[0].mxu0
      %v710 = vpop.f32.mrb[0].mxu0
      %v711 = vadd.f32 %v518, %v710
      %v712 = vpop.f32.mrb[0].mxu0
      %713 = vmatprep.mubr.bf16.mxu0 0
      %714 = vmatmul.mubr.bf16.gmra.mrb[0].mxu0 %v610
      %v715 = vpop.f32.mrb[0].mxu0
      %v716 = vadd.f32 %v523, %v715
      %v717 = vpop.f32.mrb[0].mxu0
      %v718 = vpop.f32.mrb[0].mxu0
      %v719 = vadd.f32 %v526, %v718
      %v720 = vpop.f32.mrb[0].mxu0
      %721 = vmatprep.mubr.bf16.mxu0 0
      %722 = vmatmul.mubr.bf16.gmra.mrb[0].mxu0 %v611
      %v723 = vpop.f32.mrb[0].mxu0
      %v724 = vadd.f32 %v531, %v723
      %v725 = vpop.f32.mrb[0].mxu0
      %v726 = vpop.f32.mrb[0].mxu0
      %v727 = vadd.f32 %v534, %v726
      %v728 = vpop.f32.mrb[0].mxu0
      %729 = vmatprep.mubr.bf16.mxu0 0
      %730 = vmatmul.mubr.bf16.gmra.mrb[0].mxu0 %v612
      %v731 = vpop.f32.mrb[0].mxu0
      %v732 = vadd.f32 %v539, %v731
      %v733 = vpop.f32.mrb[0].mxu0
      %v734 = vpop.f32.mrb[0].mxu0
      %v735 = vadd.f32 %v542, %v734
      %v736 = vpop.f32.mrb[0].mxu0
      %737 = vmatprep.mubr.bf16.mxu0 0
      %738 = vmatmul.mubr.bf16.gmra.mrb[0].mxu0 %v613
      %v739 = vpop.f32.mrb[0].mxu0
      %v740 = vadd.f32 %v547, %v739
      %v741 = vpop.f32.mrb[0].mxu0
      %v742 = vpop.f32.mrb[0].mxu0
      %v743 = vadd.f32 %v550, %v742
      %v744 = vpop.f32.mrb[0].mxu0
      %745 = vmatprep.mubr.bf16.mxu0 0
      %746 = vmatmul.mubr.bf16.gmra.mrb[0].mxu0 %v614
      %v747 = vpop.f32.mrb[0].mxu0
      %v748 = vadd.f32 %v555, %v747
      %v749 = vpop.f32.mrb[0].mxu0
      %v750 = vpop.f32.mrb[0].mxu0
      %v751 = vadd.f32 %v558, %v750
      %v752 = vpop.f32.mrb[0].mxu0
      %753 = vmatprep.mubr.bf16.mxu0 0
      %754 = vmatmul.mubr.bf16.gmra.mrb[0].mxu0 %v615
      %v755 = vpop.f32.mrb[0].mxu0
      %v756 = vadd.f32 %v563, %v755
      %v757 = vpop.f32.mrb[0].mxu0
      %v758 = vpop.f32.mrb[0].mxu0
      %v759 = vadd.f32 %v566, %v758
      %v760 = vpop.f32.mrb[0].mxu0
      %761 = vmatprep.mubr.bf16.mxu0 0
      %762 = vmatmul.mubr.bf16.gmra.mrb[0].mxu0 %v616
      %v763 = vpop.f32.mrb[0].mxu0
      %v764 = vadd.f32 %v571, %v763
      %v765 = vpop.f32.mrb[0].mxu0
      %v766 = vpop.f32.mrb[0].mxu0
      %v767 = vadd.f32 %v574, %v766
      %v768 = vpop.f32.mrb[0].mxu0
      %769 = vdwg.mxu0
      %s770 = scalar_lea.vmem %s1, 192
      %v771 = vld [vmem:[%s770] sm:$0xf]
      %v772 = vld [vmem:[%s770 + $0x4] sm:$0xf]
      %v773 = vld [vmem:[%s770 + $0x8] sm:$0xf]
      %v774 = vld [vmem:[%s770 + $0xc] sm:$0xf]
      %v775 = vld [vmem:[%s770 + $0x10] sm:$0xf]
      %v776 = vld [vmem:[%s770 + $0x14] sm:$0xf]
      %v777 = vld [vmem:[%s770 + $0x18] sm:$0xf]
      %v778 = vld [vmem:[%s770 + $0x1c] sm:$0xf]
      %v779 = vld [vmem:[%s770 + $0x20] sm:$0xf]
      %v780 = vld [vmem:[%s770 + $0x24] sm:$0xf]
      %v781 = vld [vmem:[%s770 + $0x28] sm:$0xf]
      %v782 = vld [vmem:[%s770 + $0x2c] sm:$0xf]
      %v783 = vld [vmem:[%s770 + $0x30] sm:$0xf]
      %v784 = vld [vmem:[%s770 + $0x34] sm:$0xf]
      %v785 = vld [vmem:[%s770 + $0x38] sm:$0xf]
      %v786 = vld [vmem:[%s770 + $0x3c] sm:$0xf]
      %v803 = vunpack.c.l.b16 %v318
      %v804 = vunpack.c.l.b16 %v319
      %v805 = vunpack.c.l.b16 %v320
      %v806 = vunpack.c.l.b16 %v321
      %v807 = vunpack.c.l.b16 %v322
      %v808 = vunpack.c.l.b16 %v323
      %v809 = vunpack.c.l.b16 %v324
      %v810 = vunpack.c.l.b16 %v325
      %v811 = vunpack.c.l.b16 %v326
      %v812 = vunpack.c.l.b16 %v327
      %v813 = vunpack.c.l.b16 %v328
      %v814 = vunpack.c.l.b16 %v329
      %v815 = vunpack.c.l.b16 %v330
      %v816 = vunpack.c.l.b16 %v331
      %v817 = vunpack.c.l.b16 %v332
      %v818 = vunpack.c.l.b16 %v333
      %v819 = vpack.c.b16 %v804, %v803
      %v820 = vpack.c.b16 %v806, %v805
      %v821 = vpack.c.b16 %v808, %v807
      %v822 = vpack.c.b16 %v810, %v809
      %v823 = vpack.c.b16 %v812, %v811
      %v824 = vpack.c.b16 %v814, %v813
      %v825 = vpack.c.b16 %v816, %v815
      %v826 = vpack.c.b16 %v818, %v817
      %v851 = vunpack.c.l.b16 %v771
      %v852 = vunpack.c.l.b16 %v772
      %v853 = vunpack.c.l.b16 %v773
      %v854 = vunpack.c.l.b16 %v774
      %v855 = vunpack.c.l.b16 %v775
      %v856 = vunpack.c.l.b16 %v776
      %v857 = vunpack.c.l.b16 %v777
      %v858 = vunpack.c.l.b16 %v778
      %v859 = vunpack.c.l.b16 %v779
      %v860 = vunpack.c.l.b16 %v780
      %v861 = vunpack.c.l.b16 %v781
      %v862 = vunpack.c.l.b16 %v782
      %v863 = vunpack.c.l.b16 %v783
      %v864 = vunpack.c.l.b16 %v784
      %v865 = vunpack.c.l.b16 %v785
      %v866 = vunpack.c.l.b16 %v786
      %v867 = vpack.c.b16 %v852, %v851
      %v868 = vpack.c.b16 %v854, %v853
      %v869 = vpack.c.b16 %v856, %v855
      %v870 = vpack.c.b16 %v858, %v857
      %v871 = vpack.c.b16 %v860, %v859
      %v872 = vpack.c.b16 %v862, %v861
      %v873 = vpack.c.b16 %v864, %v863
      %v874 = vpack.c.b16 %v866, %v865
      %883 = vmatprep.subr.bf16.mxu0 0
      %884 = vmatpush1.bf16.msra.mxu0 %v867
      %885 = vmatprep.subr.bf16.mxu0 0
      %886 = vmatpush1.bf16.msra.mxu0 %v868
      %887 = vmatprep.subr.bf16.mxu0 0
      %888 = vmatpush1.bf16.msra.mxu0 %v869
      %889 = vmatprep.subr.bf16.mxu0 0
      %890 = vmatpush1.bf16.msra.mxu0 %v870
      %891 = vmatprep.subr.bf16.mxu0 0
      %892 = vmatpush1.bf16.msra.mxu0 %v871
      %893 = vmatprep.subr.bf16.mxu0 0
      %894 = vmatpush1.bf16.msra.mxu0 %v872
      %895 = vmatprep.subr.bf16.mxu0 0
      %896 = vmatpush1.bf16.msra.mxu0 %v873
      %897 = vmatprep.subr.bf16.mxu0 0
      %898 = vmatpush1.bf16.msra.mxu0 %v874
      %899 = vmatprep.subr.bf16.mxu0 0
      %900 = vmatpush1.bf16.msra.mxu0 0
      %901 = vmatprep.subr.bf16.mxu0 0
      %902 = vmatpush1.bf16.msra.mxu0 0
      %903 = vmatprep.subr.bf16.mxu0 0
      %904 = vmatpush1.bf16.msra.mxu0 0
      %905 = vmatprep.subr.bf16.mxu0 0
      %906 = vmatpush1.bf16.msra.mxu0 0
      %907 = vmatprep.subr.bf16.mxu0 0
      %908 = vmatpush1.bf16.msra.mxu0 0
      %909 = vmatprep.subr.bf16.mxu0 0
      %910 = vmatpush1.bf16.msra.mxu0 0
      %911 = vmatprep.subr.bf16.mxu0 0
      %912 = vmatpush1.bf16.msra.mxu0 0
      %913 = vmatprep.subr.bf16.mxu0 0
      %914 = vmatpush1.bf16.msra.mxu0 0
      %915 = vmatprep.mubr.bf16.mxu0 0
      %916 = vmatmul.mubr.bf16.gmra.mrb[0].mxu0 %v819
      %v917 = vpop.f32.mrb[0].mxu0
      %v918 = vadd.f32 0.0, %v917
      %v919 = vpop.f32.mrb[0].mxu0
      %v920 = vpop.f32.mrb[0].mxu0
      %v921 = vadd.f32 0.0, %v920
      %v922 = vpop.f32.mrb[0].mxu0
      %923 = vmatprep.mubr.bf16.mxu0 0
      %924 = vmatmul.mubr.bf16.gmra.mrb[0].mxu0 %v820
      %v925 = vpop.f32.mrb[0].mxu0
      %v926 = vadd.f32 0.0, %v925
      %v927 = vpop.f32.mrb[0].mxu0
      %v928 = vpop.f32.mrb[0].mxu0
      %v929 = vadd.f32 0.0, %v928
      %v930 = vpop.f32.mrb[0].mxu0
      %931 = vmatprep.mubr.bf16.mxu0 0
      %932 = vmatmul.mubr.bf16.gmra.mrb[0].mxu0 %v821
      %v933 = vpop.f32.mrb[0].mxu0
      %v934 = vadd.f32 0.0, %v933
      %v935 = vpop.f32.mrb[0].mxu0
      %v936 = vpop.f32.mrb[0].mxu0
      %v937 = vadd.f32 0.0, %v936
      %v938 = vpop.f32.mrb[0].mxu0
      %939 = vmatprep.mubr.bf16.mxu0 0
      %940 = vmatmul.mubr.bf16.gmra.mrb[0].mxu0 %v822
      %v941 = vpop.f32.mrb[0].mxu0
      %v942 = vadd.f32 0.0, %v941
      %v943 = vpop.f32.mrb[0].mxu0
      %v944 = vpop.f32.mrb[0].mxu0
      %v945 = vadd.f32 0.0, %v944
      %v946 = vpop.f32.mrb[0].mxu0
      %947 = vmatprep.mubr.bf16.mxu0 0
      %948 = vmatmul.mubr.bf16.gmra.mrb[0].mxu0 %v823
      %v949 = vpop.f32.mrb[0].mxu0
      %v950 = vadd.f32 0.0, %v949
      %v951 = vpop.f32.mrb[0].mxu0
      %v952 = vpop.f32.mrb[0].mxu0
      %v953 = vadd.f32 0.0, %v952
      %v954 = vpop.f32.mrb[0].mxu0
      %955 = vmatprep.mubr.bf16.mxu0 0
      %956 = vmatmul.mubr.bf16.gmra.mrb[0].mxu0 %v824
      %v957 = vpop.f32.mrb[0].mxu0
      %v958 = vadd.f32 0.0, %v957
      %v959 = vpop.f32.mrb[0].mxu0
      %v960 = vpop.f32.mrb[0].mxu0
      %v961 = vadd.f32 0.0, %v960
      %v962 = vpop.f32.mrb[0].mxu0
      %963 = vmatprep.mubr.bf16.mxu0 0
      %964 = vmatmul.mubr.bf16.gmra.mrb[0].mxu0 %v825
      %v965 = vpop.f32.mrb[0].mxu0
      %v966 = vadd.f32 0.0, %v965
      %v967 = vpop.f32.mrb[0].mxu0
      %v968 = vpop.f32.mrb[0].mxu0
      %v969 = vadd.f32 0.0, %v968
      %v970 = vpop.f32.mrb[0].mxu0
      %971 = vmatprep.mubr.bf16.mxu0 0
      %972 = vmatmul.mubr.bf16.gmra.mrb[0].mxu0 %v826
      %v973 = vpop.f32.mrb[0].mxu0
      %v974 = vadd.f32 0.0, %v973
      %v975 = vpop.f32.mrb[0].mxu0
      %v976 = vpop.f32.mrb[0].mxu0
      %v977 = vadd.f32 0.0, %v976
      %v978 = vpop.f32.mrb[0].mxu0
      %979 = vdwg.mxu0
      %v980 = vadd.f32 %v708, %v918
      %v981 = vadd.f32 %v711, %v921
      %v982 = vadd.f32 %v716, %v926
      %v983 = vadd.f32 %v719, %v929
      %v984 = vadd.f32 %v724, %v934
      %v985 = vadd.f32 %v727, %v937
      %v986 = vadd.f32 %v732, %v942
      %v987 = vadd.f32 %v735, %v945
      %v988 = vadd.f32 %v740, %v950
      %v989 = vadd.f32 %v743, %v953
      %v990 = vadd.f32 %v748, %v958
      %v991 = vadd.f32 %v751, %v961
      %v992 = vadd.f32 %v756, %v966
      %v993 = vadd.f32 %v759, %v969
      %v994 = vadd.f32 %v764, %v974
      %v995 = vadd.f32 %v767, %v977
      %s996 = scalar_lea.vmem %s1, 256
      %v997 = vld [vmem:[%s996] sm:$0xf]
      %v998 = vld [vmem:[%s996 + $0x4] sm:$0xf]
      %v999 = vld [vmem:[%s996 + $0x8] sm:$0xf]
      %v1000 = vld [vmem:[%s996 + $0xc] sm:$0xf]
      %v1001 = vld [vmem:[%s996 + $0x10] sm:$0xf]
      %v1002 = vld [vmem:[%s996 + $0x14] sm:$0xf]
      %v1003 = vld [vmem:[%s996 + $0x18] sm:$0xf]
      %v1004 = vld [vmem:[%s996 + $0x1c] sm:$0xf]
      %v1005 = vld [vmem:[%s996 + $0x20] sm:$0xf]
      %v1006 = vld [vmem:[%s996 + $0x24] sm:$0xf]
      %v1007 = vld [vmem:[%s996 + $0x28] sm:$0xf]
      %v1008 = vld [vmem:[%s996 + $0x2c] sm:$0xf]
      %v1009 = vld [vmem:[%s996 + $0x30] sm:$0xf]
      %v1010 = vld [vmem:[%s996 + $0x34] sm:$0xf]
      %v1011 = vld [vmem:[%s996 + $0x38] sm:$0xf]
      %v1012 = vld [vmem:[%s996 + $0x3c] sm:$0xf]
      %v1029 = vunpack.c.l.b16 %v335
      %v1030 = vunpack.c.l.b16 %v336
      %v1031 = vunpack.c.l.b16 %v337
      %v1032 = vunpack.c.l.b16 %v338
      %v1033 = vunpack.c.l.b16 %v339
      %v1034 = vunpack.c.l.b16 %v340
      %v1035 = vunpack.c.l.b16 %v341
      %v1036 = vunpack.c.l.b16 %v342
      %v1037 = vunpack.c.l.b16 %v343
      %v1038 = vunpack.c.l.b16 %v344
      %v1039 = vunpack.c.l.b16 %v345
      %v1040 = vunpack.c.l.b16 %v346
      %v1041 = vunpack.c.l.b16 %v347
      %v1042 = vunpack.c.l.b16 %v348
      %v1043 = vunpack.c.l.b16 %v349
      %v1044 = vunpack.c.l.b16 %v350
      %v1045 = vpack.c.b16 %v1030, %v1029
      %v1046 = vpack.c.b16 %v1032, %v1031
      %v1047 = vpack.c.b16 %v1034, %v1033
      %v1048 = vpack.c.b16 %v1036, %v1035
      %v1049 = vpack.c.b16 %v1038, %v1037
      %v1050 = vpack.c.b16 %v1040, %v1039
      %v1051 = vpack.c.b16 %v1042, %v1041
      %v1052 = vpack.c.b16 %v1044, %v1043
      %v1077 = vunpack.c.l.b16 %v997
      %v1078 = vunpack.c.l.b16 %v998
      %v1079 = vunpack.c.l.b16 %v999
      %v1080 = vunpack.c.l.b16 %v1000
      %v1081 = vunpack.c.l.b16 %v1001
      %v1082 = vunpack.c.l.b16 %v1002
      %v1083 = vunpack.c.l.b16 %v1003
      %v1084 = vunpack.c.l.b16 %v1004
      %v1085 = vunpack.c.l.b16 %v1005
      %v1086 = vunpack.c.l.b16 %v1006
      %v1087 = vunpack.c.l.b16 %v1007
      %v1088 = vunpack.c.l.b16 %v1008
      %v1089 = vunpack.c.l.b16 %v1009
      %v1090 = vunpack.c.l.b16 %v1010
      %v1091 = vunpack.c.l.b16 %v1011
      %v1092 = vunpack.c.l.b16 %v1012
      %v1093 = vpack.c.b16 %v1078, %v1077
      %v1094 = vpack.c.b16 %v1080, %v1079
      %v1095 = vpack.c.b16 %v1082, %v1081
      %v1096 = vpack.c.b16 %v1084, %v1083
      %v1097 = vpack.c.b16 %v1086, %v1085
      %v1098 = vpack.c.b16 %v1088, %v1087
      %v1099 = vpack.c.b16 %v1090, %v1089
      %v1100 = vpack.c.b16 %v1092, %v1091
      %1109 = vmatprep.subr.bf16.mxu0 0
      %1110 = vmatpush1.bf16.msra.mxu0 %v1093
      %1111 = vmatprep.subr.bf16.mxu0 0
      %1112 = vmatpush1.bf16.msra.mxu0 %v1094
      %1113 = vmatprep.subr.bf16.mxu0 0
      %1114 = vmatpush1.bf16.msra.mxu0 %v1095
      %1115 = vmatprep.subr.bf16.mxu0 0
      %1116 = vmatpush1.bf16.msra.mxu0 %v1096
      %1117 = vmatprep.subr.bf16.mxu0 0
      %1118 = vmatpush1.bf16.msra.mxu0 %v1097
      %1119 = vmatprep.subr.bf16.mxu0 0
      %1120 = vmatpush1.bf16.msra.mxu0 %v1098
      %1121 = vmatprep.subr.bf16.mxu0 0
      %1122 = vmatpush1.bf16.msra.mxu0 %v1099
      %1123 = vmatprep.subr.bf16.mxu0 0
      %1124 = vmatpush1.bf16.msra.mxu0 %v1100
      %1125 = vmatprep.subr.bf16.mxu0 0
      %1126 = vmatpush1.bf16.msra.mxu0 0
      %1127 = vmatprep.subr.bf16.mxu0 0
      %1128 = vmatpush1.bf16.msra.mxu0 0
      %1129 = vmatprep.subr.bf16.mxu0 0
      %1130 = vmatpush1.bf16.msra.mxu0 0
      %1131 = vmatprep.subr.bf16.mxu0 0
      %1132 = vmatpush1.bf16.msra.mxu0 0
      %1133 = vmatprep.subr.bf16.mxu0 0
      %1134 = vmatpush1.bf16.msra.mxu0 0
      %1135 = vmatprep.subr.bf16.mxu0 0
      %1136 = vmatpush1.bf16.msra.mxu0 0
      %1137 = vmatprep.subr.bf16.mxu0 0
      %1138 = vmatpush1.bf16.msra.mxu0 0
      %1139 = vmatprep.subr.bf16.mxu0 0
      %1140 = vmatpush1.bf16.msra.mxu0 0
      %1141 = vmatprep.mubr.bf16.mxu0 0
      %1142 = vmatmul.mubr.bf16.gmra.mrb[0].mxu0 %v1045
      %v1143 = vpop.f32.mrb[0].mxu0
      %v1144 = vadd.f32 0.0, %v1143
      %v1145 = vpop.f32.mrb[0].mxu0
      %v1146 = vpop.f32.mrb[0].mxu0
      %v1147 = vadd.f32 0.0, %v1146
      %v1148 = vpop.f32.mrb[0].mxu0
      %1149 = vmatprep.mubr.bf16.mxu0 0
      %1150 = vmatmul.mubr.bf16.gmra.mrb[0].mxu0 %v1046
      %v1151 = vpop.f32.mrb[0].mxu0
      %v1152 = vadd.f32 0.0, %v1151
      %v1153 = vpop.f32.mrb[0].mxu0
      %v1154 = vpop.f32.mrb[0].mxu0
      %v1155 = vadd.f32 0.0, %v1154
      %v1156 = vpop.f32.mrb[0].mxu0
      %1157 = vmatprep.mubr.bf16.mxu0 0
      %1158 = vmatmul.mubr.bf16.gmra.mrb[0].mxu0 %v1047
      %v1159 = vpop.f32.mrb[0].mxu0
      %v1160 = vadd.f32 0.0, %v1159
      %v1161 = vpop.f32.mrb[0].mxu0
      %v1162 = vpop.f32.mrb[0].mxu0
      %v1163 = vadd.f32 0.0, %v1162
      %v1164 = vpop.f32.mrb[0].mxu0
      %1165 = vmatprep.mubr.bf16.mxu0 0
      %1166 = vmatmul.mubr.bf16.gmra.mrb[0].mxu0 %v1048
      %v1167 = vpop.f32.mrb[0].mxu0
      %v1168 = vadd.f32 0.0, %v1167
      %v1169 = vpop.f32.mrb[0].mxu0
      %v1170 = vpop.f32.mrb[0].mxu0
      %v1171 = vadd.f32 0.0, %v1170
      %v1172 = vpop.f32.mrb[0].mxu0
      %1173 = vmatprep.mubr.bf16.mxu0 0
      %1174 = vmatmul.mubr.bf16.gmra.mrb[0].mxu0 %v1049
      %v1175 = vpop.f32.mrb[0].mxu0
      %v1176 = vadd.f32 0.0, %v1175
      %v1177 = vpop.f32.mrb[0].mxu0
      %v1178 = vpop.f32.mrb[0].mxu0
      %v1179 = vadd.f32 0.0, %v1178
      %v1180 = vpop.f32.mrb[0].mxu0
      %1181 = vmatprep.mubr.bf16.mxu0 0
      %1182 = vmatmul.mubr.bf16.gmra.mrb[0].mxu0 %v1050
      %v1183 = vpop.f32.mrb[0].mxu0
      %v1184 = vadd.f32 0.0, %v1183
      %v1185 = vpop.f32.mrb[0].mxu0
      %v1186 = vpop.f32.mrb[0].mxu0
      %v1187 = vadd.f32 0.0, %v1186
      %v1188 = vpop.f32.mrb[0].mxu0
      %1189 = vmatprep.mubr.bf16.mxu0 0
      %1190 = vmatmul.mubr.bf16.gmra.mrb[0].mxu0 %v1051
      %v1191 = vpop.f32.mrb[0].mxu0
      %v1192 = vadd.f32 0.0, %v1191
      %v1193 = vpop.f32.mrb[0].mxu0
      %v1194 = vpop.f32.mrb[0].mxu0
      %v1195 = vadd.f32 0.0, %v1194
      %v1196 = vpop.f32.mrb[0].mxu0
      %1197 = vmatprep.mubr.bf16.mxu0 0
      %1198 = vmatmul.mubr.bf16.gmra.mrb[0].mxu0 %v1052
      %v1199 = vpop.f32.mrb[0].mxu0
      %v1200 = vadd.f32 0.0, %v1199
      %v1201 = vpop.f32.mrb[0].mxu0
      %v1202 = vpop.f32.mrb[0].mxu0
      %v1203 = vadd.f32 0.0, %v1202
      %v1204 = vpop.f32.mrb[0].mxu0
      %1205 = vdwg.mxu0
      %v1206 = vadd.f32 %v980, %v1144
      %v1207 = vadd.f32 %v981, %v1147
      %v1208 = vadd.f32 %v982, %v1152
      %v1209 = vadd.f32 %v983, %v1155
      %v1210 = vadd.f32 %v984, %v1160
      %v1211 = vadd.f32 %v985, %v1163
      %v1212 = vadd.f32 %v986, %v1168
      %v1213 = vadd.f32 %v987, %v1171
      %v1214 = vadd.f32 %v988, %v1176
      %v1215 = vadd.f32 %v989, %v1179
      %v1216 = vadd.f32 %v990, %v1184
      %v1217 = vadd.f32 %v991, %v1187
      %v1218 = vadd.f32 %v992, %v1192
      %v1219 = vadd.f32 %v993, %v1195
      %v1220 = vadd.f32 %v994, %v1200
      %v1221 = vadd.f32 %v995, %v1203
      %s1222 = scalar_lea.vmem %s1, 384
      %v1223 = vld [vmem:[%s1222] sm:$0xf]
      %v1224 = vld [vmem:[%s1222 + $0x4] sm:$0xf]
      %v1225 = vld [vmem:[%s1222 + $0x8] sm:$0xf]
      %v1226 = vld [vmem:[%s1222 + $0xc] sm:$0xf]
      %v1227 = vld [vmem:[%s1222 + $0x10] sm:$0xf]
      %v1228 = vld [vmem:[%s1222 + $0x14] sm:$0xf]
      %v1229 = vld [vmem:[%s1222 + $0x18] sm:$0xf]
      %v1230 = vld [vmem:[%s1222 + $0x1c] sm:$0xf]
      %v1231 = vld [vmem:[%s1222 + $0x20] sm:$0xf]
      %v1232 = vld [vmem:[%s1222 + $0x24] sm:$0xf]
      %v1233 = vld [vmem:[%s1222 + $0x28] sm:$0xf]
      %v1234 = vld [vmem:[%s1222 + $0x2c] sm:$0xf]
      %v1235 = vld [vmem:[%s1222 + $0x30] sm:$0xf]
      %v1236 = vld [vmem:[%s1222 + $0x34] sm:$0xf]
      %v1237 = vld [vmem:[%s1222 + $0x38] sm:$0xf]
      %v1238 = vld [vmem:[%s1222 + $0x3c] sm:$0xf]
      %v1241 = vunpack.c.l.b16 %v296
      %v1242 = vunpack.c.l.b16 %v297
      %v1243 = vpack.c.b16 %v1242, %v1241
      %v1261 = vunpack.c.l.b16 %v1223
      %v1262 = vunpack.c.l.b16 %v1224
      %v1263 = vunpack.c.l.b16 %v1225
      %v1264 = vunpack.c.l.b16 %v1226
      %v1265 = vunpack.c.l.b16 %v1227
      %v1266 = vunpack.c.l.b16 %v1228
      %v1267 = vunpack.c.l.b16 %v1229
      %v1268 = vunpack.c.l.b16 %v1230
      %v1269 = vunpack.c.l.b16 %v1231
      %v1270 = vunpack.c.l.b16 %v1232
      %v1271 = vunpack.c.l.b16 %v1233
      %v1272 = vunpack.c.l.b16 %v1234
      %v1273 = vunpack.c.l.b16 %v1235
      %v1274 = vunpack.c.l.b16 %v1236
      %v1275 = vunpack.c.l.b16 %v1237
      %v1276 = vunpack.c.l.b16 %v1238
      %v1277 = vpack.c.b16 %v1262, %v1261
      %v1278 = vpack.c.b16 %v1264, %v1263
      %v1279 = vpack.c.b16 %v1266, %v1265
      %v1280 = vpack.c.b16 %v1268, %v1267
      %v1281 = vpack.c.b16 %v1270, %v1269
      %v1282 = vpack.c.b16 %v1272, %v1271
      %v1283 = vpack.c.b16 %v1274, %v1273
      %v1284 = vpack.c.b16 %v1276, %v1275
      %1293 = vmatprep.subr.bf16.mxu0 0
      %1294 = vmatpush1.bf16.msra.mxu0 %v1277
      %1295 = vmatprep.subr.bf16.mxu0 0
      %1296 = vmatpush1.bf16.msra.mxu0 %v1278
      %1297 = vmatprep.subr.bf16.mxu0 0
      %1298 = vmatpush1.bf16.msra.mxu0 %v1279
      %1299 = vmatprep.subr.bf16.mxu0 0
      %1300 = vmatpush1.bf16.msra.mxu0 %v1280
      %1301 = vmatprep.subr.bf16.mxu0 0
      %1302 = vmatpush1.bf16.msra.mxu0 %v1281
      %1303 = vmatprep.subr.bf16.mxu0 0
      %1304 = vmatpush1.bf16.msra.mxu0 %v1282
      %1305 = vmatprep.subr.bf16.mxu0 0
      %1306 = vmatpush1.bf16.msra.mxu0 %v1283
      %1307 = vmatprep.subr.bf16.mxu0 0
      %1308 = vmatpush1.bf16.msra.mxu0 %v1284
      %1309 = vmatprep.subr.bf16.mxu0 0
      %1310 = vmatpush1.bf16.msra.mxu0 0
      %1311 = vmatprep.subr.bf16.mxu0 0
      %1312 = vmatpush1.bf16.msra.mxu0 0
      %1313 = vmatprep.subr.bf16.mxu0 0
      %1314 = vmatpush1.bf16.msra.mxu0 0
      %1315 = vmatprep.subr.bf16.mxu0 0
      %1316 = vmatpush1.bf16.msra.mxu0 0
      %1317 = vmatprep.subr.bf16.mxu0 0
      %1318 = vmatpush1.bf16.msra.mxu0 0
      %1319 = vmatprep.subr.bf16.mxu0 0
      %1320 = vmatpush1.bf16.msra.mxu0 0
      %1321 = vmatprep.subr.bf16.mxu0 0
      %1322 = vmatpush1.bf16.msra.mxu0 0
      %1323 = vmatprep.subr.bf16.mxu0 0
      %1324 = vmatpush1.bf16.msra.mxu0 0
      %1325 = vmatprep.mubr.bf16.mxu0 0
      %1326 = vmatmul.mubr.bf16.gmra.mrb[0].mxu0 %v610
      %v1327 = vpop.f32.mrb[0].mxu0
      %v1328 = vadd.f32 0.0, %v1327
      %v1329 = vpop.f32.mrb[0].mxu0
      %v1330 = vpop.f32.mrb[0].mxu0
      %v1331 = vadd.f32 0.0, %v1330
      %v1332 = vpop.f32.mrb[0].mxu0
      %1333 = vmatprep.mubr.bf16.mxu0 0
      %1334 = vmatmul.mubr.bf16.gmra.mrb[0].mxu0 %v611
      %v1335 = vpop.f32.mrb[0].mxu0
      %v1336 = vadd.f32 0.0, %v1335
      %v1337 = vpop.f32.mrb[0].mxu0
      %v1338 = vpop.f32.mrb[0].mxu0
      %v1339 = vadd.f32 0.0, %v1338
      %v1340 = vpop.f32.mrb[0].mxu0
      %1341 = vmatprep.mubr.bf16.mxu0 0
      %1342 = vmatmul.mubr.bf16.gmra.mrb[0].mxu0 %v612
      %v1343 = vpop.f32.mrb[0].mxu0
      %v1344 = vadd.f32 0.0, %v1343
      %v1345 = vpop.f32.mrb[0].mxu0
      %v1346 = vpop.f32.mrb[0].mxu0
      %v1347 = vadd.f32 0.0, %v1346
      %v1348 = vpop.f32.mrb[0].mxu0
      %1349 = vmatprep.mubr.bf16.mxu0 0
      %1350 = vmatmul.mubr.bf16.gmra.mrb[0].mxu0 %v613
      %v1351 = vpop.f32.mrb[0].mxu0
      %v1352 = vadd.f32 0.0, %v1351
      %v1353 = vpop.f32.mrb[0].mxu0
      %v1354 = vpop.f32.mrb[0].mxu0
      %v1355 = vadd.f32 0.0, %v1354
      %v1356 = vpop.f32.mrb[0].mxu0
      %1357 = vmatprep.mubr.bf16.mxu0 0
      %1358 = vmatmul.mubr.bf16.gmra.mrb[0].mxu0 %v614
      %v1359 = vpop.f32.mrb[0].mxu0
      %v1360 = vadd.f32 0.0, %v1359
      %v1361 = vpop.f32.mrb[0].mxu0
      %v1362 = vpop.f32.mrb[0].mxu0
      %v1363 = vadd.f32 0.0, %v1362
      %v1364 = vpop.f32.mrb[0].mxu0
      %1365 = vmatprep.mubr.bf16.mxu0 0
      %1366 = vmatmul.mubr.bf16.gmra.mrb[0].mxu0 %v615
      %v1367 = vpop.f32.mrb[0].mxu0
      %v1368 = vadd.f32 0.0, %v1367
      %v1369 = vpop.f32.mrb[0].mxu0
      %v1370 = vpop.f32.mrb[0].mxu0
      %v1371 = vadd.f32 0.0, %v1370
      %v1372 = vpop.f32.mrb[0].mxu0
      %1373 = vmatprep.mubr.bf16.mxu0 0
      %1374 = vmatmul.mubr.bf16.gmra.mrb[0].mxu0 %v616
      %v1375 = vpop.f32.mrb[0].mxu0
      %v1376 = vadd.f32 0.0, %v1375
      %v1377 = vpop.f32.mrb[0].mxu0
      %v1378 = vpop.f32.mrb[0].mxu0
      %v1379 = vadd.f32 0.0, %v1378
      %v1380 = vpop.f32.mrb[0].mxu0
      %1381 = vmatprep.mubr.bf16.mxu0 0
      %1382 = vmatmul.mubr.bf16.gmra.mrb[0].mxu0 %v1243
      %v1383 = vpop.f32.mrb[0].mxu0
      %v1384 = vadd.f32 0.0, %v1383
      %v1385 = vpop.f32.mrb[0].mxu0
      %v1386 = vpop.f32.mrb[0].mxu0
      %v1387 = vadd.f32 0.0, %v1386
      %v1388 = vpop.f32.mrb[0].mxu0
      %1389 = vdwg.mxu0
      %v1390 = vadd.f32 %v1206, %v1328
      %v1391 = vadd.f32 %v1207, %v1331
      %v1392 = vadd.f32 %v1208, %v1336
      %v1393 = vadd.f32 %v1209, %v1339
      %v1394 = vadd.f32 %v1210, %v1344
      %v1395 = vadd.f32 %v1211, %v1347
      %v1396 = vadd.f32 %v1212, %v1352
      %v1397 = vadd.f32 %v1213, %v1355
      %v1398 = vadd.f32 %v1214, %v1360
      %v1399 = vadd.f32 %v1215, %v1363
      %v1400 = vadd.f32 %v1216, %v1368
      %v1401 = vadd.f32 %v1217, %v1371
      %v1402 = vadd.f32 %v1218, %v1376
      %v1403 = vadd.f32 %v1219, %v1379
      %v1404 = vadd.f32 %v1220, %v1384
      %v1405 = vadd.f32 %v1221, %v1387
      %s1406 = scalar_lea.vmem %s1, 448
      %v1407 = vld [vmem:[%s1406] sm:$0xf]
      %v1408 = vld [vmem:[%s1406 + $0x4] sm:$0xf]
      %v1409 = vld [vmem:[%s1406 + $0x8] sm:$0xf]
      %v1410 = vld [vmem:[%s1406 + $0xc] sm:$0xf]
      %v1411 = vld [vmem:[%s1406 + $0x10] sm:$0xf]
      %v1412 = vld [vmem:[%s1406 + $0x14] sm:$0xf]
      %v1413 = vld [vmem:[%s1406 + $0x18] sm:$0xf]
      %v1414 = vld [vmem:[%s1406 + $0x1c] sm:$0xf]
      %v1415 = vld [vmem:[%s1406 + $0x20] sm:$0xf]
      %v1416 = vld [vmem:[%s1406 + $0x24] sm:$0xf]
      %v1417 = vld [vmem:[%s1406 + $0x28] sm:$0xf]
      %v1418 = vld [vmem:[%s1406 + $0x2c] sm:$0xf]
      %v1419 = vld [vmem:[%s1406 + $0x30] sm:$0xf]
      %v1420 = vld [vmem:[%s1406 + $0x34] sm:$0xf]
      %v1421 = vld [vmem:[%s1406 + $0x38] sm:$0xf]
      %v1422 = vld [vmem:[%s1406 + $0x3c] sm:$0xf]
      %v1425 = vunpack.c.l.b16 %v315
      %v1426 = vunpack.c.l.b16 %v316
      %v1427 = vpack.c.b16 %v1426, %v1425
      %v1445 = vunpack.c.l.b16 %v1407
      %v1446 = vunpack.c.l.b16 %v1408
      %v1447 = vunpack.c.l.b16 %v1409
      %v1448 = vunpack.c.l.b16 %v1410
      %v1449 = vunpack.c.l.b16 %v1411
      %v1450 = vunpack.c.l.b16 %v1412
      %v1451 = vunpack.c.l.b16 %v1413
      %v1452 = vunpack.c.l.b16 %v1414
      %v1453 = vunpack.c.l.b16 %v1415
      %v1454 = vunpack.c.l.b16 %v1416
      %v1455 = vunpack.c.l.b16 %v1417
      %v1456 = vunpack.c.l.b16 %v1418
      %v1457 = vunpack.c.l.b16 %v1419
      %v1458 = vunpack.c.l.b16 %v1420
      %v1459 = vunpack.c.l.b16 %v1421
      %v1460 = vunpack.c.l.b16 %v1422
      %v1461 = vpack.c.b16 %v1446, %v1445
      %v1462 = vpack.c.b16 %v1448, %v1447
      %v1463 = vpack.c.b16 %v1450, %v1449
      %v1464 = vpack.c.b16 %v1452, %v1451
      %v1465 = vpack.c.b16 %v1454, %v1453
      %v1466 = vpack.c.b16 %v1456, %v1455
      %v1467 = vpack.c.b16 %v1458, %v1457
      %v1468 = vpack.c.b16 %v1460, %v1459
      %1477 = vmatprep.subr.bf16.mxu0 0
      %1478 = vmatpush1.bf16.msra.mxu0 %v1461
      %1479 = vmatprep.subr.bf16.mxu0 0
      %1480 = vmatpush1.bf16.msra.mxu0 %v1462
      %1481 = vmatprep.subr.bf16.mxu0 0
      %1482 = vmatpush1.bf16.msra.mxu0 %v1463
      %1483 = vmatprep.subr.bf16.mxu0 0
      %1484 = vmatpush1.bf16.msra.mxu0 %v1464
      %1485 = vmatprep.subr.bf16.mxu0 0
      %1486 = vmatpush1.bf16.msra.mxu0 %v1465
      %1487 = vmatprep.subr.bf16.mxu0 0
      %1488 = vmatpush1.bf16.msra.mxu0 %v1466
      %1489 = vmatprep.subr.bf16.mxu0 0
      %1490 = vmatpush1.bf16.msra.mxu0 %v1467
      %1491 = vmatprep.subr.bf16.mxu0 0
      %1492 = vmatpush1.bf16.msra.mxu0 %v1468
      %1493 = vmatprep.subr.bf16.mxu0 0
      %1494 = vmatpush1.bf16.msra.mxu0 0
      %1495 = vmatprep.subr.bf16.mxu0 0
      %1496 = vmatpush1.bf16.msra.mxu0 0
      %1497 = vmatprep.subr.bf16.mxu0 0
      %1498 = vmatpush1.bf16.msra.mxu0 0
      %1499 = vmatprep.subr.bf16.mxu0 0
      %1500 = vmatpush1.bf16.msra.mxu0 0
      %1501 = vmatprep.subr.bf16.mxu0 0
      %1502 = vmatpush1.bf16.msra.mxu0 0
      %1503 = vmatprep.subr.bf16.mxu0 0
      %1504 = vmatpush1.bf16.msra.mxu0 0
      %1505 = vmatprep.subr.bf16.mxu0 0
      %1506 = vmatpush1.bf16.msra.mxu0 0
      %1507 = vmatprep.subr.bf16.mxu0 0
      %1508 = vmatpush1.bf16.msra.mxu0 0
      %1509 = vmatprep.mubr.bf16.mxu0 0
      %1510 = vmatmul.mubr.bf16.gmra.mrb[0].mxu0 %v417
      %v1511 = vpop.f32.mrb[0].mxu0
      %v1512 = vadd.f32 0.0, %v1511
      %v1513 = vpop.f32.mrb[0].mxu0
      %v1514 = vpop.f32.mrb[0].mxu0
      %v1515 = vadd.f32 0.0, %v1514
      %v1516 = vpop.f32.mrb[0].mxu0
      %1517 = vmatprep.mubr.bf16.mxu0 0
      %1518 = vmatmul.mubr.bf16.gmra.mrb[0].mxu0 %v418
      %v1519 = vpop.f32.mrb[0].mxu0
      %v1520 = vadd.f32 0.0, %v1519
      %v1521 = vpop.f32.mrb[0].mxu0
      %v1522 = vpop.f32.mrb[0].mxu0
      %v1523 = vadd.f32 0.0, %v1522
      %v1524 = vpop.f32.mrb[0].mxu0
      %1525 = vmatprep.mubr.bf16.mxu0 0
      %1526 = vmatmul.mubr.bf16.gmra.mrb[0].mxu0 %v419
      %v1527 = vpop.f32.mrb[0].mxu0
      %v1528 = vadd.f32 0.0, %v1527
      %v1529 = vpop.f32.mrb[0].mxu0
      %v1530 = vpop.f32.mrb[0].mxu0
      %v1531 = vadd.f32 0.0, %v1530
      %v1532 = vpop.f32.mrb[0].mxu0
      %1533 = vmatprep.mubr.bf16.mxu0 0
      %1534 = vmatmul.mubr.bf16.gmra.mrb[0].mxu0 %v420
      %v1535 = vpop.f32.mrb[0].mxu0
      %v1536 = vadd.f32 0.0, %v1535
      %v1537 = vpop.f32.mrb[0].mxu0
      %v1538 = vpop.f32.mrb[0].mxu0
      %v1539 = vadd.f32 0.0, %v1538
      %v1540 = vpop.f32.mrb[0].mxu0
      %1541 = vmatprep.mubr.bf16.mxu0 0
      %1542 = vmatmul.mubr.bf16.gmra.mrb[0].mxu0 %v421
      %v1543 = vpop.f32.mrb[0].mxu0
      %v1544 = vadd.f32 0.0, %v1543
      %v1545 = vpop.f32.mrb[0].mxu0
      %v1546 = vpop.f32.mrb[0].mxu0
      %v1547 = vadd.f32 0.0, %v1546
      %v1548 = vpop.f32.mrb[0].mxu0
      %1549 = vmatprep.mubr.bf16.mxu0 0
      %1550 = vmatmul.mubr.bf16.gmra.mrb[0].mxu0 %v422
      %v1551 = vpop.f32.mrb[0].mxu0
      %v1552 = vadd.f32 0.0, %v1551
      %v1553 = vpop.f32.mrb[0].mxu0
      %v1554 = vpop.f32.mrb[0].mxu0
      %v1555 = vadd.f32 0.0, %v1554
      %v1556 = vpop.f32.mrb[0].mxu0
      %1557 = vmatprep.mubr.bf16.mxu0 0
      %1558 = vmatmul.mubr.bf16.gmra.mrb[0].mxu0 %v423
      %v1559 = vpop.f32.mrb[0].mxu0
      %v1560 = vadd.f32 0.0, %v1559
      %v1561 = vpop.f32.mrb[0].mxu0
      %v1562 = vpop.f32.mrb[0].mxu0
      %v1563 = vadd.f32 0.0, %v1562
      %v1564 = vpop.f32.mrb[0].mxu0
      %1565 = vmatprep.mubr.bf16.mxu0 0
      %1566 = vmatmul.mubr.bf16.gmra.mrb[0].mxu0 %v1427
      %v1567 = vpop.f32.mrb[0].mxu0
      %v1568 = vadd.f32 0.0, %v1567
      %v1569 = vpop.f32.mrb[0].mxu0
      %v1570 = vpop.f32.mrb[0].mxu0
      %v1571 = vadd.f32 0.0, %v1570
      %v1572 = vpop.f32.mrb[0].mxu0
      %1573 = vdwg.mxu0
      %v1574 = vadd.f32 %v1390, %v1512
      %v1575 = vadd.f32 %v1391, %v1515
      %v1576 = vadd.f32 %v1392, %v1520
      %v1577 = vadd.f32 %v1393, %v1523
      %v1578 = vadd.f32 %v1394, %v1528
      %v1579 = vadd.f32 %v1395, %v1531
      %v1580 = vadd.f32 %v1396, %v1536
      %v1581 = vadd.f32 %v1397, %v1539
      %v1582 = vadd.f32 %v1398, %v1544
      %v1583 = vadd.f32 %v1399, %v1547
      %v1584 = vadd.f32 %v1400, %v1552
      %v1585 = vadd.f32 %v1401, %v1555
      %v1586 = vadd.f32 %v1402, %v1560
      %v1587 = vadd.f32 %v1403, %v1563
      %v1588 = vadd.f32 %v1404, %v1568
      %v1589 = vadd.f32 %v1405, %v1571
      %s1590 = scalar_lea.vmem %s1, 128
      %v1591 = vld [vmem:[%s1590] sm:$0xf]
      %v1592 = vld [vmem:[%s1590 + $0x4] sm:$0xf]
      %v1593 = vld [vmem:[%s1590 + $0x8] sm:$0xf]
      %v1594 = vld [vmem:[%s1590 + $0xc] sm:$0xf]
      %v1595 = vld [vmem:[%s1590 + $0x10] sm:$0xf]
      %v1596 = vld [vmem:[%s1590 + $0x14] sm:$0xf]
      %v1597 = vld [vmem:[%s1590 + $0x18] sm:$0xf]
      %v1598 = vld [vmem:[%s1590 + $0x1c] sm:$0xf]
      %v1599 = vld [vmem:[%s1590 + $0x20] sm:$0xf]
      %v1600 = vld [vmem:[%s1590 + $0x24] sm:$0xf]
      %v1601 = vld [vmem:[%s1590 + $0x28] sm:$0xf]
      %v1602 = vld [vmem:[%s1590 + $0x2c] sm:$0xf]
      %v1603 = vld [vmem:[%s1590 + $0x30] sm:$0xf]
      %v1604 = vld [vmem:[%s1590 + $0x34] sm:$0xf]
      %v1605 = vld [vmem:[%s1590 + $0x38] sm:$0xf]
      %v1606 = vld [vmem:[%s1590 + $0x3c] sm:$0xf]
      %s1607 = scalar_lea.vmem %s1, 320
      %v1608 = vld [vmem:[%s1607] sm:$0xf]
      %v1609 = vld [vmem:[%s1607 + $0x4] sm:$0xf]
      %v1610 = vld [vmem:[%s1607 + $0x8] sm:$0xf]
      %v1611 = vld [vmem:[%s1607 + $0xc] sm:$0xf]
      %v1612 = vld [vmem:[%s1607 + $0x10] sm:$0xf]
      %v1613 = vld [vmem:[%s1607 + $0x14] sm:$0xf]
      %v1614 = vld [vmem:[%s1607 + $0x18] sm:$0xf]
      %v1615 = vld [vmem:[%s1607 + $0x1c] sm:$0xf]
      %v1616 = vld [vmem:[%s1607 + $0x20] sm:$0xf]
      %v1617 = vld [vmem:[%s1607 + $0x24] sm:$0xf]
      %v1618 = vld [vmem:[%s1607 + $0x28] sm:$0xf]
      %v1619 = vld [vmem:[%s1607 + $0x2c] sm:$0xf]
      %v1620 = vld [vmem:[%s1607 + $0x30] sm:$0xf]
      %v1621 = vld [vmem:[%s1607 + $0x34] sm:$0xf]
      %v1622 = vld [vmem:[%s1607 + $0x38] sm:$0xf]
      %v1623 = vld [vmem:[%s1607 + $0x3c] sm:$0xf]
      %v1640 = vunpack.c.l.b16 %v1608
      %v1641 = vunpack.c.l.b16 %v1609
      %v1642 = vunpack.c.l.b16 %v1610
      %v1643 = vunpack.c.l.b16 %v1611
      %v1644 = vunpack.c.l.b16 %v1612
      %v1645 = vunpack.c.l.b16 %v1613
      %v1646 = vunpack.c.l.b16 %v1614
      %v1647 = vunpack.c.l.b16 %v1615
      %v1648 = vunpack.c.l.b16 %v1616
      %v1649 = vunpack.c.l.b16 %v1617
      %v1650 = vunpack.c.l.b16 %v1618
      %v1651 = vunpack.c.l.b16 %v1619
      %v1652 = vunpack.c.l.b16 %v1620
      %v1653 = vunpack.c.l.b16 %v1621
      %v1654 = vunpack.c.l.b16 %v1622
      %v1655 = vunpack.c.l.b16 %v1623
      %v1656 = vpack.c.b16 %v1641, %v1640
      %v1657 = vpack.c.b16 %v1643, %v1642
      %v1658 = vpack.c.b16 %v1645, %v1644
      %v1659 = vpack.c.b16 %v1647, %v1646
      %v1660 = vpack.c.b16 %v1649, %v1648
      %v1661 = vpack.c.b16 %v1651, %v1650
      %v1662 = vpack.c.b16 %v1653, %v1652
      %v1663 = vpack.c.b16 %v1655, %v1654
      %1672 = vmatprep.subr.bf16.mxu0 0
      %1673 = vmatpush1.bf16.msra.mxu0 %v1656
      %1674 = vmatprep.subr.bf16.mxu0 0
      %1675 = vmatpush1.bf16.msra.mxu0 %v1657
      %1676 = vmatprep.subr.bf16.mxu0 0
      %1677 = vmatpush1.bf16.msra.mxu0 %v1658
      %1678 = vmatprep.subr.bf16.mxu0 0
      %1679 = vmatpush1.bf16.msra.mxu0 %v1659
      %1680 = vmatprep.subr.bf16.mxu0 0
      %1681 = vmatpush1.bf16.msra.mxu0 %v1660
      %1682 = vmatprep.subr.bf16.mxu0 0
      %1683 = vmatpush1.bf16.msra.mxu0 %v1661
      %1684 = vmatprep.subr.bf16.mxu0 0
      %1685 = vmatpush1.bf16.msra.mxu0 %v1662
      %1686 = vmatprep.subr.bf16.mxu0 0
      %1687 = vmatpush1.bf16.msra.mxu0 %v1663
      %1688 = vmatprep.subr.bf16.mxu0 0
      %1689 = vmatpush1.bf16.msra.mxu0 0
      %1690 = vmatprep.subr.bf16.mxu0 0
      %1691 = vmatpush1.bf16.msra.mxu0 0
      %1692 = vmatprep.subr.bf16.mxu0 0
      %1693 = vmatpush1.bf16.msra.mxu0 0
      %1694 = vmatprep.subr.bf16.mxu0 0
      %1695 = vmatpush1.bf16.msra.mxu0 0
      %1696 = vmatprep.subr.bf16.mxu0 0
      %1697 = vmatpush1.bf16.msra.mxu0 0
      %1698 = vmatprep.subr.bf16.mxu0 0
      %1699 = vmatpush1.bf16.msra.mxu0 0
      %1700 = vmatprep.subr.bf16.mxu0 0
      %1701 = vmatpush1.bf16.msra.mxu0 0
      %1702 = vmatprep.subr.bf16.mxu0 0
      %1703 = vmatpush1.bf16.msra.mxu0 0
      %1704 = vmatprep.mubr.bf16.mxu0 0
      %1705 = vmatmul.mubr.bf16.gmra.mrb[0].mxu0 %v819
      %v1706 = vpop.f32.mrb[0].mxu0
      %v1707 = vadd.f32 0.0, %v1706
      %v1708 = vpop.f32.mrb[0].mxu0
      %v1709 = vpop.f32.mrb[0].mxu0
      %v1710 = vadd.f32 0.0, %v1709
      %v1711 = vpop.f32.mrb[0].mxu0
      %1712 = vmatprep.mubr.bf16.mxu0 0
      %1713 = vmatmul.mubr.bf16.gmra.mrb[0].mxu0 %v820
      %v1714 = vpop.f32.mrb[0].mxu0
      %v1715 = vadd.f32 0.0, %v1714
      %v1716 = vpop.f32.mrb[0].mxu0
      %v1717 = vpop.f32.mrb[0].mxu0
      %v1718 = vadd.f32 0.0, %v1717
      %v1719 = vpop.f32.mrb[0].mxu0
      %1720 = vmatprep.mubr.bf16.mxu0 0
      %1721 = vmatmul.mubr.bf16.gmra.mrb[0].mxu0 %v821
      %v1722 = vpop.f32.mrb[0].mxu0
      %v1723 = vadd.f32 0.0, %v1722
      %v1724 = vpop.f32.mrb[0].mxu0
      %v1725 = vpop.f32.mrb[0].mxu0
      %v1726 = vadd.f32 0.0, %v1725
      %v1727 = vpop.f32.mrb[0].mxu0
      %1728 = vmatprep.mubr.bf16.mxu0 0
      %1729 = vmatmul.mubr.bf16.gmra.mrb[0].mxu0 %v822
      %v1730 = vpop.f32.mrb[0].mxu0
      %v1731 = vadd.f32 0.0, %v1730
      %v1732 = vpop.f32.mrb[0].mxu0
      %v1733 = vpop.f32.mrb[0].mxu0
      %v1734 = vadd.f32 0.0, %v1733
      %v1735 = vpop.f32.mrb[0].mxu0
      %1736 = vmatprep.mubr.bf16.mxu0 0
      %1737 = vmatmul.mubr.bf16.gmra.mrb[0].mxu0 %v823
      %v1738 = vpop.f32.mrb[0].mxu0
      %v1739 = vadd.f32 0.0, %v1738
      %v1740 = vpop.f32.mrb[0].mxu0
      %v1741 = vpop.f32.mrb[0].mxu0
      %v1742 = vadd.f32 0.0, %v1741
      %v1743 = vpop.f32.mrb[0].mxu0
      %1744 = vmatprep.mubr.bf16.mxu0 0
      %1745 = vmatmul.mubr.bf16.gmra.mrb[0].mxu0 %v824
      %v1746 = vpop.f32.mrb[0].mxu0
      %v1747 = vadd.f32 0.0, %v1746
      %v1748 = vpop.f32.mrb[0].mxu0
      %v1749 = vpop.f32.mrb[0].mxu0
      %v1750 = vadd.f32 0.0, %v1749
      %v1751 = vpop.f32.mrb[0].mxu0
      %1752 = vmatprep.mubr.bf16.mxu0 0
      %1753 = vmatmul.mubr.bf16.gmra.mrb[0].mxu0 %v825
      %v1754 = vpop.f32.mrb[0].mxu0
      %v1755 = vadd.f32 0.0, %v1754
      %v1756 = vpop.f32.mrb[0].mxu0
      %v1757 = vpop.f32.mrb[0].mxu0
      %v1758 = vadd.f32 0.0, %v1757
      %v1759 = vpop.f32.mrb[0].mxu0
      %1760 = vmatprep.mubr.bf16.mxu0 0
      %1761 = vmatmul.mubr.bf16.gmra.mrb[0].mxu0 %v826
      %v1762 = vpop.f32.mrb[0].mxu0
      %v1763 = vadd.f32 0.0, %v1762
      %v1764 = vpop.f32.mrb[0].mxu0
      %v1765 = vpop.f32.mrb[0].mxu0
      %v1766 = vadd.f32 0.0, %v1765
      %v1767 = vpop.f32.mrb[0].mxu0
      %1768 = vdwg.mxu0
      %v1785 = vunpack.c.l.b16 %v1591
      %v1786 = vunpack.c.l.b16 %v1592
      %v1787 = vunpack.c.l.b16 %v1593
      %v1788 = vunpack.c.l.b16 %v1594
      %v1789 = vunpack.c.l.b16 %v1595
      %v1790 = vunpack.c.l.b16 %v1596
      %v1791 = vunpack.c.l.b16 %v1597
      %v1792 = vunpack.c.l.b16 %v1598
      %v1793 = vunpack.c.l.b16 %v1599
      %v1794 = vunpack.c.l.b16 %v1600
      %v1795 = vunpack.c.l.b16 %v1601
      %v1796 = vunpack.c.l.b16 %v1602
      %v1797 = vunpack.c.l.b16 %v1603
      %v1798 = vunpack.c.l.b16 %v1604
      %v1799 = vunpack.c.l.b16 %v1605
      %v1800 = vunpack.c.l.b16 %v1606
      %v1801 = vpack.c.b16 %v1786, %v1785
      %v1802 = vpack.c.b16 %v1788, %v1787
      %v1803 = vpack.c.b16 %v1790, %v1789
      %v1804 = vpack.c.b16 %v1792, %v1791
      %v1805 = vpack.c.b16 %v1794, %v1793
      %v1806 = vpack.c.b16 %v1796, %v1795
      %v1807 = vpack.c.b16 %v1798, %v1797
      %v1808 = vpack.c.b16 %v1800, %v1799
      %1817 = vmatprep.subr.bf16.mxu0 0
      %1818 = vmatpush1.bf16.msra.mxu0 %v1801
      %1819 = vmatprep.subr.bf16.mxu0 0
      %1820 = vmatpush1.bf16.msra.mxu0 %v1802
      %1821 = vmatprep.subr.bf16.mxu0 0
      %1822 = vmatpush1.bf16.msra.mxu0 %v1803
      %1823 = vmatprep.subr.bf16.mxu0 0
      %1824 = vmatpush1.bf16.msra.mxu0 %v1804
      %1825 = vmatprep.subr.bf16.mxu0 0
      %1826 = vmatpush1.bf16.msra.mxu0 %v1805
      %1827 = vmatprep.subr.bf16.mxu0 0
      %1828 = vmatpush1.bf16.msra.mxu0 %v1806
      %1829 = vmatprep.subr.bf16.mxu0 0
      %1830 = vmatpush1.bf16.msra.mxu0 %v1807
      %1831 = vmatprep.subr.bf16.mxu0 0
      %1832 = vmatpush1.bf16.msra.mxu0 %v1808
      %1833 = vmatprep.subr.bf16.mxu0 0
      %1834 = vmatpush1.bf16.msra.mxu0 0
      %1835 = vmatprep.subr.bf16.mxu0 0
      %1836 = vmatpush1.bf16.msra.mxu0 0
      %1837 = vmatprep.subr.bf16.mxu0 0
      %1838 = vmatpush1.bf16.msra.mxu0 0
      %1839 = vmatprep.subr.bf16.mxu0 0
      %1840 = vmatpush1.bf16.msra.mxu0 0
      %1841 = vmatprep.subr.bf16.mxu0 0
      %1842 = vmatpush1.bf16.msra.mxu0 0
      %1843 = vmatprep.subr.bf16.mxu0 0
      %1844 = vmatpush1.bf16.msra.mxu0 0
      %1845 = vmatprep.subr.bf16.mxu0 0
      %1846 = vmatpush1.bf16.msra.mxu0 0
      %1847 = vmatprep.subr.bf16.mxu0 0
      %1848 = vmatpush1.bf16.msra.mxu0 0
      %1849 = vmatprep.mubr.bf16.mxu0 0
      %1850 = vmatmul.mubr.bf16.gmra.mrb[0].mxu0 %v609
      %v1851 = vpop.f32.mrb[0].mxu0
      %v1852 = vadd.f32 %v1707, %v1851
      %v1853 = vpop.f32.mrb[0].mxu0
      %v1854 = vpop.f32.mrb[0].mxu0
      %v1855 = vadd.f32 %v1710, %v1854
      %v1856 = vpop.f32.mrb[0].mxu0
      %1857 = vmatprep.mubr.bf16.mxu0 0
      %1858 = vmatmul.mubr.bf16.gmra.mrb[0].mxu0 %v610
      %v1859 = vpop.f32.mrb[0].mxu0
      %v1860 = vadd.f32 %v1715, %v1859
      %v1861 = vpop.f32.mrb[0].mxu0
      %v1862 = vpop.f32.mrb[0].mxu0
      %v1863 = vadd.f32 %v1718, %v1862
      %v1864 = vpop.f32.mrb[0].mxu0
      %1865 = vmatprep.mubr.bf16.mxu0 0
      %1866 = vmatmul.mubr.bf16.gmra.mrb[0].mxu0 %v611
      %v1867 = vpop.f32.mrb[0].mxu0
      %v1868 = vadd.f32 %v1723, %v1867
      %v1869 = vpop.f32.mrb[0].mxu0
      %v1870 = vpop.f32.mrb[0].mxu0
      %v1871 = vadd.f32 %v1726, %v1870
      %v1872 = vpop.f32.mrb[0].mxu0
      %1873 = vmatprep.mubr.bf16.mxu0 0
      %1874 = vmatmul.mubr.bf16.gmra.mrb[0].mxu0 %v612
      %v1875 = vpop.f32.mrb[0].mxu0
      %v1876 = vadd.f32 %v1731, %v1875
      %v1877 = vpop.f32.mrb[0].mxu0
      %v1878 = vpop.f32.mrb[0].mxu0
      %v1879 = vadd.f32 %v1734, %v1878
      %v1880 = vpop.f32.mrb[0].mxu0
      %1881 = vmatprep.mubr.bf16.mxu0 0
      %1882 = vmatmul.mubr.bf16.gmra.mrb[0].mxu0 %v613
      %v1883 = vpop.f32.mrb[0].mxu0
      %v1884 = vadd.f32 %v1739, %v1883
      %v1885 = vpop.f32.mrb[0].mxu0
      %v1886 = vpop.f32.mrb[0].mxu0
      %v1887 = vadd.f32 %v1742, %v1886
      %v1888 = vpop.f32.mrb[0].mxu0
      %1889 = vmatprep.mubr.bf16.mxu0 0
      %1890 = vmatmul.mubr.bf16.gmra.mrb[0].mxu0 %v614
      %v1891 = vpop.f32.mrb[0].mxu0
      %v1892 = vadd.f32 %v1747, %v1891
      %v1893 = vpop.f32.mrb[0].mxu0
      %v1894 = vpop.f32.mrb[0].mxu0
      %v1895 = vadd.f32 %v1750, %v1894
      %v1896 = vpop.f32.mrb[0].mxu0
      %1897 = vmatprep.mubr.bf16.mxu0 0
      %1898 = vmatmul.mubr.bf16.gmra.mrb[0].mxu0 %v615
      %v1899 = vpop.f32.mrb[0].mxu0
      %v1900 = vadd.f32 %v1755, %v1899
      %v1901 = vpop.f32.mrb[0].mxu0
      %v1902 = vpop.f32.mrb[0].mxu0
      %v1903 = vadd.f32 %v1758, %v1902
      %v1904 = vpop.f32.mrb[0].mxu0
      %1905 = vmatprep.mubr.bf16.mxu0 0
      %1906 = vmatmul.mubr.bf16.gmra.mrb[0].mxu0 %v616
      %v1907 = vpop.f32.mrb[0].mxu0
      %v1908 = vadd.f32 %v1763, %v1907
      %v1909 = vpop.f32.mrb[0].mxu0
      %v1910 = vpop.f32.mrb[0].mxu0
      %v1911 = vadd.f32 %v1766, %v1910
      %v1912 = vpop.f32.mrb[0].mxu0
      %1913 = vdwg.mxu0
      %s1914 = scalar_lea.vmem %s1, 512
      %v1915 = vld [vmem:[%s1914] sm:$0xf]
      %v1916 = vld [vmem:[%s1914 + $0x4] sm:$0xf]
      %v1917 = vld [vmem:[%s1914 + $0x8] sm:$0xf]
      %v1918 = vld [vmem:[%s1914 + $0xc] sm:$0xf]
      %v1919 = vld [vmem:[%s1914 + $0x10] sm:$0xf]
      %v1920 = vld [vmem:[%s1914 + $0x14] sm:$0xf]
      %v1921 = vld [vmem:[%s1914 + $0x18] sm:$0xf]
      %v1922 = vld [vmem:[%s1914 + $0x1c] sm:$0xf]
      %v1923 = vld [vmem:[%s1914 + $0x20] sm:$0xf]
      %v1924 = vld [vmem:[%s1914 + $0x24] sm:$0xf]
      %v1925 = vld [vmem:[%s1914 + $0x28] sm:$0xf]
      %v1926 = vld [vmem:[%s1914 + $0x2c] sm:$0xf]
      %v1927 = vld [vmem:[%s1914 + $0x30] sm:$0xf]
      %v1928 = vld [vmem:[%s1914 + $0x34] sm:$0xf]
      %v1929 = vld [vmem:[%s1914 + $0x38] sm:$0xf]
      %v1930 = vld [vmem:[%s1914 + $0x3c] sm:$0xf]
      %v1947 = vunpack.c.l.b16 %v1915
      %v1948 = vunpack.c.l.b16 %v1916
      %v1949 = vunpack.c.l.b16 %v1917
      %v1950 = vunpack.c.l.b16 %v1918
      %v1951 = vunpack.c.l.b16 %v1919
      %v1952 = vunpack.c.l.b16 %v1920
      %v1953 = vunpack.c.l.b16 %v1921
      %v1954 = vunpack.c.l.b16 %v1922
      %v1955 = vunpack.c.l.b16 %v1923
      %v1956 = vunpack.c.l.b16 %v1924
      %v1957 = vunpack.c.l.b16 %v1925
      %v1958 = vunpack.c.l.b16 %v1926
      %v1959 = vunpack.c.l.b16 %v1927
      %v1960 = vunpack.c.l.b16 %v1928
      %v1961 = vunpack.c.l.b16 %v1929
      %v1962 = vunpack.c.l.b16 %v1930
      %v1963 = vpack.c.b16 %v1948, %v1947
      %v1964 = vpack.c.b16 %v1950, %v1949
      %v1965 = vpack.c.b16 %v1952, %v1951
      %v1966 = vpack.c.b16 %v1954, %v1953
      %v1967 = vpack.c.b16 %v1956, %v1955
      %v1968 = vpack.c.b16 %v1958, %v1957
      %v1969 = vpack.c.b16 %v1960, %v1959
      %v1970 = vpack.c.b16 %v1962, %v1961
      %1979 = vmatprep.subr.bf16.mxu0 0
      %1980 = vmatpush1.bf16.msra.mxu0 %v1963
      %1981 = vmatprep.subr.bf16.mxu0 0
      %1982 = vmatpush1.bf16.msra.mxu0 %v1964
      %1983 = vmatprep.subr.bf16.mxu0 0
      %1984 = vmatpush1.bf16.msra.mxu0 %v1965
      %1985 = vmatprep.subr.bf16.mxu0 0
      %1986 = vmatpush1.bf16.msra.mxu0 %v1966
      %1987 = vmatprep.subr.bf16.mxu0 0
      %1988 = vmatpush1.bf16.msra.mxu0 %v1967
      %1989 = vmatprep.subr.bf16.mxu0 0
      %1990 = vmatpush1.bf16.msra.mxu0 %v1968
      %1991 = vmatprep.subr.bf16.mxu0 0
      %1992 = vmatpush1.bf16.msra.mxu0 %v1969
      %1993 = vmatprep.subr.bf16.mxu0 0
      %1994 = vmatpush1.bf16.msra.mxu0 %v1970
      %1995 = vmatprep.subr.bf16.mxu0 0
      %1996 = vmatpush1.bf16.msra.mxu0 0
      %1997 = vmatprep.subr.bf16.mxu0 0
      %1998 = vmatpush1.bf16.msra.mxu0 0
      %1999 = vmatprep.subr.bf16.mxu0 0
      %2000 = vmatpush1.bf16.msra.mxu0 0
      %2001 = vmatprep.subr.bf16.mxu0 0
      %2002 = vmatpush1.bf16.msra.mxu0 0
      %2003 = vmatprep.subr.bf16.mxu0 0
      %2004 = vmatpush1.bf16.msra.mxu0 0
      %2005 = vmatprep.subr.bf16.mxu0 0
      %2006 = vmatpush1.bf16.msra.mxu0 0
      %2007 = vmatprep.subr.bf16.mxu0 0
      %2008 = vmatpush1.bf16.msra.mxu0 0
      %2009 = vmatprep.subr.bf16.mxu0 0
      %2010 = vmatpush1.bf16.msra.mxu0 0
      %2011 = vmatprep.mubr.bf16.mxu0 0
      %2012 = vmatmul.mubr.bf16.gmra.mrb[0].mxu0 %v610
      %v2013 = vpop.f32.mrb[0].mxu0
      %v2014 = vadd.f32 0.0, %v2013
      %v2015 = vpop.f32.mrb[0].mxu0
      %v2016 = vpop.f32.mrb[0].mxu0
      %v2017 = vadd.f32 0.0, %v2016
      %v2018 = vpop.f32.mrb[0].mxu0
      %2019 = vmatprep.mubr.bf16.mxu0 0
      %2020 = vmatmul.mubr.bf16.gmra.mrb[0].mxu0 %v611
      %v2021 = vpop.f32.mrb[0].mxu0
      %v2022 = vadd.f32 0.0, %v2021
      %v2023 = vpop.f32.mrb[0].mxu0
      %v2024 = vpop.f32.mrb[0].mxu0
      %v2025 = vadd.f32 0.0, %v2024
      %v2026 = vpop.f32.mrb[0].mxu0
      %2027 = vmatprep.mubr.bf16.mxu0 0
      %2028 = vmatmul.mubr.bf16.gmra.mrb[0].mxu0 %v612
      %v2029 = vpop.f32.mrb[0].mxu0
      %v2030 = vadd.f32 0.0, %v2029
      %v2031 = vpop.f32.mrb[0].mxu0
      %v2032 = vpop.f32.mrb[0].mxu0
      %v2033 = vadd.f32 0.0, %v2032
      %v2034 = vpop.f32.mrb[0].mxu0
      %2035 = vmatprep.mubr.bf16.mxu0 0
      %2036 = vmatmul.mubr.bf16.gmra.mrb[0].mxu0 %v613
      %v2037 = vpop.f32.mrb[0].mxu0
      %v2038 = vadd.f32 0.0, %v2037
      %v2039 = vpop.f32.mrb[0].mxu0
      %v2040 = vpop.f32.mrb[0].mxu0
      %v2041 = vadd.f32 0.0, %v2040
      %v2042 = vpop.f32.mrb[0].mxu0
      %2043 = vmatprep.mubr.bf16.mxu0 0
      %2044 = vmatmul.mubr.bf16.gmra.mrb[0].mxu0 %v614
      %v2045 = vpop.f32.mrb[0].mxu0
      %v2046 = vadd.f32 0.0, %v2045
      %v2047 = vpop.f32.mrb[0].mxu0
      %v2048 = vpop.f32.mrb[0].mxu0
      %v2049 = vadd.f32 0.0, %v2048
      %v2050 = vpop.f32.mrb[0].mxu0
      %2051 = vmatprep.mubr.bf16.mxu0 0
      %2052 = vmatmul.mubr.bf16.gmra.mrb[0].mxu0 %v615
      %v2053 = vpop.f32.mrb[0].mxu0
      %v2054 = vadd.f32 0.0, %v2053
      %v2055 = vpop.f32.mrb[0].mxu0
      %v2056 = vpop.f32.mrb[0].mxu0
      %v2057 = vadd.f32 0.0, %v2056
      %v2058 = vpop.f32.mrb[0].mxu0
      %2059 = vmatprep.mubr.bf16.mxu0 0
      %2060 = vmatmul.mubr.bf16.gmra.mrb[0].mxu0 %v616
      %v2061 = vpop.f32.mrb[0].mxu0
      %v2062 = vadd.f32 0.0, %v2061
      %v2063 = vpop.f32.mrb[0].mxu0
      %v2064 = vpop.f32.mrb[0].mxu0
      %v2065 = vadd.f32 0.0, %v2064
      %v2066 = vpop.f32.mrb[0].mxu0
      %2067 = vmatprep.mubr.bf16.mxu0 0
      %2068 = vmatmul.mubr.bf16.gmra.mrb[0].mxu0 %v1243
      %v2069 = vpop.f32.mrb[0].mxu0
      %v2070 = vadd.f32 0.0, %v2069
      %v2071 = vpop.f32.mrb[0].mxu0
      %v2072 = vpop.f32.mrb[0].mxu0
      %v2073 = vadd.f32 0.0, %v2072
      %v2074 = vpop.f32.mrb[0].mxu0
      %2075 = vdwg.mxu0
      %v2076 = vadd.f32 %v1852, %v2014
      %v2077 = vadd.f32 %v1855, %v2017
      %v2078 = vadd.f32 %v1860, %v2022
      %v2079 = vadd.f32 %v1863, %v2025
      %v2080 = vadd.f32 %v1868, %v2030
      %v2081 = vadd.f32 %v1871, %v2033
      %v2082 = vadd.f32 %v1876, %v2038
      %v2083 = vadd.f32 %v1879, %v2041
      %v2084 = vadd.f32 %v1884, %v2046
      %v2085 = vadd.f32 %v1887, %v2049
      %v2086 = vadd.f32 %v1892, %v2054
      %v2087 = vadd.f32 %v1895, %v2057
      %v2088 = vadd.f32 %v1900, %v2062
      %v2089 = vadd.f32 %v1903, %v2065
      %v2090 = vadd.f32 %v1908, %v2070
      %v2091 = vadd.f32 %v1911, %v2073
      %v2092 = vrot.slane %v2076, 1
      %v2093 = vrot.slane %v2077, 1
      %v2094 = vrot.slane %v2078, 1
      %v2095 = vrot.slane %v2079, 1
      %v2096 = vrot.slane %v2080, 1
      %v2097 = vrot.slane %v2081, 1
      %v2098 = vrot.slane %v2082, 1
      %v2099 = vrot.slane %v2083, 1
      %v2100 = vrot.slane %v2084, 1
      %v2101 = vrot.slane %v2085, 1
      %v2102 = vrot.slane %v2086, 1
      %v2103 = vrot.slane %v2087, 1
      %v2104 = vrot.slane %v2088, 1
      %v2105 = vrot.slane %v2089, 1
      %v2106 = vrot.slane %v2090, 1
      %v2107 = vrot.slane %v2091, 1
      %v2108 = vlaneseq
      %v2109 = vshrl.u32 %v2108, 7
      %vm2110 = vcmp.lt.s32.totalorder %v2109, 7
      %v2111 = vsel %vm2110, %v2106, %v2107
      %v2112 = vsel %vm2110, %v2105, %v2106
      %v2113 = vsel %vm2110, %v2104, %v2105
      %v2114 = vsel %vm2110, %v2103, %v2104
      %v2115 = vsel %vm2110, %v2102, %v2103
      %v2116 = vsel %vm2110, %v2101, %v2102
      %v2117 = vsel %vm2110, %v2100, %v2101
      %v2118 = vsel %vm2110, %v2099, %v2100
      %v2119 = vsel %vm2110, %v2098, %v2099
      %v2120 = vsel %vm2110, %v2097, %v2098
      %v2121 = vsel %vm2110, %v2096, %v2097
      %v2122 = vsel %vm2110, %v2095, %v2096
      %v2123 = vsel %vm2110, %v2094, %v2095
      %v2124 = vsel %vm2110, %v2093, %v2094
      %v2125 = vsel %vm2110, %v2092, %v2093
      %v2126 = vsel %vm2110, %v2107, %v2092
      %v2127 = vadd.f32 %v1574, %v2125
      %v2128 = vadd.f32 %v1575, %v2124
      %v2129 = vadd.f32 %v1576, %v2123
      %v2130 = vadd.f32 %v1577, %v2122
      %v2131 = vadd.f32 %v1578, %v2121
      %v2132 = vadd.f32 %v1579, %v2120
      %v2133 = vadd.f32 %v1580, %v2119
      %v2134 = vadd.f32 %v1581, %v2118
      %v2135 = vadd.f32 %v1582, %v2117
      %v2136 = vadd.f32 %v1583, %v2116
      %v2137 = vadd.f32 %v1584, %v2115
      %v2138 = vadd.f32 %v1585, %v2114
      %v2139 = vadd.f32 %v1586, %v2113
      %v2140 = vadd.f32 %v1587, %v2112
      %v2141 = vadd.f32 %v1588, %v2111
      %v2142 = vadd.f32 %v1589, %v2126
      %v2143 = vld [vmem:[%s2] sm:$0x1]
      %v2145 = vlaneseq
      %v2146 = vshrl.u32 %v2145, 7
      %v2147 = vsub.s32 0, %v2146
      %v2148 = vrot.slane %v2143, %v2147
      %v2150 = vadd.f32 %v2127, %v2148
      %v2151 = vadd.f32 %v2128, %v2148
      %v2152 = vadd.f32 %v2129, %v2148
      %v2153 = vadd.f32 %v2130, %v2148
      %v2154 = vadd.f32 %v2131, %v2148
      %v2155 = vadd.f32 %v2132, %v2148
      %v2156 = vadd.f32 %v2133, %v2148
      %v2157 = vadd.f32 %v2134, %v2148
      %v2158 = vadd.f32 %v2135, %v2148
      %v2159 = vadd.f32 %v2136, %v2148
      %v2160 = vadd.f32 %v2137, %v2148
      %v2161 = vadd.f32 %v2138, %v2148
      %v2162 = vadd.f32 %v2139, %v2148
      %v2163 = vadd.f32 %v2140, %v2148
      %v2164 = vadd.f32 %v2141, %v2148
      %v2165 = vadd.f32 %v2142, %v2148
      %v2166 = vmax.f32 %v2150, 0.0
      %v2167 = vmax.f32 %v2151, 0.0
      %v2168 = vmax.f32 %v2152, 0.0
      %v2169 = vmax.f32 %v2153, 0.0
      %v2170 = vmax.f32 %v2154, 0.0
      %v2171 = vmax.f32 %v2155, 0.0
      %v2172 = vmax.f32 %v2156, 0.0
      %v2173 = vmax.f32 %v2157, 0.0
      %v2174 = vmax.f32 %v2158, 0.0
      %v2175 = vmax.f32 %v2159, 0.0
      %v2176 = vmax.f32 %v2160, 0.0
      %v2177 = vmax.f32 %v2161, 0.0
      %v2178 = vmax.f32 %v2162, 0.0
      %v2179 = vmax.f32 %v2163, 0.0
      %v2180 = vmax.f32 %v2164, 0.0
      %v2181 = vmax.f32 %v2165, 0.0
      %v2182 = vadd.s32 %v2109, 8
      %vm2183 = vcmp.lt.s32.totalorder %v2109, 8
      %vm2184 = vcmp.lt.s32.totalorder %v2182, 8
      %v2185 = vsel %vm2183, 1, 0
      %v2186 = vsel %vm2184, 1, 0
      %vm2187 = vcmp.eq.s32.totalorder %v2185, 1
      %vm2188 = vcmp.eq.s32.totalorder %v2186, 1
      %v2189 = vsel %vm2187, %v2166, 0.0
      %v2190 = vsel %vm2188, %v2167, 0.0
      %v2191 = vsel %vm2187, %v2168, 0.0
      %v2192 = vsel %vm2188, %v2169, 0.0
      %v2193 = vsel %vm2187, %v2170, 0.0
      %v2194 = vsel %vm2188, %v2171, 0.0
      %v2195 = vsel %vm2187, %v2172, 0.0
      %v2196 = vsel %vm2188, %v2173, 0.0
      %v2197 = vsel %vm2187, %v2174, 0.0
      %v2198 = vsel %vm2188, %v2175, 0.0
      %v2199 = vsel %vm2187, %v2176, 0.0
      %v2200 = vsel %vm2188, %v2177, 0.0
      %v2201 = vsel %vm2187, %v2178, 0.0
      %v2202 = vsel %vm2188, %v2179, 0.0
      %v2203 = vsel %vm2187, %v2180, 0.0
      %v2204 = vsel %vm2188, %v2181, 0.0
      %2205 = vst [vmem:[#allocation2] sm:$0xff] 0
      %s2206 = scalar_lea.vmem [#allocation2], 72
      %2207 = vst [vmem:[%s2206] sm:$0xff] 0
      %v2208 = vpack.c.bf16 %v2190, %v2189
      %v2209 = vpack.c.bf16 %v2192, %v2191
      %v2210 = vpack.c.bf16 %v2194, %v2193
      %v2211 = vpack.c.bf16 %v2196, %v2195
      %v2212 = vpack.c.bf16 %v2198, %v2197
      %v2213 = vpack.c.bf16 %v2200, %v2199
      %v2214 = vpack.c.bf16 %v2202, %v2201
      %v2215 = vpack.c.bf16 %v2204, %v2203
      %s2216 = scalar_lea.vmem [#allocation2], 8
      %2217 = vst [vmem:[%s2216] sm:$0xff] %v2208
      %2218 = vst [vmem:[%s2216 + $0x8] sm:$0xff] %v2209
      %2219 = vst [vmem:[%s2216 + $0x10] sm:$0xff] %v2210
      %2220 = vst [vmem:[%s2216 + $0x18] sm:$0xff] %v2211
      %2221 = vst [vmem:[%s2216 + $0x20] sm:$0xff] %v2212
      %2222 = vst [vmem:[%s2216 + $0x28] sm:$0xff] %v2213
      %2223 = vst [vmem:[%s2216 + $0x30] sm:$0xff] %v2214
      %2224 = vst [vmem:[%s2216 + $0x38] sm:$0xff] %v2215
      %v2225 = vld [vmem:[#allocation2] sm:$0xff]
      %v2226 = vld [vmem:[#allocation2 + $0x8] sm:$0xff]
      %v2227 = vld [vmem:[#allocation2 + $0x10] sm:$0xff]
      %v2228 = vld [vmem:[#allocation2 + $0x18] sm:$0xff]
      %v2229 = vld [vmem:[#allocation2 + $0x20] sm:$0xff]
      %v2230 = vld [vmem:[#allocation2 + $0x28] sm:$0xff]
      %v2231 = vld [vmem:[#allocation2 + $0x30] sm:$0xff]
      %v2232 = vld [vmem:[#allocation2 + $0x38] sm:$0xff]
      %v2233 = vld [vmem:[#allocation2 + $0x40] sm:$0xff]
      %v2234 = vld [vmem:[#allocation2 + $0x48] sm:$0xff]
      %v2235 = vld [vmem:[%s3] sm:$0xf]
      %v2236 = vld [vmem:[%s3 + $0x4] sm:$0xf]
      %v2237 = vld [vmem:[%s3 + $0x8] sm:$0xf]
      %v2238 = vld [vmem:[%s3 + $0xc] sm:$0xf]
      %v2239 = vld [vmem:[%s3 + $0x10] sm:$0xf]
      %v2240 = vld [vmem:[%s3 + $0x14] sm:$0xf]
      %v2241 = vld [vmem:[%s3 + $0x18] sm:$0xf]
      %v2242 = vld [vmem:[%s3 + $0x1c] sm:$0xf]
      %v2243 = vld [vmem:[%s3 + $0x20] sm:$0xf]
      %v2244 = vld [vmem:[%s3 + $0x24] sm:$0xf]
      %v2245 = vld [vmem:[%s3 + $0x28] sm:$0xf]
      %v2246 = vld [vmem:[%s3 + $0x2c] sm:$0xf]
      %v2247 = vld [vmem:[%s3 + $0x30] sm:$0xf]
      %v2248 = vld [vmem:[%s3 + $0x34] sm:$0xf]
      %v2249 = vld [vmem:[%s3 + $0x38] sm:$0xf]
      %v2250 = vld [vmem:[%s3 + $0x3c] sm:$0xf]
      %s2251 = scalar_lea.vmem %s3, 192
      %v2252 = vld [vmem:[%s2251] sm:$0xf]
      %v2253 = vld [vmem:[%s2251 + $0x4] sm:$0xf]
      %v2254 = vld [vmem:[%s2251 + $0x8] sm:$0xf]
      %v2255 = vld [vmem:[%s2251 + $0xc] sm:$0xf]
      %v2256 = vld [vmem:[%s2251 + $0x10] sm:$0xf]
      %v2257 = vld [vmem:[%s2251 + $0x14] sm:$0xf]
      %v2258 = vld [vmem:[%s2251 + $0x18] sm:$0xf]
      %v2259 = vld [vmem:[%s2251 + $0x1c] sm:$0xf]
      %v2260 = vld [vmem:[%s2251 + $0x20] sm:$0xf]
      %v2261 = vld [vmem:[%s2251 + $0x24] sm:$0xf]
      %v2262 = vld [vmem:[%s2251 + $0x28] sm:$0xf]
      %v2263 = vld [vmem:[%s2251 + $0x2c] sm:$0xf]
      %v2264 = vld [vmem:[%s2251 + $0x30] sm:$0xf]
      %v2265 = vld [vmem:[%s2251 + $0x34] sm:$0xf]
      %v2266 = vld [vmem:[%s2251 + $0x38] sm:$0xf]
      %v2267 = vld [vmem:[%s2251 + $0x3c] sm:$0xf]
      %v2284 = vunpack.c.l.b16 %v2252
      %v2285 = vunpack.c.l.b16 %v2253
      %v2286 = vunpack.c.l.b16 %v2254
      %v2287 = vunpack.c.l.b16 %v2255
      %v2288 = vunpack.c.l.b16 %v2256
      %v2289 = vunpack.c.l.b16 %v2257
      %v2290 = vunpack.c.l.b16 %v2258
      %v2291 = vunpack.c.l.b16 %v2259
      %v2292 = vunpack.c.l.b16 %v2260
      %v2293 = vunpack.c.l.b16 %v2261
      %v2294 = vunpack.c.l.b16 %v2262
      %v2295 = vunpack.c.l.b16 %v2263
      %v2296 = vunpack.c.l.b16 %v2264
      %v2297 = vunpack.c.l.b16 %v2265
      %v2298 = vunpack.c.l.b16 %v2266
      %v2299 = vunpack.c.l.b16 %v2267
      %v2300 = vpack.c.b16 %v2285, %v2284
      %v2301 = vpack.c.b16 %v2287, %v2286
      %v2302 = vpack.c.b16 %v2289, %v2288
      %v2303 = vpack.c.b16 %v2291, %v2290
      %v2304 = vpack.c.b16 %v2293, %v2292
      %v2305 = vpack.c.b16 %v2295, %v2294
      %v2306 = vpack.c.b16 %v2297, %v2296
      %v2307 = vpack.c.b16 %v2299, %v2298
      %2316 = vmatprep.subr.bf16.mxu0 0
      %2317 = vmatpush1.bf16.msra.mxu0 %v2300
      %2318 = vmatprep.subr.bf16.mxu0 0
      %2319 = vmatpush1.bf16.msra.mxu0 %v2301
      %2320 = vmatprep.subr.bf16.mxu0 0
      %2321 = vmatpush1.bf16.msra.mxu0 %v2302
      %2322 = vmatprep.subr.bf16.mxu0 0
      %2323 = vmatpush1.bf16.msra.mxu0 %v2303
      %2324 = vmatprep.subr.bf16.mxu0 0
      %2325 = vmatpush1.bf16.msra.mxu0 %v2304
      %2326 = vmatprep.subr.bf16.mxu0 0
      %2327 = vmatpush1.bf16.msra.mxu0 %v2305
      %2328 = vmatprep.subr.bf16.mxu0 0
      %2329 = vmatpush1.bf16.msra.mxu0 %v2306
      %2330 = vmatprep.subr.bf16.mxu0 0
      %2331 = vmatpush1.bf16.msra.mxu0 %v2307
      %2332 = vmatprep.subr.bf16.mxu0 0
      %2333 = vmatpush1.bf16.msra.mxu0 0
      %2334 = vmatprep.subr.bf16.mxu0 0
      %2335 = vmatpush1.bf16.msra.mxu0 0
      %2336 = vmatprep.subr.bf16.mxu0 0
      %2337 = vmatpush1.bf16.msra.mxu0 0
      %2338 = vmatprep.subr.bf16.mxu0 0
      %2339 = vmatpush1.bf16.msra.mxu0 0
      %2340 = vmatprep.subr.bf16.mxu0 0
      %2341 = vmatpush1.bf16.msra.mxu0 0
      %2342 = vmatprep.subr.bf16.mxu0 0
      %2343 = vmatpush1.bf16.msra.mxu0 0
      %2344 = vmatprep.subr.bf16.mxu0 0
      %2345 = vmatpush1.bf16.msra.mxu0 0
      %2346 = vmatprep.subr.bf16.mxu0 0
      %2347 = vmatpush1.bf16.msra.mxu0 0
      %2348 = vmatprep.mubr.bf16.mxu0 0
      %2349 = vmatmul.mubr.bf16.gmra.mrb[0].mxu0 %v2226
      %v2350 = vpop.f32.mrb[0].mxu0
      %v2351 = vadd.f32 0.0, %v2350
      %v2352 = vpop.f32.mrb[0].mxu0
      %v2353 = vpop.f32.mrb[0].mxu0
      %v2354 = vadd.f32 0.0, %v2353
      %v2355 = vpop.f32.mrb[0].mxu0
      %2356 = vmatprep.mubr.bf16.mxu0 0
      %2357 = vmatmul.mubr.bf16.gmra.mrb[0].mxu0 %v2227
      %v2358 = vpop.f32.mrb[0].mxu0
      %v2359 = vadd.f32 0.0, %v2358
      %v2360 = vpop.f32.mrb[0].mxu0
      %v2361 = vpop.f32.mrb[0].mxu0
      %v2362 = vadd.f32 0.0, %v2361
      %v2363 = vpop.f32.mrb[0].mxu0
      %2364 = vmatprep.mubr.bf16.mxu0 0
      %2365 = vmatmul.mubr.bf16.gmra.mrb[0].mxu0 %v2228
      %v2366 = vpop.f32.mrb[0].mxu0
      %v2367 = vadd.f32 0.0, %v2366
      %v2368 = vpop.f32.mrb[0].mxu0
      %v2369 = vpop.f32.mrb[0].mxu0
      %v2370 = vadd.f32 0.0, %v2369
      %v2371 = vpop.f32.mrb[0].mxu0
      %2372 = vmatprep.mubr.bf16.mxu0 0
      %2373 = vmatmul.mubr.bf16.gmra.mrb[0].mxu0 %v2229
      %v2374 = vpop.f32.mrb[0].mxu0
      %v2375 = vadd.f32 0.0, %v2374
      %v2376 = vpop.f32.mrb[0].mxu0
      %v2377 = vpop.f32.mrb[0].mxu0
      %v2378 = vadd.f32 0.0, %v2377
      %v2379 = vpop.f32.mrb[0].mxu0
      %2380 = vmatprep.mubr.bf16.mxu0 0
      %2381 = vmatmul.mubr.bf16.gmra.mrb[0].mxu0 %v2230
      %v2382 = vpop.f32.mrb[0].mxu0
      %v2383 = vadd.f32 0.0, %v2382
      %v2384 = vpop.f32.mrb[0].mxu0
      %v2385 = vpop.f32.mrb[0].mxu0
      %v2386 = vadd.f32 0.0, %v2385
      %v2387 = vpop.f32.mrb[0].mxu0
      %2388 = vmatprep.mubr.bf16.mxu0 0
      %2389 = vmatmul.mubr.bf16.gmra.mrb[0].mxu0 %v2231
      %v2390 = vpop.f32.mrb[0].mxu0
      %v2391 = vadd.f32 0.0, %v2390
      %v2392 = vpop.f32.mrb[0].mxu0
      %v2393 = vpop.f32.mrb[0].mxu0
      %v2394 = vadd.f32 0.0, %v2393
      %v2395 = vpop.f32.mrb[0].mxu0
      %2396 = vmatprep.mubr.bf16.mxu0 0
      %2397 = vmatmul.mubr.bf16.gmra.mrb[0].mxu0 %v2232
      %v2398 = vpop.f32.mrb[0].mxu0
      %v2399 = vadd.f32 0.0, %v2398
      %v2400 = vpop.f32.mrb[0].mxu0
      %v2401 = vpop.f32.mrb[0].mxu0
      %v2402 = vadd.f32 0.0, %v2401
      %v2403 = vpop.f32.mrb[0].mxu0
      %2404 = vmatprep.mubr.bf16.mxu0 0
      %2405 = vmatmul.mubr.bf16.gmra.mrb[0].mxu0 %v2233
      %v2406 = vpop.f32.mrb[0].mxu0
      %v2407 = vadd.f32 0.0, %v2406
      %v2408 = vpop.f32.mrb[0].mxu0
      %v2409 = vpop.f32.mrb[0].mxu0
      %v2410 = vadd.f32 0.0, %v2409
      %v2411 = vpop.f32.mrb[0].mxu0
      %2412 = vdwg.mxu0
      %v2429 = vunpack.c.l.b16 %v2235
      %v2430 = vunpack.c.l.b16 %v2236
      %v2431 = vunpack.c.l.b16 %v2237
      %v2432 = vunpack.c.l.b16 %v2238
      %v2433 = vunpack.c.l.b16 %v2239
      %v2434 = vunpack.c.l.b16 %v2240
      %v2435 = vunpack.c.l.b16 %v2241
      %v2436 = vunpack.c.l.b16 %v2242
      %v2437 = vunpack.c.l.b16 %v2243
      %v2438 = vunpack.c.l.b16 %v2244
      %v2439 = vunpack.c.l.b16 %v2245
      %v2440 = vunpack.c.l.b16 %v2246
      %v2441 = vunpack.c.l.b16 %v2247
      %v2442 = vunpack.c.l.b16 %v2248
      %v2443 = vunpack.c.l.b16 %v2249
      %v2444 = vunpack.c.l.b16 %v2250
      %v2445 = vpack.c.b16 %v2430, %v2429
      %v2446 = vpack.c.b16 %v2432, %v2431
      %v2447 = vpack.c.b16 %v2434, %v2433
      %v2448 = vpack.c.b16 %v2436, %v2435
      %v2449 = vpack.c.b16 %v2438, %v2437
      %v2450 = vpack.c.b16 %v2440, %v2439
      %v2451 = vpack.c.b16 %v2442, %v2441
      %v2452 = vpack.c.b16 %v2444, %v2443
      %2461 = vmatprep.subr.bf16.mxu0 0
      %2462 = vmatpush1.bf16.msra.mxu0 %v2445
      %2463 = vmatprep.subr.bf16.mxu0 0
      %2464 = vmatpush1.bf16.msra.mxu0 %v2446
      %2465 = vmatprep.subr.bf16.mxu0 0
      %2466 = vmatpush1.bf16.msra.mxu0 %v2447
      %2467 = vmatprep.subr.bf16.mxu0 0
      %2468 = vmatpush1.bf16.msra.mxu0 %v2448
      %2469 = vmatprep.subr.bf16.mxu0 0
      %2470 = vmatpush1.bf16.msra.mxu0 %v2449
      %2471 = vmatprep.subr.bf16.mxu0 0
      %2472 = vmatpush1.bf16.msra.mxu0 %v2450
      %2473 = vmatprep.subr.bf16.mxu0 0
      %2474 = vmatpush1.bf16.msra.mxu0 %v2451
      %2475 = vmatprep.subr.bf16.mxu0 0
      %2476 = vmatpush1.bf16.msra.mxu0 %v2452
      %2477 = vmatprep.subr.bf16.mxu0 0
      %2478 = vmatpush1.bf16.msra.mxu0 0
      %2479 = vmatprep.subr.bf16.mxu0 0
      %2480 = vmatpush1.bf16.msra.mxu0 0
      %2481 = vmatprep.subr.bf16.mxu0 0
      %2482 = vmatpush1.bf16.msra.mxu0 0
      %2483 = vmatprep.subr.bf16.mxu0 0
      %2484 = vmatpush1.bf16.msra.mxu0 0
      %2485 = vmatprep.subr.bf16.mxu0 0
      %2486 = vmatpush1.bf16.msra.mxu0 0
      %2487 = vmatprep.subr.bf16.mxu0 0
      %2488 = vmatpush1.bf16.msra.mxu0 0
      %2489 = vmatprep.subr.bf16.mxu0 0
      %2490 = vmatpush1.bf16.msra.mxu0 0
      %2491 = vmatprep.subr.bf16.mxu0 0
      %2492 = vmatpush1.bf16.msra.mxu0 0
      %2493 = vmatprep.mubr.bf16.mxu0 0
      %2494 = vmatmul.mubr.bf16.gmra.mrb[0].mxu0 %v2225
      %v2495 = vpop.f32.mrb[0].mxu0
      %v2496 = vadd.f32 %v2351, %v2495
      %v2497 = vpop.f32.mrb[0].mxu0
      %v2498 = vpop.f32.mrb[0].mxu0
      %v2499 = vadd.f32 %v2354, %v2498
      %v2500 = vpop.f32.mrb[0].mxu0
      %2501 = vmatprep.mubr.bf16.mxu0 0
      %2502 = vmatmul.mubr.bf16.gmra.mrb[0].mxu0 %v2226
      %v2503 = vpop.f32.mrb[0].mxu0
      %v2504 = vadd.f32 %v2359, %v2503
      %v2505 = vpop.f32.mrb[0].mxu0
      %v2506 = vpop.f32.mrb[0].mxu0
      %v2507 = vadd.f32 %v2362, %v2506
      %v2508 = vpop.f32.mrb[0].mxu0
      %2509 = vmatprep.mubr.bf16.mxu0 0
      %2510 = vmatmul.mubr.bf16.gmra.mrb[0].mxu0 %v2227
      %v2511 = vpop.f32.mrb[0].mxu0
      %v2512 = vadd.f32 %v2367, %v2511
      %v2513 = vpop.f32.mrb[0].mxu0
      %v2514 = vpop.f32.mrb[0].mxu0
      %v2515 = vadd.f32 %v2370, %v2514
      %v2516 = vpop.f32.mrb[0].mxu0
      %2517 = vmatprep.mubr.bf16.mxu0 0
      %2518 = vmatmul.mubr.bf16.gmra.mrb[0].mxu0 %v2228
      %v2519 = vpop.f32.mrb[0].mxu0
      %v2520 = vadd.f32 %v2375, %v2519
      %v2521 = vpop.f32.mrb[0].mxu0
      %v2522 = vpop.f32.mrb[0].mxu0
      %v2523 = vadd.f32 %v2378, %v2522
      %v2524 = vpop.f32.mrb[0].mxu0
      %2525 = vmatprep.mubr.bf16.mxu0 0
      %2526 = vmatmul.mubr.bf16.gmra.mrb[0].mxu0 %v2229
      %v2527 = vpop.f32.mrb[0].mxu0
      %v2528 = vadd.f32 %v2383, %v2527
      %v2529 = vpop.f32.mrb[0].mxu0
      %v2530 = vpop.f32.mrb[0].mxu0
      %v2531 = vadd.f32 %v2386, %v2530
      %v2532 = vpop.f32.mrb[0].mxu0
      %2533 = vmatprep.mubr.bf16.mxu0 0
      %2534 = vmatmul.mubr.bf16.gmra.mrb[0].mxu0 %v2230
      %v2535 = vpop.f32.mrb[0].mxu0
      %v2536 = vadd.f32 %v2391, %v2535
      %v2537 = vpop.f32.mrb[0].mxu0
      %v2538 = vpop.f32.mrb[0].mxu0
      %v2539 = vadd.f32 %v2394, %v2538
      %v2540 = vpop.f32.mrb[0].mxu0
      %2541 = vmatprep.mubr.bf16.mxu0 0
      %2542 = vmatmul.mubr.bf16.gmra.mrb[0].mxu0 %v2231
      %v2543 = vpop.f32.mrb[0].mxu0
      %v2544 = vadd.f32 %v2399, %v2543
      %v2545 = vpop.f32.mrb[0].mxu0
      %v2546 = vpop.f32.mrb[0].mxu0
      %v2547 = vadd.f32 %v2402, %v2546
      %v2548 = vpop.f32.mrb[0].mxu0
      %2549 = vmatprep.mubr.bf16.mxu0 0
      %2550 = vmatmul.mubr.bf16.gmra.mrb[0].mxu0 %v2232
      %v2551 = vpop.f32.mrb[0].mxu0
      %v2552 = vadd.f32 %v2407, %v2551
      %v2553 = vpop.f32.mrb[0].mxu0
      %v2554 = vpop.f32.mrb[0].mxu0
      %v2555 = vadd.f32 %v2410, %v2554
      %v2556 = vpop.f32.mrb[0].mxu0
      %2557 = vdwg.mxu0
      %s2558 = scalar_lea.vmem %s3, 384
      %v2559 = vld [vmem:[%s2558] sm:$0xf]
      %v2560 = vld [vmem:[%s2558 + $0x4] sm:$0xf]
      %v2561 = vld [vmem:[%s2558 + $0x8] sm:$0xf]
      %v2562 = vld [vmem:[%s2558 + $0xc] sm:$0xf]
      %v2563 = vld [vmem:[%s2558 + $0x10] sm:$0xf]
      %v2564 = vld [vmem:[%s2558 + $0x14] sm:$0xf]
      %v2565 = vld [vmem:[%s2558 + $0x18] sm:$0xf]
      %v2566 = vld [vmem:[%s2558 + $0x1c] sm:$0xf]
      %v2567 = vld [vmem:[%s2558 + $0x20] sm:$0xf]
      %v2568 = vld [vmem:[%s2558 + $0x24] sm:$0xf]
      %v2569 = vld [vmem:[%s2558 + $0x28] sm:$0xf]
      %v2570 = vld [vmem:[%s2558 + $0x2c] sm:$0xf]
      %v2571 = vld [vmem:[%s2558 + $0x30] sm:$0xf]
      %v2572 = vld [vmem:[%s2558 + $0x34] sm:$0xf]
      %v2573 = vld [vmem:[%s2558 + $0x38] sm:$0xf]
      %v2574 = vld [vmem:[%s2558 + $0x3c] sm:$0xf]
      %v2591 = vunpack.c.l.b16 %v2559
      %v2592 = vunpack.c.l.b16 %v2560
      %v2593 = vunpack.c.l.b16 %v2561
      %v2594 = vunpack.c.l.b16 %v2562
      %v2595 = vunpack.c.l.b16 %v2563
      %v2596 = vunpack.c.l.b16 %v2564
      %v2597 = vunpack.c.l.b16 %v2565
      %v2598 = vunpack.c.l.b16 %v2566
      %v2599 = vunpack.c.l.b16 %v2567
      %v2600 = vunpack.c.l.b16 %v2568
      %v2601 = vunpack.c.l.b16 %v2569
      %v2602 = vunpack.c.l.b16 %v2570
      %v2603 = vunpack.c.l.b16 %v2571
      %v2604 = vunpack.c.l.b16 %v2572
      %v2605 = vunpack.c.l.b16 %v2573
      %v2606 = vunpack.c.l.b16 %v2574
      %v2607 = vpack.c.b16 %v2592, %v2591
      %v2608 = vpack.c.b16 %v2594, %v2593
      %v2609 = vpack.c.b16 %v2596, %v2595
      %v2610 = vpack.c.b16 %v2598, %v2597
      %v2611 = vpack.c.b16 %v2600, %v2599
      %v2612 = vpack.c.b16 %v2602, %v2601
      %v2613 = vpack.c.b16 %v2604, %v2603
      %v2614 = vpack.c.b16 %v2606, %v2605
      %2623 = vmatprep.subr.bf16.mxu0 0
      %2624 = vmatpush1.bf16.msra.mxu0 %v2607
      %2625 = vmatprep.subr.bf16.mxu0 0
      %2626 = vmatpush1.bf16.msra.mxu0 %v2608
      %2627 = vmatprep.subr.bf16.mxu0 0
      %2628 = vmatpush1.bf16.msra.mxu0 %v2609
      %2629 = vmatprep.subr.bf16.mxu0 0
      %2630 = vmatpush1.bf16.msra.mxu0 %v2610
      %2631 = vmatprep.subr.bf16.mxu0 0
      %2632 = vmatpush1.bf16.msra.mxu0 %v2611
      %2633 = vmatprep.subr.bf16.mxu0 0
      %2634 = vmatpush1.bf16.msra.mxu0 %v2612
      %2635 = vmatprep.subr.bf16.mxu0 0
      %2636 = vmatpush1.bf16.msra.mxu0 %v2613
      %2637 = vmatprep.subr.bf16.mxu0 0
      %2638 = vmatpush1.bf16.msra.mxu0 %v2614
      %2639 = vmatprep.subr.bf16.mxu0 0
      %2640 = vmatpush1.bf16.msra.mxu0 0
      %2641 = vmatprep.subr.bf16.mxu0 0
      %2642 = vmatpush1.bf16.msra.mxu0 0
      %2643 = vmatprep.subr.bf16.mxu0 0
      %2644 = vmatpush1.bf16.msra.mxu0 0
      %2645 = vmatprep.subr.bf16.mxu0 0
      %2646 = vmatpush1.bf16.msra.mxu0 0
      %2647 = vmatprep.subr.bf16.mxu0 0
      %2648 = vmatpush1.bf16.msra.mxu0 0
      %2649 = vmatprep.subr.bf16.mxu0 0
      %2650 = vmatpush1.bf16.msra.mxu0 0
      %2651 = vmatprep.subr.bf16.mxu0 0
      %2652 = vmatpush1.bf16.msra.mxu0 0
      %2653 = vmatprep.subr.bf16.mxu0 0
      %2654 = vmatpush1.bf16.msra.mxu0 0
      %2655 = vmatprep.mubr.bf16.mxu0 0
      %2656 = vmatmul.mubr.bf16.gmra.mrb[0].mxu0 %v2227
      %v2657 = vpop.f32.mrb[0].mxu0
      %v2658 = vadd.f32 0.0, %v2657
      %v2659 = vpop.f32.mrb[0].mxu0
      %v2660 = vpop.f32.mrb[0].mxu0
      %v2661 = vadd.f32 0.0, %v2660
      %v2662 = vpop.f32.mrb[0].mxu0
      %2663 = vmatprep.mubr.bf16.mxu0 0
      %2664 = vmatmul.mubr.bf16.gmra.mrb[0].mxu0 %v2228
      %v2665 = vpop.f32.mrb[0].mxu0
      %v2666 = vadd.f32 0.0, %v2665
      %v2667 = vpop.f32.mrb[0].mxu0
      %v2668 = vpop.f32.mrb[0].mxu0
      %v2669 = vadd.f32 0.0, %v2668
      %v2670 = vpop.f32.mrb[0].mxu0
      %2671 = vmatprep.mubr.bf16.mxu0 0
      %2672 = vmatmul.mubr.bf16.gmra.mrb[0].mxu0 %v2229
      %v2673 = vpop.f32.mrb[0].mxu0
      %v2674 = vadd.f32 0.0, %v2673
      %v2675 = vpop.f32.mrb[0].mxu0
      %v2676 = vpop.f32.mrb[0].mxu0
      %v2677 = vadd.f32 0.0, %v2676
      %v2678 = vpop.f32.mrb[0].mxu0
      %2679 = vmatprep.mubr.bf16.mxu0 0
      %2680 = vmatmul.mubr.bf16.gmra.mrb[0].mxu0 %v2230
      %v2681 = vpop.f32.mrb[0].mxu0
      %v2682 = vadd.f32 0.0, %v2681
      %v2683 = vpop.f32.mrb[0].mxu0
      %v2684 = vpop.f32.mrb[0].mxu0
      %v2685 = vadd.f32 0.0, %v2684
      %v2686 = vpop.f32.mrb[0].mxu0
      %2687 = vmatprep.mubr.bf16.mxu0 0
      %2688 = vmatmul.mubr.bf16.gmra.mrb[0].mxu0 %v2231
      %v2689 = vpop.f32.mrb[0].mxu0
      %v2690 = vadd.f32 0.0, %v2689
      %v2691 = vpop.f32.mrb[0].mxu0
      %v2692 = vpop.f32.mrb[0].mxu0
      %v2693 = vadd.f32 0.0, %v2692
      %v2694 = vpop.f32.mrb[0].mxu0
      %2695 = vmatprep.mubr.bf16.mxu0 0
      %2696 = vmatmul.mubr.bf16.gmra.mrb[0].mxu0 %v2232
      %v2697 = vpop.f32.mrb[0].mxu0
      %v2698 = vadd.f32 0.0, %v2697
      %v2699 = vpop.f32.mrb[0].mxu0
      %v2700 = vpop.f32.mrb[0].mxu0
      %v2701 = vadd.f32 0.0, %v2700
      %v2702 = vpop.f32.mrb[0].mxu0
      %2703 = vmatprep.mubr.bf16.mxu0 0
      %2704 = vmatmul.mubr.bf16.gmra.mrb[0].mxu0 %v2233
      %v2705 = vpop.f32.mrb[0].mxu0
      %v2706 = vadd.f32 0.0, %v2705
      %v2707 = vpop.f32.mrb[0].mxu0
      %v2708 = vpop.f32.mrb[0].mxu0
      %v2709 = vadd.f32 0.0, %v2708
      %v2710 = vpop.f32.mrb[0].mxu0
      %2711 = vmatprep.mubr.bf16.mxu0 0
      %2712 = vmatmul.mubr.bf16.gmra.mrb[0].mxu0 %v2234
      %v2713 = vpop.f32.mrb[0].mxu0
      %v2714 = vadd.f32 0.0, %v2713
      %v2715 = vpop.f32.mrb[0].mxu0
      %v2716 = vpop.f32.mrb[0].mxu0
      %v2717 = vadd.f32 0.0, %v2716
      %v2718 = vpop.f32.mrb[0].mxu0
      %2719 = vdwg.mxu0
      %v2720 = vadd.f32 %v2496, %v2658
      %v2721 = vadd.f32 %v2499, %v2661
      %v2722 = vadd.f32 %v2504, %v2666
      %v2723 = vadd.f32 %v2507, %v2669
      %v2724 = vadd.f32 %v2512, %v2674
      %v2725 = vadd.f32 %v2515, %v2677
      %v2726 = vadd.f32 %v2520, %v2682
      %v2727 = vadd.f32 %v2523, %v2685
      %v2728 = vadd.f32 %v2528, %v2690
      %v2729 = vadd.f32 %v2531, %v2693
      %v2730 = vadd.f32 %v2536, %v2698
      %v2731 = vadd.f32 %v2539, %v2701
      %v2732 = vadd.f32 %v2544, %v2706
      %v2733 = vadd.f32 %v2547, %v2709
      %v2734 = vadd.f32 %v2552, %v2714
      %v2735 = vadd.f32 %v2555, %v2717
      %v2736 = vrot.slane %v2720, 7
      %v2737 = vrot.slane %v2721, 7
      %v2738 = vrot.slane %v2722, 7
      %v2739 = vrot.slane %v2723, 7
      %v2740 = vrot.slane %v2724, 7
      %v2741 = vrot.slane %v2725, 7
      %v2742 = vrot.slane %v2726, 7
      %v2743 = vrot.slane %v2727, 7
      %v2744 = vrot.slane %v2728, 7
      %v2745 = vrot.slane %v2729, 7
      %v2746 = vrot.slane %v2730, 7
      %v2747 = vrot.slane %v2731, 7
      %v2748 = vrot.slane %v2732, 7
      %v2749 = vrot.slane %v2733, 7
      %v2750 = vrot.slane %v2734, 7
      %v2751 = vrot.slane %v2735, 7
      %vm2752 = vcmp.lt.s32.totalorder %v2109, 1
      %v2753 = vsel %vm2752, %v2749, %v2750
      %v2754 = vsel %vm2752, %v2747, %v2748
      %v2755 = vsel %vm2752, %v2745, %v2746
      %v2756 = vsel %vm2752, %v2743, %v2744
      %v2757 = vsel %vm2752, %v2741, %v2742
      %v2758 = vsel %vm2752, %v2739, %v2740
      %v2759 = vsel %vm2752, %v2737, %v2738
      %v2760 = vsel %vm2752, %v2751, %v2736
      %s2761 = scalar_lea.vmem %s3, 64
      %v2762 = vld [vmem:[%s2761] sm:$0xf]
      %v2763 = vld [vmem:[%s2761 + $0x4] sm:$0xf]
      %v2764 = vld [vmem:[%s2761 + $0x8] sm:$0xf]
      %v2765 = vld [vmem:[%s2761 + $0xc] sm:$0xf]
      %v2766 = vld [vmem:[%s2761 + $0x10] sm:$0xf]
      %v2767 = vld [vmem:[%s2761 + $0x14] sm:$0xf]
      %v2768 = vld [vmem:[%s2761 + $0x18] sm:$0xf]
      %v2769 = vld [vmem:[%s2761 + $0x1c] sm:$0xf]
      %v2770 = vld [vmem:[%s2761 + $0x20] sm:$0xf]
      %v2771 = vld [vmem:[%s2761 + $0x24] sm:$0xf]
      %v2772 = vld [vmem:[%s2761 + $0x28] sm:$0xf]
      %v2773 = vld [vmem:[%s2761 + $0x2c] sm:$0xf]
      %v2774 = vld [vmem:[%s2761 + $0x30] sm:$0xf]
      %v2775 = vld [vmem:[%s2761 + $0x34] sm:$0xf]
      %v2776 = vld [vmem:[%s2761 + $0x38] sm:$0xf]
      %v2777 = vld [vmem:[%s2761 + $0x3c] sm:$0xf]
      %s2778 = scalar_lea.vmem %s3, 256
      %v2779 = vld [vmem:[%s2778] sm:$0xf]
      %v2780 = vld [vmem:[%s2778 + $0x4] sm:$0xf]
      %v2781 = vld [vmem:[%s2778 + $0x8] sm:$0xf]
      %v2782 = vld [vmem:[%s2778 + $0xc] sm:$0xf]
      %v2783 = vld [vmem:[%s2778 + $0x10] sm:$0xf]
      %v2784 = vld [vmem:[%s2778 + $0x14] sm:$0xf]
      %v2785 = vld [vmem:[%s2778 + $0x18] sm:$0xf]
      %v2786 = vld [vmem:[%s2778 + $0x1c] sm:$0xf]
      %v2787 = vld [vmem:[%s2778 + $0x20] sm:$0xf]
      %v2788 = vld [vmem:[%s2778 + $0x24] sm:$0xf]
      %v2789 = vld [vmem:[%s2778 + $0x28] sm:$0xf]
      %v2790 = vld [vmem:[%s2778 + $0x2c] sm:$0xf]
      %v2791 = vld [vmem:[%s2778 + $0x30] sm:$0xf]
      %v2792 = vld [vmem:[%s2778 + $0x34] sm:$0xf]
      %v2793 = vld [vmem:[%s2778 + $0x38] sm:$0xf]
      %v2794 = vld [vmem:[%s2778 + $0x3c] sm:$0xf]
      %v2811 = vunpack.c.l.b16 %v2779
      %v2812 = vunpack.c.l.b16 %v2780
      %v2813 = vunpack.c.l.b16 %v2781
      %v2814 = vunpack.c.l.b16 %v2782
      %v2815 = vunpack.c.l.b16 %v2783
      %v2816 = vunpack.c.l.b16 %v2784
      %v2817 = vunpack.c.l.b16 %v2785
      %v2818 = vunpack.c.l.b16 %v2786
      %v2819 = vunpack.c.l.b16 %v2787
      %v2820 = vunpack.c.l.b16 %v2788
      %v2821 = vunpack.c.l.b16 %v2789
      %v2822 = vunpack.c.l.b16 %v2790
      %v2823 = vunpack.c.l.b16 %v2791
      %v2824 = vunpack.c.l.b16 %v2792
      %v2825 = vunpack.c.l.b16 %v2793
      %v2826 = vunpack.c.l.b16 %v2794
      %v2827 = vpack.c.b16 %v2812, %v2811
      %v2828 = vpack.c.b16 %v2814, %v2813
      %v2829 = vpack.c.b16 %v2816, %v2815
      %v2830 = vpack.c.b16 %v2818, %v2817
      %v2831 = vpack.c.b16 %v2820, %v2819
      %v2832 = vpack.c.b16 %v2822, %v2821
      %v2833 = vpack.c.b16 %v2824, %v2823
      %v2834 = vpack.c.b16 %v2826, %v2825
      %2843 = vmatprep.subr.bf16.mxu0 0
      %2844 = vmatpush1.bf16.msra.mxu0 %v2827
      %2845 = vmatprep.subr.bf16.mxu0 0
      %2846 = vmatpush1.bf16.msra.mxu0 %v2828
      %2847 = vmatprep.subr.bf16.mxu0 0
      %2848 = vmatpush1.bf16.msra.mxu0 %v2829
      %2849 = vmatprep.subr.bf16.mxu0 0
      %2850 = vmatpush1.bf16.msra.mxu0 %v2830
      %2851 = vmatprep.subr.bf16.mxu0 0
      %2852 = vmatpush1.bf16.msra.mxu0 %v2831
      %2853 = vmatprep.subr.bf16.mxu0 0
      %2854 = vmatpush1.bf16.msra.mxu0 %v2832
      %2855 = vmatprep.subr.bf16.mxu0 0
      %2856 = vmatpush1.bf16.msra.mxu0 %v2833
      %2857 = vmatprep.subr.bf16.mxu0 0
      %2858 = vmatpush1.bf16.msra.mxu0 %v2834
      %2859 = vmatprep.subr.bf16.mxu0 0
      %2860 = vmatpush1.bf16.msra.mxu0 0
      %2861 = vmatprep.subr.bf16.mxu0 0
      %2862 = vmatpush1.bf16.msra.mxu0 0
      %2863 = vmatprep.subr.bf16.mxu0 0
      %2864 = vmatpush1.bf16.msra.mxu0 0
      %2865 = vmatprep.subr.bf16.mxu0 0
      %2866 = vmatpush1.bf16.msra.mxu0 0
      %2867 = vmatprep.subr.bf16.mxu0 0
      %2868 = vmatpush1.bf16.msra.mxu0 0
      %2869 = vmatprep.subr.bf16.mxu0 0
      %2870 = vmatpush1.bf16.msra.mxu0 0
      %2871 = vmatprep.subr.bf16.mxu0 0
      %2872 = vmatpush1.bf16.msra.mxu0 0
      %2873 = vmatprep.subr.bf16.mxu0 0
      %2874 = vmatpush1.bf16.msra.mxu0 0
      %2875 = vmatprep.mubr.bf16.mxu0 0
      %2876 = vmatmul.mubr.bf16.gmra.mrb[0].mxu0 %v2226
      %v2877 = vpop.f32.mrb[0].mxu0
      %v2878 = vadd.f32 0.0, %v2877
      %v2879 = vpop.f32.mrb[0].mxu0
      %v2880 = vpop.f32.mrb[0].mxu0
      %v2881 = vpop.f32.mrb[0].mxu0
      %2882 = vmatprep.mubr.bf16.mxu0 0
      %2883 = vmatmul.mubr.bf16.gmra.mrb[0].mxu0 %v2227
      %v2884 = vpop.f32.mrb[0].mxu0
      %v2885 = vadd.f32 0.0, %v2884
      %v2886 = vpop.f32.mrb[0].mxu0
      %v2887 = vpop.f32.mrb[0].mxu0
      %v2888 = vpop.f32.mrb[0].mxu0
      %2889 = vmatprep.mubr.bf16.mxu0 0
      %2890 = vmatmul.mubr.bf16.gmra.mrb[0].mxu0 %v2228
      %v2891 = vpop.f32.mrb[0].mxu0
      %v2892 = vadd.f32 0.0, %v2891
      %v2893 = vpop.f32.mrb[0].mxu0
      %v2894 = vpop.f32.mrb[0].mxu0
      %v2895 = vpop.f32.mrb[0].mxu0
      %2896 = vmatprep.mubr.bf16.mxu0 0
      %2897 = vmatmul.mubr.bf16.gmra.mrb[0].mxu0 %v2229
      %v2898 = vpop.f32.mrb[0].mxu0
      %v2899 = vadd.f32 0.0, %v2898
      %v2900 = vpop.f32.mrb[0].mxu0
      %v2901 = vpop.f32.mrb[0].mxu0
      %v2902 = vpop.f32.mrb[0].mxu0
      %2903 = vmatprep.mubr.bf16.mxu0 0
      %2904 = vmatmul.mubr.bf16.gmra.mrb[0].mxu0 %v2230
      %v2905 = vpop.f32.mrb[0].mxu0
      %v2906 = vadd.f32 0.0, %v2905
      %v2907 = vpop.f32.mrb[0].mxu0
      %v2908 = vpop.f32.mrb[0].mxu0
      %v2909 = vpop.f32.mrb[0].mxu0
      %2910 = vmatprep.mubr.bf16.mxu0 0
      %2911 = vmatmul.mubr.bf16.gmra.mrb[0].mxu0 %v2231
      %v2912 = vpop.f32.mrb[0].mxu0
      %v2913 = vadd.f32 0.0, %v2912
      %v2914 = vpop.f32.mrb[0].mxu0
      %v2915 = vpop.f32.mrb[0].mxu0
      %v2916 = vpop.f32.mrb[0].mxu0
      %2917 = vmatprep.mubr.bf16.mxu0 0
      %2918 = vmatmul.mubr.bf16.gmra.mrb[0].mxu0 %v2232
      %v2919 = vpop.f32.mrb[0].mxu0
      %v2920 = vadd.f32 0.0, %v2919
      %v2921 = vpop.f32.mrb[0].mxu0
      %v2922 = vpop.f32.mrb[0].mxu0
      %v2923 = vpop.f32.mrb[0].mxu0
      %2924 = vmatprep.mubr.bf16.mxu0 0
      %2925 = vmatmul.mubr.bf16.gmra.mrb[0].mxu0 %v2233
      %v2926 = vpop.f32.mrb[0].mxu0
      %v2927 = vadd.f32 0.0, %v2926
      %v2928 = vpop.f32.mrb[0].mxu0
      %v2929 = vpop.f32.mrb[0].mxu0
      %v2930 = vpop.f32.mrb[0].mxu0
      %2931 = vdwg.mxu0
      %v2948 = vunpack.c.l.b16 %v2762
      %v2949 = vunpack.c.l.b16 %v2763
      %v2950 = vunpack.c.l.b16 %v2764
      %v2951 = vunpack.c.l.b16 %v2765
      %v2952 = vunpack.c.l.b16 %v2766
      %v2953 = vunpack.c.l.b16 %v2767
      %v2954 = vunpack.c.l.b16 %v2768
      %v2955 = vunpack.c.l.b16 %v2769
      %v2956 = vunpack.c.l.b16 %v2770
      %v2957 = vunpack.c.l.b16 %v2771
      %v2958 = vunpack.c.l.b16 %v2772
      %v2959 = vunpack.c.l.b16 %v2773
      %v2960 = vunpack.c.l.b16 %v2774
      %v2961 = vunpack.c.l.b16 %v2775
      %v2962 = vunpack.c.l.b16 %v2776
      %v2963 = vunpack.c.l.b16 %v2777
      %v2964 = vpack.c.b16 %v2949, %v2948
      %v2965 = vpack.c.b16 %v2951, %v2950
      %v2966 = vpack.c.b16 %v2953, %v2952
      %v2967 = vpack.c.b16 %v2955, %v2954
      %v2968 = vpack.c.b16 %v2957, %v2956
      %v2969 = vpack.c.b16 %v2959, %v2958
      %v2970 = vpack.c.b16 %v2961, %v2960
      %v2971 = vpack.c.b16 %v2963, %v2962
      %2980 = vmatprep.subr.bf16.mxu0 0
      %2981 = vmatpush1.bf16.msra.mxu0 %v2964
      %2982 = vmatprep.subr.bf16.mxu0 0
      %2983 = vmatpush1.bf16.msra.mxu0 %v2965
      %2984 = vmatprep.subr.bf16.mxu0 0
      %2985 = vmatpush1.bf16.msra.mxu0 %v2966
      %2986 = vmatprep.subr.bf16.mxu0 0
      %2987 = vmatpush1.bf16.msra.mxu0 %v2967
      %2988 = vmatprep.subr.bf16.mxu0 0
      %2989 = vmatpush1.bf16.msra.mxu0 %v2968
      %2990 = vmatprep.subr.bf16.mxu0 0
      %2991 = vmatpush1.bf16.msra.mxu0 %v2969
      %2992 = vmatprep.subr.bf16.mxu0 0
      %2993 = vmatpush1.bf16.msra.mxu0 %v2970
      %2994 = vmatprep.subr.bf16.mxu0 0
      %2995 = vmatpush1.bf16.msra.mxu0 %v2971
      %2996 = vmatprep.subr.bf16.mxu0 0
      %2997 = vmatpush1.bf16.msra.mxu0 0
      %2998 = vmatprep.subr.bf16.mxu0 0
      %2999 = vmatpush1.bf16.msra.mxu0 0
      %3000 = vmatprep.subr.bf16.mxu0 0
      %3001 = vmatpush1.bf16.msra.mxu0 0
      %3002 = vmatprep.subr.bf16.mxu0 0
      %3003 = vmatpush1.bf16.msra.mxu0 0
      %3004 = vmatprep.subr.bf16.mxu0 0
      %3005 = vmatpush1.bf16.msra.mxu0 0
      %3006 = vmatprep.subr.bf16.mxu0 0
      %3007 = vmatpush1.bf16.msra.mxu0 0
      %3008 = vmatprep.subr.bf16.mxu0 0
      %3009 = vmatpush1.bf16.msra.mxu0 0
      %3010 = vmatprep.subr.bf16.mxu0 0
      %3011 = vmatpush1.bf16.msra.mxu0 0
      %3012 = vmatprep.mubr.bf16.mxu0 0
      %3013 = vmatmul.mubr.bf16.gmra.mrb[0].mxu0 %v2225
      %v3014 = vpop.f32.mrb[0].mxu0
      %v3015 = vadd.f32 %v2878, %v3014
      %v3016 = vpop.f32.mrb[0].mxu0
      %v3017 = vpop.f32.mrb[0].mxu0
      %v3018 = vpop.f32.mrb[0].mxu0
      %3019 = vmatprep.mubr.bf16.mxu0 0
      %3020 = vmatmul.mubr.bf16.gmra.mrb[0].mxu0 %v2226
      %v3021 = vpop.f32.mrb[0].mxu0
      %v3022 = vadd.f32 %v2885, %v3021
      %v3023 = vpop.f32.mrb[0].mxu0
      %v3024 = vpop.f32.mrb[0].mxu0
      %v3025 = vpop.f32.mrb[0].mxu0
      %3026 = vmatprep.mubr.bf16.mxu0 0
      %3027 = vmatmul.mubr.bf16.gmra.mrb[0].mxu0 %v2227
      %v3028 = vpop.f32.mrb[0].mxu0
      %v3029 = vadd.f32 %v2892, %v3028
      %v3030 = vpop.f32.mrb[0].mxu0
      %v3031 = vpop.f32.mrb[0].mxu0
      %v3032 = vpop.f32.mrb[0].mxu0
      %3033 = vmatprep.mubr.bf16.mxu0 0
      %3034 = vmatmul.mubr.bf16.gmra.mrb[0].mxu0 %v2228
      %v3035 = vpop.f32.mrb[0].mxu0
      %v3036 = vadd.f32 %v2899, %v3035
      %v3037 = vpop.f32.mrb[0].mxu0
      %v3038 = vpop.f32.mrb[0].mxu0
      %v3039 = vpop.f32.mrb[0].mxu0
      %3040 = vmatprep.mubr.bf16.mxu0 0
      %3041 = vmatmul.mubr.bf16.gmra.mrb[0].mxu0 %v2229
      %v3042 = vpop.f32.mrb[0].mxu0
      %v3043 = vadd.f32 %v2906, %v3042
      %v3044 = vpop.f32.mrb[0].mxu0
      %v3045 = vpop.f32.mrb[0].mxu0
      %v3046 = vpop.f32.mrb[0].mxu0
      %3047 = vmatprep.mubr.bf16.mxu0 0
      %3048 = vmatmul.mubr.bf16.gmra.mrb[0].mxu0 %v2230
      %v3049 = vpop.f32.mrb[0].mxu0
      %v3050 = vadd.f32 %v2913, %v3049
      %v3051 = vpop.f32.mrb[0].mxu0
      %v3052 = vpop.f32.mrb[0].mxu0
      %v3053 = vpop.f32.mrb[0].mxu0
      %3054 = vmatprep.mubr.bf16.mxu0 0
      %3055 = vmatmul.mubr.bf16.gmra.mrb[0].mxu0 %v2231
      %v3056 = vpop.f32.mrb[0].mxu0
      %v3057 = vadd.f32 %v2920, %v3056
      %v3058 = vpop.f32.mrb[0].mxu0
      %v3059 = vpop.f32.mrb[0].mxu0
      %v3060 = vpop.f32.mrb[0].mxu0
      %3061 = vmatprep.mubr.bf16.mxu0 0
      %3062 = vmatmul.mubr.bf16.gmra.mrb[0].mxu0 %v2232
      %v3063 = vpop.f32.mrb[0].mxu0
      %v3064 = vadd.f32 %v2927, %v3063
      %v3065 = vpop.f32.mrb[0].mxu0
      %v3066 = vpop.f32.mrb[0].mxu0
      %v3067 = vpop.f32.mrb[0].mxu0
      %3068 = vdwg.mxu0
      %s3069 = scalar_lea.vmem %s3, 448
      %v3070 = vld [vmem:[%s3069] sm:$0xf]
      %v3071 = vld [vmem:[%s3069 + $0x4] sm:$0xf]
      %v3072 = vld [vmem:[%s3069 + $0x8] sm:$0xf]
      %v3073 = vld [vmem:[%s3069 + $0xc] sm:$0xf]
      %v3074 = vld [vmem:[%s3069 + $0x10] sm:$0xf]
      %v3075 = vld [vmem:[%s3069 + $0x14] sm:$0xf]
      %v3076 = vld [vmem:[%s3069 + $0x18] sm:$0xf]
      %v3077 = vld [vmem:[%s3069 + $0x1c] sm:$0xf]
      %v3078 = vld [vmem:[%s3069 + $0x20] sm:$0xf]
      %v3079 = vld [vmem:[%s3069 + $0x24] sm:$0xf]
      %v3080 = vld [vmem:[%s3069 + $0x28] sm:$0xf]
      %v3081 = vld [vmem:[%s3069 + $0x2c] sm:$0xf]
      %v3082 = vld [vmem:[%s3069 + $0x30] sm:$0xf]
      %v3083 = vld [vmem:[%s3069 + $0x34] sm:$0xf]
      %v3084 = vld [vmem:[%s3069 + $0x38] sm:$0xf]
      %v3085 = vld [vmem:[%s3069 + $0x3c] sm:$0xf]
      %v3102 = vunpack.c.l.b16 %v3070
      %v3103 = vunpack.c.l.b16 %v3071
      %v3104 = vunpack.c.l.b16 %v3072
      %v3105 = vunpack.c.l.b16 %v3073
      %v3106 = vunpack.c.l.b16 %v3074
      %v3107 = vunpack.c.l.b16 %v3075
      %v3108 = vunpack.c.l.b16 %v3076
      %v3109 = vunpack.c.l.b16 %v3077
      %v3110 = vunpack.c.l.b16 %v3078
      %v3111 = vunpack.c.l.b16 %v3079
      %v3112 = vunpack.c.l.b16 %v3080
      %v3113 = vunpack.c.l.b16 %v3081
      %v3114 = vunpack.c.l.b16 %v3082
      %v3115 = vunpack.c.l.b16 %v3083
      %v3116 = vunpack.c.l.b16 %v3084
      %v3117 = vunpack.c.l.b16 %v3085
      %v3118 = vpack.c.b16 %v3103, %v3102
      %v3119 = vpack.c.b16 %v3105, %v3104
      %v3120 = vpack.c.b16 %v3107, %v3106
      %v3121 = vpack.c.b16 %v3109, %v3108
      %v3122 = vpack.c.b16 %v3111, %v3110
      %v3123 = vpack.c.b16 %v3113, %v3112
      %v3124 = vpack.c.b16 %v3115, %v3114
      %v3125 = vpack.c.b16 %v3117, %v3116
      %3134 = vmatprep.subr.bf16.mxu0 0
      %3135 = vmatpush1.bf16.msra.mxu0 %v3118
      %3136 = vmatprep.subr.bf16.mxu0 0
      %3137 = vmatpush1.bf16.msra.mxu0 %v3119
      %3138 = vmatprep.subr.bf16.mxu0 0
      %3139 = vmatpush1.bf16.msra.mxu0 %v3120
      %3140 = vmatprep.subr.bf16.mxu0 0
      %3141 = vmatpush1.bf16.msra.mxu0 %v3121
      %3142 = vmatprep.subr.bf16.mxu0 0
      %3143 = vmatpush1.bf16.msra.mxu0 %v3122
      %3144 = vmatprep.subr.bf16.mxu0 0
      %3145 = vmatpush1.bf16.msra.mxu0 %v3123
      %3146 = vmatprep.subr.bf16.mxu0 0
      %3147 = vmatpush1.bf16.msra.mxu0 %v3124
      %3148 = vmatprep.subr.bf16.mxu0 0
      %3149 = vmatpush1.bf16.msra.mxu0 %v3125
      %3150 = vmatprep.subr.bf16.mxu0 0
      %3151 = vmatpush1.bf16.msra.mxu0 0
      %3152 = vmatprep.subr.bf16.mxu0 0
      %3153 = vmatpush1.bf16.msra.mxu0 0
      %3154 = vmatprep.subr.bf16.mxu0 0
      %3155 = vmatpush1.bf16.msra.mxu0 0
      %3156 = vmatprep.subr.bf16.mxu0 0
      %3157 = vmatpush1.bf16.msra.mxu0 0
      %3158 = vmatprep.subr.bf16.mxu0 0
      %3159 = vmatpush1.bf16.msra.mxu0 0
      %3160 = vmatprep.subr.bf16.mxu0 0
      %3161 = vmatpush1.bf16.msra.mxu0 0
      %3162 = vmatprep.subr.bf16.mxu0 0
      %3163 = vmatpush1.bf16.msra.mxu0 0
      %3164 = vmatprep.subr.bf16.mxu0 0
      %3165 = vmatpush1.bf16.msra.mxu0 0
      %3166 = vmatprep.mubr.bf16.mxu0 0
      %3167 = vmatmul.mubr.bf16.gmra.mrb[0].mxu0 %v2227
      %v3168 = vpop.f32.mrb[0].mxu0
      %v3169 = vadd.f32 0.0, %v3168
      %v3170 = vpop.f32.mrb[0].mxu0
      %v3171 = vpop.f32.mrb[0].mxu0
      %v3172 = vpop.f32.mrb[0].mxu0
      %3173 = vmatprep.mubr.bf16.mxu0 0
      %3174 = vmatmul.mubr.bf16.gmra.mrb[0].mxu0 %v2228
      %v3175 = vpop.f32.mrb[0].mxu0
      %v3176 = vadd.f32 0.0, %v3175
      %v3177 = vpop.f32.mrb[0].mxu0
      %v3178 = vpop.f32.mrb[0].mxu0
      %v3179 = vpop.f32.mrb[0].mxu0
      %3180 = vmatprep.mubr.bf16.mxu0 0
      %3181 = vmatmul.mubr.bf16.gmra.mrb[0].mxu0 %v2229
      %v3182 = vpop.f32.mrb[0].mxu0
      %v3183 = vadd.f32 0.0, %v3182
      %v3184 = vpop.f32.mrb[0].mxu0
      %v3185 = vpop.f32.mrb[0].mxu0
      %v3186 = vpop.f32.mrb[0].mxu0
      %3187 = vmatprep.mubr.bf16.mxu0 0
      %3188 = vmatmul.mubr.bf16.gmra.mrb[0].mxu0 %v2230
      %v3189 = vpop.f32.mrb[0].mxu0
      %v3190 = vadd.f32 0.0, %v3189
      %v3191 = vpop.f32.mrb[0].mxu0
      %v3192 = vpop.f32.mrb[0].mxu0
      %v3193 = vpop.f32.mrb[0].mxu0
      %3194 = vmatprep.mubr.bf16.mxu0 0
      %3195 = vmatmul.mubr.bf16.gmra.mrb[0].mxu0 %v2231
      %v3196 = vpop.f32.mrb[0].mxu0
      %v3197 = vadd.f32 0.0, %v3196
      %v3198 = vpop.f32.mrb[0].mxu0
      %v3199 = vpop.f32.mrb[0].mxu0
      %v3200 = vpop.f32.mrb[0].mxu0
      %3201 = vmatprep.mubr.bf16.mxu0 0
      %3202 = vmatmul.mubr.bf16.gmra.mrb[0].mxu0 %v2232
      %v3203 = vpop.f32.mrb[0].mxu0
      %v3204 = vadd.f32 0.0, %v3203
      %v3205 = vpop.f32.mrb[0].mxu0
      %v3206 = vpop.f32.mrb[0].mxu0
      %v3207 = vpop.f32.mrb[0].mxu0
      %3208 = vmatprep.mubr.bf16.mxu0 0
      %3209 = vmatmul.mubr.bf16.gmra.mrb[0].mxu0 %v2233
      %v3210 = vpop.f32.mrb[0].mxu0
      %v3211 = vadd.f32 0.0, %v3210
      %v3212 = vpop.f32.mrb[0].mxu0
      %v3213 = vpop.f32.mrb[0].mxu0
      %v3214 = vpop.f32.mrb[0].mxu0
      %3215 = vmatprep.mubr.bf16.mxu0 0
      %3216 = vmatmul.mubr.bf16.gmra.mrb[0].mxu0 %v2234
      %v3217 = vpop.f32.mrb[0].mxu0
      %v3218 = vadd.f32 0.0, %v3217
      %v3219 = vpop.f32.mrb[0].mxu0
      %v3220 = vpop.f32.mrb[0].mxu0
      %v3221 = vpop.f32.mrb[0].mxu0
      %3222 = vdwg.mxu0
      %v3223 = vadd.f32 %v3015, %v3169
      %v3224 = vadd.f32 %v3022, %v3176
      %v3225 = vadd.f32 %v3029, %v3183
      %v3226 = vadd.f32 %v3036, %v3190
      %v3227 = vadd.f32 %v3043, %v3197
      %v3228 = vadd.f32 %v3050, %v3204
      %v3229 = vadd.f32 %v3057, %v3211
      %v3230 = vadd.f32 %v3064, %v3218
      %v3231 = vadd.f32 %v2760, %v3223
      %v3232 = vadd.f32 %v2759, %v3224
      %v3233 = vadd.f32 %v2758, %v3225
      %v3234 = vadd.f32 %v2757, %v3226
      %v3235 = vadd.f32 %v2756, %v3227
      %v3236 = vadd.f32 %v2755, %v3228
      %v3237 = vadd.f32 %v2754, %v3229
      %v3238 = vadd.f32 %v2753, %v3230
      %s3239 = scalar_lea.vmem %s3, 128
      %v3240 = vld [vmem:[%s3239] sm:$0xf]
      %v3241 = vld [vmem:[%s3239 + $0x4] sm:$0xf]
      %v3242 = vld [vmem:[%s3239 + $0x8] sm:$0xf]
      %v3243 = vld [vmem:[%s3239 + $0xc] sm:$0xf]
      %v3244 = vld [vmem:[%s3239 + $0x10] sm:$0xf]
      %v3245 = vld [vmem:[%s3239 + $0x14] sm:$0xf]
      %v3246 = vld [vmem:[%s3239 + $0x18] sm:$0xf]
      %v3247 = vld [vmem:[%s3239 + $0x1c] sm:$0xf]
      %v3248 = vld [vmem:[%s3239 + $0x20] sm:$0xf]
      %v3249 = vld [vmem:[%s3239 + $0x24] sm:$0xf]
      %v3250 = vld [vmem:[%s3239 + $0x28] sm:$0xf]
      %v3251 = vld [vmem:[%s3239 + $0x2c] sm:$0xf]
      %v3252 = vld [vmem:[%s3239 + $0x30] sm:$0xf]
      %v3253 = vld [vmem:[%s3239 + $0x34] sm:$0xf]
      %v3254 = vld [vmem:[%s3239 + $0x38] sm:$0xf]
      %v3255 = vld [vmem:[%s3239 + $0x3c] sm:$0xf]
      %s3256 = scalar_lea.vmem %s3, 320
      %v3257 = vld [vmem:[%s3256] sm:$0xf]
      %v3258 = vld [vmem:[%s3256 + $0x4] sm:$0xf]
      %v3259 = vld [vmem:[%s3256 + $0x8] sm:$0xf]
      %v3260 = vld [vmem:[%s3256 + $0xc] sm:$0xf]
      %v3261 = vld [vmem:[%s3256 + $0x10] sm:$0xf]
      %v3262 = vld [vmem:[%s3256 + $0x14] sm:$0xf]
      %v3263 = vld [vmem:[%s3256 + $0x18] sm:$0xf]
      %v3264 = vld [vmem:[%s3256 + $0x1c] sm:$0xf]
      %v3265 = vld [vmem:[%s3256 + $0x20] sm:$0xf]
      %v3266 = vld [vmem:[%s3256 + $0x24] sm:$0xf]
      %v3267 = vld [vmem:[%s3256 + $0x28] sm:$0xf]
      %v3268 = vld [vmem:[%s3256 + $0x2c] sm:$0xf]
      %v3269 = vld [vmem:[%s3256 + $0x30] sm:$0xf]
      %v3270 = vld [vmem:[%s3256 + $0x34] sm:$0xf]
      %v3271 = vld [vmem:[%s3256 + $0x38] sm:$0xf]
      %v3272 = vld [vmem:[%s3256 + $0x3c] sm:$0xf]
      %v3289 = vunpack.c.l.b16 %v3257
      %v3290 = vunpack.c.l.b16 %v3258
      %v3291 = vunpack.c.l.b16 %v3259
      %v3292 = vunpack.c.l.b16 %v3260
      %v3293 = vunpack.c.l.b16 %v3261
      %v3294 = vunpack.c.l.b16 %v3262
      %v3295 = vunpack.c.l.b16 %v3263
      %v3296 = vunpack.c.l.b16 %v3264
      %v3297 = vunpack.c.l.b16 %v3265
      %v3298 = vunpack.c.l.b16 %v3266
      %v3299 = vunpack.c.l.b16 %v3267
      %v3300 = vunpack.c.l.b16 %v3268
      %v3301 = vunpack.c.l.b16 %v3269
      %v3302 = vunpack.c.l.b16 %v3270
      %v3303 = vunpack.c.l.b16 %v3271
      %v3304 = vunpack.c.l.b16 %v3272
      %v3305 = vpack.c.b16 %v3290, %v3289
      %v3306 = vpack.c.b16 %v3292, %v3291
      %v3307 = vpack.c.b16 %v3294, %v3293
      %v3308 = vpack.c.b16 %v3296, %v3295
      %v3309 = vpack.c.b16 %v3298, %v3297
      %v3310 = vpack.c.b16 %v3300, %v3299
      %v3311 = vpack.c.b16 %v3302, %v3301
      %v3312 = vpack.c.b16 %v3304, %v3303
      %3321 = vmatprep.subr.bf16.mxu0 0
      %3322 = vmatpush1.bf16.msra.mxu0 %v3305
      %3323 = vmatprep.subr.bf16.mxu0 0
      %3324 = vmatpush1.bf16.msra.mxu0 %v3306
      %3325 = vmatprep.subr.bf16.mxu0 0
      %3326 = vmatpush1.bf16.msra.mxu0 %v3307
      %3327 = vmatprep.subr.bf16.mxu0 0
      %3328 = vmatpush1.bf16.msra.mxu0 %v3308
      %3329 = vmatprep.subr.bf16.mxu0 0
      %3330 = vmatpush1.bf16.msra.mxu0 %v3309
      %3331 = vmatprep.subr.bf16.mxu0 0
      %3332 = vmatpush1.bf16.msra.mxu0 %v3310
      %3333 = vmatprep.subr.bf16.mxu0 0
      %3334 = vmatpush1.bf16.msra.mxu0 %v3311
      %3335 = vmatprep.subr.bf16.mxu0 0
      %3336 = vmatpush1.bf16.msra.mxu0 %v3312
      %3337 = vmatprep.subr.bf16.mxu0 0
      %3338 = vmatpush1.bf16.msra.mxu0 0
      %3339 = vmatprep.subr.bf16.mxu0 0
      %3340 = vmatpush1.bf16.msra.mxu0 0
      %3341 = vmatprep.subr.bf16.mxu0 0
      %3342 = vmatpush1.bf16.msra.mxu0 0
      %3343 = vmatprep.subr.bf16.mxu0 0
      %3344 = vmatpush1.bf16.msra.mxu0 0
      %3345 = vmatprep.subr.bf16.mxu0 0
      %3346 = vmatpush1.bf16.msra.mxu0 0
      %3347 = vmatprep.subr.bf16.mxu0 0
      %3348 = vmatpush1.bf16.msra.mxu0 0
      %3349 = vmatprep.subr.bf16.mxu0 0
      %3350 = vmatpush1.bf16.msra.mxu0 0
      %3351 = vmatprep.subr.bf16.mxu0 0
      %3352 = vmatpush1.bf16.msra.mxu0 0
      %3353 = vmatprep.mubr.bf16.mxu0 0
      %3354 = vmatmul.mubr.bf16.gmra.mrb[0].mxu0 %v2226
      %v3355 = vpop.f32.mrb[0].mxu0
      %v3356 = vadd.f32 0.0, %v3355
      %v3357 = vpop.f32.mrb[0].mxu0
      %v3358 = vpop.f32.mrb[0].mxu0
      %v3359 = vadd.f32 0.0, %v3358
      %v3360 = vpop.f32.mrb[0].mxu0
      %3361 = vmatprep.mubr.bf16.mxu0 0
      %3362 = vmatmul.mubr.bf16.gmra.mrb[0].mxu0 %v2227
      %v3363 = vpop.f32.mrb[0].mxu0
      %v3364 = vadd.f32 0.0, %v3363
      %v3365 = vpop.f32.mrb[0].mxu0
      %v3366 = vpop.f32.mrb[0].mxu0
      %v3367 = vadd.f32 0.0, %v3366
      %v3368 = vpop.f32.mrb[0].mxu0
      %3369 = vmatprep.mubr.bf16.mxu0 0
      %3370 = vmatmul.mubr.bf16.gmra.mrb[0].mxu0 %v2228
      %v3371 = vpop.f32.mrb[0].mxu0
      %v3372 = vadd.f32 0.0, %v3371
      %v3373 = vpop.f32.mrb[0].mxu0
      %v3374 = vpop.f32.mrb[0].mxu0
      %v3375 = vadd.f32 0.0, %v3374
      %v3376 = vpop.f32.mrb[0].mxu0
      %3377 = vmatprep.mubr.bf16.mxu0 0
      %3378 = vmatmul.mubr.bf16.gmra.mrb[0].mxu0 %v2229
      %v3379 = vpop.f32.mrb[0].mxu0
      %v3380 = vadd.f32 0.0, %v3379
      %v3381 = vpop.f32.mrb[0].mxu0
      %v3382 = vpop.f32.mrb[0].mxu0
      %v3383 = vadd.f32 0.0, %v3382
      %v3384 = vpop.f32.mrb[0].mxu0
      %3385 = vmatprep.mubr.bf16.mxu0 0
      %3386 = vmatmul.mubr.bf16.gmra.mrb[0].mxu0 %v2230
      %v3387 = vpop.f32.mrb[0].mxu0
      %v3388 = vadd.f32 0.0, %v3387
      %v3389 = vpop.f32.mrb[0].mxu0
      %v3390 = vpop.f32.mrb[0].mxu0
      %v3391 = vadd.f32 0.0, %v3390
      %v3392 = vpop.f32.mrb[0].mxu0
      %3393 = vmatprep.mubr.bf16.mxu0 0
      %3394 = vmatmul.mubr.bf16.gmra.mrb[0].mxu0 %v2231
      %v3395 = vpop.f32.mrb[0].mxu0
      %v3396 = vadd.f32 0.0, %v3395
      %v3397 = vpop.f32.mrb[0].mxu0
      %v3398 = vpop.f32.mrb[0].mxu0
      %v3399 = vadd.f32 0.0, %v3398
      %v3400 = vpop.f32.mrb[0].mxu0
      %3401 = vmatprep.mubr.bf16.mxu0 0
      %3402 = vmatmul.mubr.bf16.gmra.mrb[0].mxu0 %v2232
      %v3403 = vpop.f32.mrb[0].mxu0
      %v3404 = vadd.f32 0.0, %v3403
      %v3405 = vpop.f32.mrb[0].mxu0
      %v3406 = vpop.f32.mrb[0].mxu0
      %v3407 = vadd.f32 0.0, %v3406
      %v3408 = vpop.f32.mrb[0].mxu0
      %3409 = vmatprep.mubr.bf16.mxu0 0
      %3410 = vmatmul.mubr.bf16.gmra.mrb[0].mxu0 %v2233
      %v3411 = vpop.f32.mrb[0].mxu0
      %v3412 = vadd.f32 0.0, %v3411
      %v3413 = vpop.f32.mrb[0].mxu0
      %v3414 = vpop.f32.mrb[0].mxu0
      %v3415 = vadd.f32 0.0, %v3414
      %v3416 = vpop.f32.mrb[0].mxu0
      %3417 = vdwg.mxu0
      %v3434 = vunpack.c.l.b16 %v3240
      %v3435 = vunpack.c.l.b16 %v3241
      %v3436 = vunpack.c.l.b16 %v3242
      %v3437 = vunpack.c.l.b16 %v3243
      %v3438 = vunpack.c.l.b16 %v3244
      %v3439 = vunpack.c.l.b16 %v3245
      %v3440 = vunpack.c.l.b16 %v3246
      %v3441 = vunpack.c.l.b16 %v3247
      %v3442 = vunpack.c.l.b16 %v3248
      %v3443 = vunpack.c.l.b16 %v3249
      %v3444 = vunpack.c.l.b16 %v3250
      %v3445 = vunpack.c.l.b16 %v3251
      %v3446 = vunpack.c.l.b16 %v3252
      %v3447 = vunpack.c.l.b16 %v3253
      %v3448 = vunpack.c.l.b16 %v3254
      %v3449 = vunpack.c.l.b16 %v3255
      %v3450 = vpack.c.b16 %v3435, %v3434
      %v3451 = vpack.c.b16 %v3437, %v3436
      %v3452 = vpack.c.b16 %v3439, %v3438
      %v3453 = vpack.c.b16 %v3441, %v3440
      %v3454 = vpack.c.b16 %v3443, %v3442
      %v3455 = vpack.c.b16 %v3445, %v3444
      %v3456 = vpack.c.b16 %v3447, %v3446
      %v3457 = vpack.c.b16 %v3449, %v3448
      %3466 = vmatprep.subr.bf16.mxu0 0
      %3467 = vmatpush1.bf16.msra.mxu0 %v3450
      %3468 = vmatprep.subr.bf16.mxu0 0
      %3469 = vmatpush1.bf16.msra.mxu0 %v3451
      %3470 = vmatprep.subr.bf16.mxu0 0
      %3471 = vmatpush1.bf16.msra.mxu0 %v3452
      %3472 = vmatprep.subr.bf16.mxu0 0
      %3473 = vmatpush1.bf16.msra.mxu0 %v3453
      %3474 = vmatprep.subr.bf16.mxu0 0
      %3475 = vmatpush1.bf16.msra.mxu0 %v3454
      %3476 = vmatprep.subr.bf16.mxu0 0
      %3477 = vmatpush1.bf16.msra.mxu0 %v3455
      %3478 = vmatprep.subr.bf16.mxu0 0
      %3479 = vmatpush1.bf16.msra.mxu0 %v3456
      %3480 = vmatprep.subr.bf16.mxu0 0
      %3481 = vmatpush1.bf16.msra.mxu0 %v3457
      %3482 = vmatprep.subr.bf16.mxu0 0
      %3483 = vmatpush1.bf16.msra.mxu0 0
      %3484 = vmatprep.subr.bf16.mxu0 0
      %3485 = vmatpush1.bf16.msra.mxu0 0
      %3486 = vmatprep.subr.bf16.mxu0 0
      %3487 = vmatpush1.bf16.msra.mxu0 0
      %3488 = vmatprep.subr.bf16.mxu0 0
      %3489 = vmatpush1.bf16.msra.mxu0 0
      %3490 = vmatprep.subr.bf16.mxu0 0
      %3491 = vmatpush1.bf16.msra.mxu0 0
      %3492 = vmatprep.subr.bf16.mxu0 0
      %3493 = vmatpush1.bf16.msra.mxu0 0
      %3494 = vmatprep.subr.bf16.mxu0 0
      %3495 = vmatpush1.bf16.msra.mxu0 0
      %3496 = vmatprep.subr.bf16.mxu0 0
      %3497 = vmatpush1.bf16.msra.mxu0 0
      %3498 = vmatprep.mubr.bf16.mxu0 0
      %3499 = vmatmul.mubr.bf16.gmra.mrb[0].mxu0 %v2225
      %v3500 = vpop.f32.mrb[0].mxu0
      %v3501 = vadd.f32 %v3356, %v3500
      %v3502 = vpop.f32.mrb[0].mxu0
      %v3503 = vpop.f32.mrb[0].mxu0
      %v3504 = vadd.f32 %v3359, %v3503
      %v3505 = vpop.f32.mrb[0].mxu0
      %3506 = vmatprep.mubr.bf16.mxu0 0
      %3507 = vmatmul.mubr.bf16.gmra.mrb[0].mxu0 %v2226
      %v3508 = vpop.f32.mrb[0].mxu0
      %v3509 = vadd.f32 %v3364, %v3508
      %v3510 = vpop.f32.mrb[0].mxu0
      %v3511 = vpop.f32.mrb[0].mxu0
      %v3512 = vadd.f32 %v3367, %v3511
      %v3513 = vpop.f32.mrb[0].mxu0
      %3514 = vmatprep.mubr.bf16.mxu0 0
      %3515 = vmatmul.mubr.bf16.gmra.mrb[0].mxu0 %v2227
      %v3516 = vpop.f32.mrb[0].mxu0
      %v3517 = vadd.f32 %v3372, %v3516
      %v3518 = vpop.f32.mrb[0].mxu0
      %v3519 = vpop.f32.mrb[0].mxu0
      %v3520 = vadd.f32 %v3375, %v3519
      %v3521 = vpop.f32.mrb[0].mxu0
      %3522 = vmatprep.mubr.bf16.mxu0 0
      %3523 = vmatmul.mubr.bf16.gmra.mrb[0].mxu0 %v2228
      %v3524 = vpop.f32.mrb[0].mxu0
      %v3525 = vadd.f32 %v3380, %v3524
      %v3526 = vpop.f32.mrb[0].mxu0
      %v3527 = vpop.f32.mrb[0].mxu0
      %v3528 = vadd.f32 %v3383, %v3527
      %v3529 = vpop.f32.mrb[0].mxu0
      %3530 = vmatprep.mubr.bf16.mxu0 0
      %3531 = vmatmul.mubr.bf16.gmra.mrb[0].mxu0 %v2229
      %v3532 = vpop.f32.mrb[0].mxu0
      %v3533 = vadd.f32 %v3388, %v3532
      %v3534 = vpop.f32.mrb[0].mxu0
      %v3535 = vpop.f32.mrb[0].mxu0
      %v3536 = vadd.f32 %v3391, %v3535
      %v3537 = vpop.f32.mrb[0].mxu0
      %3538 = vmatprep.mubr.bf16.mxu0 0
      %3539 = vmatmul.mubr.bf16.gmra.mrb[0].mxu0 %v2230
      %v3540 = vpop.f32.mrb[0].mxu0
      %v3541 = vadd.f32 %v3396, %v3540
      %v3542 = vpop.f32.mrb[0].mxu0
      %v3543 = vpop.f32.mrb[0].mxu0
      %v3544 = vadd.f32 %v3399, %v3543
      %v3545 = vpop.f32.mrb[0].mxu0
      %3546 = vmatprep.mubr.bf16.mxu0 0
      %3547 = vmatmul.mubr.bf16.gmra.mrb[0].mxu0 %v2231
      %v3548 = vpop.f32.mrb[0].mxu0
      %v3549 = vadd.f32 %v3404, %v3548
      %v3550 = vpop.f32.mrb[0].mxu0
      %v3551 = vpop.f32.mrb[0].mxu0
      %v3552 = vadd.f32 %v3407, %v3551
      %v3553 = vpop.f32.mrb[0].mxu0
      %3554 = vmatprep.mubr.bf16.mxu0 0
      %3555 = vmatmul.mubr.bf16.gmra.mrb[0].mxu0 %v2232
      %v3556 = vpop.f32.mrb[0].mxu0
      %v3557 = vadd.f32 %v3412, %v3556
      %v3558 = vpop.f32.mrb[0].mxu0
      %v3559 = vpop.f32.mrb[0].mxu0
      %v3560 = vadd.f32 %v3415, %v3559
      %v3561 = vpop.f32.mrb[0].mxu0
      %3562 = vdwg.mxu0
      %s3563 = scalar_lea.vmem %s3, 512
      %v3564 = vld [vmem:[%s3563] sm:$0xf]
      %v3565 = vld [vmem:[%s3563 + $0x4] sm:$0xf]
      %v3566 = vld [vmem:[%s3563 + $0x8] sm:$0xf]
      %v3567 = vld [vmem:[%s3563 + $0xc] sm:$0xf]
      %v3568 = vld [vmem:[%s3563 + $0x10] sm:$0xf]
      %v3569 = vld [vmem:[%s3563 + $0x14] sm:$0xf]
      %v3570 = vld [vmem:[%s3563 + $0x18] sm:$0xf]
      %v3571 = vld [vmem:[%s3563 + $0x1c] sm:$0xf]
      %v3572 = vld [vmem:[%s3563 + $0x20] sm:$0xf]
      %v3573 = vld [vmem:[%s3563 + $0x24] sm:$0xf]
      %v3574 = vld [vmem:[%s3563 + $0x28] sm:$0xf]
      %v3575 = vld [vmem:[%s3563 + $0x2c] sm:$0xf]
      %v3576 = vld [vmem:[%s3563 + $0x30] sm:$0xf]
      %v3577 = vld [vmem:[%s3563 + $0x34] sm:$0xf]
      %v3578 = vld [vmem:[%s3563 + $0x38] sm:$0xf]
      %v3579 = vld [vmem:[%s3563 + $0x3c] sm:$0xf]
      %v3596 = vunpack.c.l.b16 %v3564
      %v3597 = vunpack.c.l.b16 %v3565
      %v3598 = vunpack.c.l.b16 %v3566
      %v3599 = vunpack.c.l.b16 %v3567
      %v3600 = vunpack.c.l.b16 %v3568
      %v3601 = vunpack.c.l.b16 %v3569
      %v3602 = vunpack.c.l.b16 %v3570
      %v3603 = vunpack.c.l.b16 %v3571
      %v3604 = vunpack.c.l.b16 %v3572
      %v3605 = vunpack.c.l.b16 %v3573
      %v3606 = vunpack.c.l.b16 %v3574
      %v3607 = vunpack.c.l.b16 %v3575
      %v3608 = vunpack.c.l.b16 %v3576
      %v3609 = vunpack.c.l.b16 %v3577
      %v3610 = vunpack.c.l.b16 %v3578
      %v3611 = vunpack.c.l.b16 %v3579
      %v3612 = vpack.c.b16 %v3597, %v3596
      %v3613 = vpack.c.b16 %v3599, %v3598
      %v3614 = vpack.c.b16 %v3601, %v3600
      %v3615 = vpack.c.b16 %v3603, %v3602
      %v3616 = vpack.c.b16 %v3605, %v3604
      %v3617 = vpack.c.b16 %v3607, %v3606
      %v3618 = vpack.c.b16 %v3609, %v3608
      %v3619 = vpack.c.b16 %v3611, %v3610
      %3628 = vmatprep.subr.bf16.mxu0 0
      %3629 = vmatpush1.bf16.msra.mxu0 %v3612
      %3630 = vmatprep.subr.bf16.mxu0 0
      %3631 = vmatpush1.bf16.msra.mxu0 %v3613
      %3632 = vmatprep.subr.bf16.mxu0 0
      %3633 = vmatpush1.bf16.msra.mxu0 %v3614
      %3634 = vmatprep.subr.bf16.mxu0 0
      %3635 = vmatpush1.bf16.msra.mxu0 %v3615
      %3636 = vmatprep.subr.bf16.mxu0 0
      %3637 = vmatpush1.bf16.msra.mxu0 %v3616
      %3638 = vmatprep.subr.bf16.mxu0 0
      %3639 = vmatpush1.bf16.msra.mxu0 %v3617
      %3640 = vmatprep.subr.bf16.mxu0 0
      %3641 = vmatpush1.bf16.msra.mxu0 %v3618
      %3642 = vmatprep.subr.bf16.mxu0 0
      %3643 = vmatpush1.bf16.msra.mxu0 %v3619
      %3644 = vmatprep.subr.bf16.mxu0 0
      %3645 = vmatpush1.bf16.msra.mxu0 0
      %3646 = vmatprep.subr.bf16.mxu0 0
      %3647 = vmatpush1.bf16.msra.mxu0 0
      %3648 = vmatprep.subr.bf16.mxu0 0
      %3649 = vmatpush1.bf16.msra.mxu0 0
      %3650 = vmatprep.subr.bf16.mxu0 0
      %3651 = vmatpush1.bf16.msra.mxu0 0
      %3652 = vmatprep.subr.bf16.mxu0 0
      %3653 = vmatpush1.bf16.msra.mxu0 0
      %3654 = vmatprep.subr.bf16.mxu0 0
      %3655 = vmatpush1.bf16.msra.mxu0 0
      %3656 = vmatprep.subr.bf16.mxu0 0
      %3657 = vmatpush1.bf16.msra.mxu0 0
      %3658 = vmatprep.subr.bf16.mxu0 0
      %3659 = vmatpush1.bf16.msra.mxu0 0
      %3660 = vmatprep.mubr.bf16.mxu0 0
      %3661 = vmatmul.mubr.bf16.gmra.mrb[0].mxu0 %v2227
      %v3662 = vpop.f32.mrb[0].mxu0
      %v3663 = vadd.f32 0.0, %v3662
      %v3664 = vpop.f32.mrb[0].mxu0
      %v3665 = vpop.f32.mrb[0].mxu0
      %v3666 = vadd.f32 0.0, %v3665
      %v3667 = vpop.f32.mrb[0].mxu0
      %3668 = vmatprep.mubr.bf16.mxu0 0
      %3669 = vmatmul.mubr.bf16.gmra.mrb[0].mxu0 %v2228
      %v3670 = vpop.f32.mrb[0].mxu0
      %v3671 = vadd.f32 0.0, %v3670
      %v3672 = vpop.f32.mrb[0].mxu0
      %v3673 = vpop.f32.mrb[0].mxu0
      %v3674 = vadd.f32 0.0, %v3673
      %v3675 = vpop.f32.mrb[0].mxu0
      %3676 = vmatprep.mubr.bf16.mxu0 0
      %3677 = vmatmul.mubr.bf16.gmra.mrb[0].mxu0 %v2229
      %v3678 = vpop.f32.mrb[0].mxu0
      %v3679 = vadd.f32 0.0, %v3678
      %v3680 = vpop.f32.mrb[0].mxu0
      %v3681 = vpop.f32.mrb[0].mxu0
      %v3682 = vadd.f32 0.0, %v3681
      %v3683 = vpop.f32.mrb[0].mxu0
      %3684 = vmatprep.mubr.bf16.mxu0 0
      %3685 = vmatmul.mubr.bf16.gmra.mrb[0].mxu0 %v2230
      %v3686 = vpop.f32.mrb[0].mxu0
      %v3687 = vadd.f32 0.0, %v3686
      %v3688 = vpop.f32.mrb[0].mxu0
      %v3689 = vpop.f32.mrb[0].mxu0
      %v3690 = vadd.f32 0.0, %v3689
      %v3691 = vpop.f32.mrb[0].mxu0
      %3692 = vmatprep.mubr.bf16.mxu0 0
      %3693 = vmatmul.mubr.bf16.gmra.mrb[0].mxu0 %v2231
      %v3694 = vpop.f32.mrb[0].mxu0
      %v3695 = vadd.f32 0.0, %v3694
      %v3696 = vpop.f32.mrb[0].mxu0
      %v3697 = vpop.f32.mrb[0].mxu0
      %v3698 = vadd.f32 0.0, %v3697
      %v3699 = vpop.f32.mrb[0].mxu0
      %3700 = vmatprep.mubr.bf16.mxu0 0
      %3701 = vmatmul.mubr.bf16.gmra.mrb[0].mxu0 %v2232
      %v3702 = vpop.f32.mrb[0].mxu0
      %v3703 = vadd.f32 0.0, %v3702
      %v3704 = vpop.f32.mrb[0].mxu0
      %v3705 = vpop.f32.mrb[0].mxu0
      %v3706 = vadd.f32 0.0, %v3705
      %v3707 = vpop.f32.mrb[0].mxu0
      %3708 = vmatprep.mubr.bf16.mxu0 0
      %3709 = vmatmul.mubr.bf16.gmra.mrb[0].mxu0 %v2233
      %v3710 = vpop.f32.mrb[0].mxu0
      %v3711 = vadd.f32 0.0, %v3710
      %v3712 = vpop.f32.mrb[0].mxu0
      %v3713 = vpop.f32.mrb[0].mxu0
      %v3714 = vadd.f32 0.0, %v3713
      %v3715 = vpop.f32.mrb[0].mxu0
      %3716 = vmatprep.mubr.bf16.mxu0 0
      %3717 = vmatmul.mubr.bf16.gmra.mrb[0].mxu0 %v2234
      %v3718 = vpop.f32.mrb[0].mxu0
      %v3719 = vadd.f32 0.0, %v3718
      %v3720 = vpop.f32.mrb[0].mxu0
      %v3721 = vpop.f32.mrb[0].mxu0
      %v3722 = vadd.f32 0.0, %v3721
      %v3723 = vpop.f32.mrb[0].mxu0
      %3724 = vdwg.mxu0
      %v3725 = vadd.f32 %v3501, %v3663
      %v3726 = vadd.f32 %v3504, %v3666
      %v3727 = vadd.f32 %v3509, %v3671
      %v3728 = vadd.f32 %v3512, %v3674
      %v3729 = vadd.f32 %v3517, %v3679
      %v3730 = vadd.f32 %v3520, %v3682
      %v3731 = vadd.f32 %v3525, %v3687
      %v3732 = vadd.f32 %v3528, %v3690
      %v3733 = vadd.f32 %v3533, %v3695
      %v3734 = vadd.f32 %v3536, %v3698
      %v3735 = vadd.f32 %v3541, %v3703
      %v3736 = vadd.f32 %v3544, %v3706
      %v3737 = vadd.f32 %v3549, %v3711
      %v3738 = vadd.f32 %v3552, %v3714
      %v3739 = vadd.f32 %v3557, %v3719
      %v3740 = vadd.f32 %v3560, %v3722
      %v3741 = vrot.slane %v3725, 1
      %v3742 = vrot.slane %v3726, 1
      %v3743 = vrot.slane %v3727, 1
      %v3744 = vrot.slane %v3728, 1
      %v3745 = vrot.slane %v3729, 1
      %v3746 = vrot.slane %v3730, 1
      %v3747 = vrot.slane %v3731, 1
      %v3748 = vrot.slane %v3732, 1
      %v3749 = vrot.slane %v3733, 1
      %v3750 = vrot.slane %v3734, 1
      %v3751 = vrot.slane %v3735, 1
      %v3752 = vrot.slane %v3736, 1
      %v3753 = vrot.slane %v3737, 1
      %v3754 = vrot.slane %v3738, 1
      %v3755 = vrot.slane %v3739, 1
      %v3756 = vrot.slane %v3740, 1
      %v3757 = vsel %vm2110, %v3755, %v3756
      %v3758 = vsel %vm2110, %v3753, %v3754
      %v3759 = vsel %vm2110, %v3751, %v3752
      %v3760 = vsel %vm2110, %v3749, %v3750
      %v3761 = vsel %vm2110, %v3747, %v3748
      %v3762 = vsel %vm2110, %v3745, %v3746
      %v3763 = vsel %vm2110, %v3743, %v3744
      %v3764 = vsel %vm2110, %v3741, %v3742
      %v3765 = vadd.f32 %v3231, %v3764
      %v3766 = vadd.f32 %v3232, %v3763
      %v3767 = vadd.f32 %v3233, %v3762
      %v3768 = vadd.f32 %v3234, %v3761
      %v3769 = vadd.f32 %v3235, %v3760
      %v3770 = vadd.f32 %v3236, %v3759
      %v3771 = vadd.f32 %v3237, %v3758
      %v3772 = vadd.f32 %v3238, %v3757
      %v3773 = vld [vmem:[%s4] sm:$0x1]
      %v3775 = vlaneseq
      %v3776 = vshrl.u32 %v3775, 7
      %v3777 = vsub.s32 0, %v3776
      %v3778 = vrot.slane %v3773, %v3777
      %v3780 = vadd.f32 %v3765, %v3778
      %v3781 = vadd.f32 %v3766, %v3778
      %v3782 = vadd.f32 %v3767, %v3778
      %v3783 = vadd.f32 %v3768, %v3778
      %v3784 = vadd.f32 %v3769, %v3778
      %v3785 = vadd.f32 %v3770, %v3778
      %v3786 = vadd.f32 %v3771, %v3778
      %v3787 = vadd.f32 %v3772, %v3778
      %v3788 = vld [vmem:[%s5] sm:$0xf]
      %v3789 = vld [vmem:[%s5 + $0x4] sm:$0xf]
      %v3790 = vld [vmem:[%s5 + $0x8] sm:$0xf]
      %v3791 = vld [vmem:[%s5 + $0xc] sm:$0xf]
      %v3792 = vld [vmem:[%s5 + $0x10] sm:$0xf]
      %v3793 = vld [vmem:[%s5 + $0x14] sm:$0xf]
      %v3794 = vld [vmem:[%s5 + $0x18] sm:$0xf]
      %v3795 = vld [vmem:[%s5 + $0x1c] sm:$0xf]
      %v3796 = vld [vmem:[%s5 + $0x20] sm:$0xf]
      %v3797 = vld [vmem:[%s5 + $0x24] sm:$0xf]
      %v3798 = vld [vmem:[%s5 + $0x28] sm:$0xf]
      %v3799 = vld [vmem:[%s5 + $0x2c] sm:$0xf]
      %v3800 = vld [vmem:[%s5 + $0x30] sm:$0xf]
      %v3801 = vld [vmem:[%s5 + $0x34] sm:$0xf]
      %v3802 = vld [vmem:[%s5 + $0x38] sm:$0xf]
      %v3803 = vld [vmem:[%s5 + $0x3c] sm:$0xf]
      %v3820 = vunpack.c.l.b16 %v3788
      %v3821 = vunpack.c.l.b16 %v3789
      %v3822 = vunpack.c.l.b16 %v3790
      %v3823 = vunpack.c.l.b16 %v3791
      %v3824 = vunpack.c.l.b16 %v3792
      %v3825 = vunpack.c.l.b16 %v3793
      %v3826 = vunpack.c.l.b16 %v3794
      %v3827 = vunpack.c.l.b16 %v3795
      %v3828 = vunpack.c.l.b16 %v3796
      %v3829 = vunpack.c.l.b16 %v3797
      %v3830 = vunpack.c.l.b16 %v3798
      %v3831 = vunpack.c.l.b16 %v3799
      %v3832 = vunpack.c.l.b16 %v3800
      %v3833 = vunpack.c.l.b16 %v3801
      %v3834 = vunpack.c.l.b16 %v3802
      %v3835 = vunpack.c.l.b16 %v3803
      %v3836 = vpack.c.b16 %v3821, %v3820
      %v3837 = vpack.c.b16 %v3823, %v3822
      %v3838 = vpack.c.b16 %v3825, %v3824
      %v3839 = vpack.c.b16 %v3827, %v3826
      %v3840 = vpack.c.b16 %v3829, %v3828
      %v3841 = vpack.c.b16 %v3831, %v3830
      %v3842 = vpack.c.b16 %v3833, %v3832
      %v3843 = vpack.c.b16 %v3835, %v3834
      %3852 = vmatprep.subr.bf16.mxu0 0
      %3853 = vmatpush1.bf16.msra.mxu0 %v3836
      %3854 = vmatprep.subr.bf16.mxu0 0
      %3855 = vmatpush1.bf16.msra.mxu0 %v3837
      %3856 = vmatprep.subr.bf16.mxu0 0
      %3857 = vmatpush1.bf16.msra.mxu0 %v3838
      %3858 = vmatprep.subr.bf16.mxu0 0
      %3859 = vmatpush1.bf16.msra.mxu0 %v3839
      %3860 = vmatprep.subr.bf16.mxu0 0
      %3861 = vmatpush1.bf16.msra.mxu0 %v3840
      %3862 = vmatprep.subr.bf16.mxu0 0
      %3863 = vmatpush1.bf16.msra.mxu0 %v3841
      %3864 = vmatprep.subr.bf16.mxu0 0
      %3865 = vmatpush1.bf16.msra.mxu0 %v3842
      %3866 = vmatprep.subr.bf16.mxu0 0
      %3867 = vmatpush1.bf16.msra.mxu0 %v3843
      %3868 = vmatprep.subr.bf16.mxu0 0
      %3869 = vmatpush1.bf16.msra.mxu0 0
      %3870 = vmatprep.subr.bf16.mxu0 0
      %3871 = vmatpush1.bf16.msra.mxu0 0
      %3872 = vmatprep.subr.bf16.mxu0 0
      %3873 = vmatpush1.bf16.msra.mxu0 0
      %3874 = vmatprep.subr.bf16.mxu0 0
      %3875 = vmatpush1.bf16.msra.mxu0 0
      %3876 = vmatprep.subr.bf16.mxu0 0
      %3877 = vmatpush1.bf16.msra.mxu0 0
      %3878 = vmatprep.subr.bf16.mxu0 0
      %3879 = vmatpush1.bf16.msra.mxu0 0
      %3880 = vmatprep.subr.bf16.mxu0 0
      %3881 = vmatpush1.bf16.msra.mxu0 0
      %3882 = vmatprep.subr.bf16.mxu0 0
      %3883 = vmatpush1.bf16.msra.mxu0 0
      %3884 = vmatprep.mubr.bf16.mxu0 0
      %3885 = vmatmul.mubr.bf16.gmra.mrb[0].mxu0 %v1045
      %v3886 = vpop.f32.mrb[0].mxu0
      %v3887 = vadd.f32 0.0, %v3886
      %v3888 = vpop.f32.mrb[0].mxu0
      %v3889 = vpop.f32.mrb[0].mxu0
      %v3890 = vpop.f32.mrb[0].mxu0
      %3891 = vmatprep.mubr.bf16.mxu0 0
      %3892 = vmatmul.mubr.bf16.gmra.mrb[0].mxu0 %v1046
      %v3893 = vpop.f32.mrb[0].mxu0
      %v3894 = vadd.f32 0.0, %v3893
      %v3895 = vpop.f32.mrb[0].mxu0
      %v3896 = vpop.f32.mrb[0].mxu0
      %v3897 = vpop.f32.mrb[0].mxu0
      %3898 = vmatprep.mubr.bf16.mxu0 0
      %3899 = vmatmul.mubr.bf16.gmra.mrb[0].mxu0 %v1047
      %v3900 = vpop.f32.mrb[0].mxu0
      %v3901 = vadd.f32 0.0, %v3900
      %v3902 = vpop.f32.mrb[0].mxu0
      %v3903 = vpop.f32.mrb[0].mxu0
      %v3904 = vpop.f32.mrb[0].mxu0
      %3905 = vmatprep.mubr.bf16.mxu0 0
      %3906 = vmatmul.mubr.bf16.gmra.mrb[0].mxu0 %v1048
      %v3907 = vpop.f32.mrb[0].mxu0
      %v3908 = vadd.f32 0.0, %v3907
      %v3909 = vpop.f32.mrb[0].mxu0
      %v3910 = vpop.f32.mrb[0].mxu0
      %v3911 = vpop.f32.mrb[0].mxu0
      %3912 = vmatprep.mubr.bf16.mxu0 0
      %3913 = vmatmul.mubr.bf16.gmra.mrb[0].mxu0 %v1049
      %v3914 = vpop.f32.mrb[0].mxu0
      %v3915 = vadd.f32 0.0, %v3914
      %v3916 = vpop.f32.mrb[0].mxu0
      %v3917 = vpop.f32.mrb[0].mxu0
      %v3918 = vpop.f32.mrb[0].mxu0
      %3919 = vmatprep.mubr.bf16.mxu0 0
      %3920 = vmatmul.mubr.bf16.gmra.mrb[0].mxu0 %v1050
      %v3921 = vpop.f32.mrb[0].mxu0
      %v3922 = vadd.f32 0.0, %v3921
      %v3923 = vpop.f32.mrb[0].mxu0
      %v3924 = vpop.f32.mrb[0].mxu0
      %v3925 = vpop.f32.mrb[0].mxu0
      %3926 = vmatprep.mubr.bf16.mxu0 0
      %3927 = vmatmul.mubr.bf16.gmra.mrb[0].mxu0 %v1051
      %v3928 = vpop.f32.mrb[0].mxu0
      %v3929 = vadd.f32 0.0, %v3928
      %v3930 = vpop.f32.mrb[0].mxu0
      %v3931 = vpop.f32.mrb[0].mxu0
      %v3932 = vpop.f32.mrb[0].mxu0
      %3933 = vmatprep.mubr.bf16.mxu0 0
      %3934 = vmatmul.mubr.bf16.gmra.mrb[0].mxu0 %v1052
      %v3935 = vpop.f32.mrb[0].mxu0
      %v3936 = vadd.f32 0.0, %v3935
      %v3937 = vpop.f32.mrb[0].mxu0
      %v3938 = vpop.f32.mrb[0].mxu0
      %v3939 = vpop.f32.mrb[0].mxu0
      %3940 = vdwg.mxu0
      %v3941 = vadd.f32 %v3780, %v3887
      %v3942 = vadd.f32 %v3781, %v3894
      %v3943 = vadd.f32 %v3782, %v3901
      %v3944 = vadd.f32 %v3783, %v3908
      %v3945 = vadd.f32 %v3784, %v3915
      %v3946 = vadd.f32 %v3785, %v3922
      %v3947 = vadd.f32 %v3786, %v3929
      %v3948 = vadd.f32 %v3787, %v3936
      %v3949 = vld [vmem:[%s6] sm:$0x1]
      %v3951 = vlaneseq
      %v3952 = vshrl.u32 %v3951, 7
      %v3953 = vsub.s32 0, %v3952
      %v3954 = vrot.slane %v3949, %v3953
      %v3956 = vadd.f32 %v3941, %v3954
      %v3957 = vadd.f32 %v3942, %v3954
      %v3958 = vadd.f32 %v3943, %v3954
      %v3959 = vadd.f32 %v3944, %v3954
      %v3960 = vadd.f32 %v3945, %v3954
      %v3961 = vadd.f32 %v3946, %v3954
      %v3962 = vadd.f32 %v3947, %v3954
      %v3963 = vadd.f32 %v3948, %v3954
      %v3964 = vmax.f32 %v3956, 0.0
      %v3965 = vmax.f32 %v3957, 0.0
      %v3966 = vmax.f32 %v3958, 0.0
      %v3967 = vmax.f32 %v3959, 0.0
      %v3968 = vmax.f32 %v3960, 0.0
      %v3969 = vmax.f32 %v3961, 0.0
      %v3970 = vmax.f32 %v3962, 0.0
      %v3971 = vmax.f32 %v3963, 0.0
      %v3972 = vpack.c.bf16 %v3964, %v3964
      %v3973 = vpack.c.bf16 %v3965, %v3965
      %v3974 = vpack.c.bf16 %v3966, %v3966
      %v3975 = vpack.c.bf16 %v3967, %v3967
      %v3976 = vpack.c.bf16 %v3968, %v3968
      %v3977 = vpack.c.bf16 %v3969, %v3969
      %v3978 = vpack.c.bf16 %v3970, %v3970
      %v3979 = vpack.c.bf16 %v3971, %v3971
      %3980 = vst [vmem:[%s278] sm:$0xf] %v3972
      %3981 = vst [vmem:[%s278 + $0x4] sm:$0xf] %v3973
      %3982 = vst [vmem:[%s278 + $0x8] sm:$0xf] %v3974
      %3983 = vst [vmem:[%s278 + $0xc] sm:$0xf] %v3975
      %3984 = vst [vmem:[%s278 + $0x10] sm:$0xf] %v3976
      %3985 = vst [vmem:[%s278 + $0x14] sm:$0xf] %v3977
      %3986 = vst [vmem:[%s278 + $0x18] sm:$0xf] %v3978
      %3987 = vst [vmem:[%s278 + $0x1c] sm:$0xf] %v3979
      %p3988 = scmp.lt.s32.totalorder %s18, 1
      %s3989 = scalar_select %p3988, %s18, 1
      %s3990 = smul.addr %s3989, 8
      %s3991 = smul.addr %s3990, 4
      %s3992 = scalar_lea.vmem %s7, %s3991
      // Predicated region
      $region49: #{basic_block_forward.1} parent=47 // pred_check
        %p3993 = pneg %p188
      $region50: #{basic_block_forward.1} parent=47 // pred_check_branch
        %3995 = sbr.rel (%p3993) target = $region52
      $region51: #{basic_block_forward.1} parent=47 // pred_region
        _
      $region52: #{basic_block_forward.1} parent=47 // pred_fallthru
        _
    $region48: #{basic_block_forward.1} parent=5 // pred_fallthru
      _
    %p3996 = scmp.le.s32.totalorder 2, %s13
    // Predicated region
    $region53: #{basic_block_forward.1} parent=5 // pred_check
      %p3997 = pneg %p3996
    $region54: #{basic_block_forward.1} parent=5 // pred_check_branch
      %3999 = sbr.rel (%p3997) target = $region56
    $region55: #{basic_block_forward.1} parent=5 // pred_region
      %s4000 = ssub.s32 %s13, 2
      // Predicated region
      $region57: #{basic_block_forward.1} parent=55 // pred_check
        %p4001 = pneg %p194
      $region58: #{basic_block_forward.1} parent=55 // pred_check_branch
        %4003 = sbr.rel (%p4001) target = $region60
      $region59: #{basic_block_forward.1} parent=55 // pred_region
        %p4004 = scmp.lt.s32.totalorder %s19, 1
        %s4005 = scalar_select %p4004, %s19, 1
        %s4006 = smul.addr %s4005, 8
        %s4007 = smul.addr %s4006, 4
        %s4008 = scalar_lea.vmem %s7, %s4007
      $region60: #{basic_block_forward.1} parent=55 // pred_fallthru
        _
    $region56: #{basic_block_forward.1} parent=5 // pred_fallthru
      _
  $region6: #{basic_block_forward.1} parent=0 // loop_footer
    %s17 = sadd.s32 1, %s13
  $region7: #{basic_block_forward.1} parent=0 // loop_footer_branch
    %12 = sbr.rel target = $region3
  $region8: #{basic_block_forward.1} parent=0 // loop_exit
    _

</llo_original>
